<compile_context>
chip_gen: v6e
topology: v6e:2x2x1
jax: 0.10.0
libtpu: 0.0.40
codegen_flags: <defaults>
</compile_context>

<pallas_src>
import functools

import jax
import jax.numpy as jnp
from jax.experimental import pallas as pl
from jax.experimental.pallas import tpu as pltpu


# ---------------------------------------------------------------------------
# channel widths of Mixed_5b
# ---------------------------------------------------------------------------
C_IN = 192
C_B0 = 96      # branch0: 1x1
C_B1_0 = 48    # branch1: 1x1
C_B1_1 = 64    # branch1: 5x5 (pad 2)
C_B2_0 = 64    # branch2: 1x1
C_B2_1 = 96    # branch2: 3x3 (pad 1)
C_B2_2 = 96    # branch2: 3x3 (pad 1)
C_B3 = 64      # branch3: 1x1 (after 3x3 avg-pool)
C_1X1 = C_B0 + C_B1_0 + C_B2_0          # 208  (ReLU'd part of merged 1x1)
C_1X1_ALL = C_1X1 + C_B3                # 272  (all four 1x1 convs merged)
C_OUT = C_B0 + C_B1_1 + C_B2_2 + C_B3   # 320


# ---------------------------------------------------------------------------
# in-kernel helpers (trace-time Python, everything stays in VMEM / vregs)
# ---------------------------------------------------------------------------
def _pad_hw(x, p):
    """Zero-pad a (H, W, C) value by p on both spatial dims (VMEM only)."""
    H, W, C = x.shape
    zr = jnp.zeros((p, W, C), x.dtype)
    x = jnp.concatenate([zr, x, zr], axis=0)
    zc = jnp.zeros((H + 2 * p, p, C), x.dtype)
    return jnp.concatenate([zc, x, zc], axis=1)


def _im2col(x_hwc, K, H, W):
    """(H, W, C) -> (H*W, K*K*C) for a KxK, stride-1, pad (K-1)//2 conv.

    Column order is (kh, kw, cin), matching HWIO weights reshaped to
    (KH*KW*Cin, Cout)."""
    p = (K - 1) // 2
    xp = _pad_hw(x_hwc, p)
    cols = []
    for kh in range(K):
        for kw in range(K):
            cols.append(xp[kh:kh + H, kw:kw + W, :].reshape(H * W, -1))
    return jnp.concatenate(cols, axis=-1)


def _pool3x3_sum(x_hwc, H, W):
    """Sum over each 3x3 window (zero padded, stride 1): (H,W,C) -> (H*W, C)."""
    xp = _pad_hw(x_hwc, 1)
    s = None
    for kh in range(3):
        for kw in range(3):
            t = xp[kh:kh + H, kw:kw + W, :]
            s = t if s is None else s + t
    return s.reshape(H * W, -1)


# ---------------------------------------------------------------------------
# fused Mixed_5b kernel (one batch element per grid step)
# ---------------------------------------------------------------------------
def _mixed_5b_kernel(x_ref, w1_ref, bias1_ref, bias3_ref,
                     w11_ref, b11_ref, w21_ref, b21_ref, w22_ref, b22_ref,
                     inv_ref, o_ref, *, H, W):
    HW = H * W

    x_bf = x_ref[0].reshape(HW, C_IN).astype(jnp.bfloat16)    # (HW, 192)

    # ---- all four 1x1 convs as a single MXU matmul: (HW,192) @ (192,272) ----
    # BN scale is folded into the weights; epilogue is bias + ReLU only.
    y = jnp.dot(x_bf, w1_ref[...], preferred_element_type=jnp.float32)
    y012 = jnp.maximum(y[:, :C_1X1] + bias1_ref[...], 0.0)    # (HW, 208)

    b0 = y012[:, :C_B0]                                       # (HW, 96)
    b1_0 = y012[:, C_B0:C_B0 + C_B1_0]                        # (HW, 48)
    b2_0 = y012[:, C_B0 + C_B1_0:C_1X1]                       # (HW, 64)

    # ---- branch1: 5x5 conv 48->64 (pad 2) as one im2col matmul, K = 1200 ----
    im1 = _im2col(b1_0.astype(jnp.bfloat16).reshape(H, W, C_B1_0), 5, H, W)
    b1 = jnp.maximum(
        jnp.dot(im1, w11_ref[...], preferred_element_type=jnp.float32)
        + b11_ref[...], 0.0)                                   # (HW, 64)

    # ---- branch2: 3x3 conv 64->96 then 3x3 conv 96->96 (pads 1) ------------
    im2 = _im2col(b2_0.astype(jnp.bfloat16).reshape(H, W, C_B2_0), 3, H, W)
    t2 = jnp.maximum(
        jnp.dot(im2, w21_ref[...], preferred_element_type=jnp.float32)
        + b21_ref[...], 0.0)                                   # (HW, 96)

    im2b = _im2col(t2.astype(jnp.bfloat16).reshape(H, W, C_B2_1), 3, H, W)
    b2 = jnp.maximum(
        jnp.dot(im2b, w22_ref[...], preferred_element_type=jnp.float32)
        + b22_ref[...], 0.0)                                   # (HW, 96)

    # ---- branch3: 3x3 avg-pool (count_include_pad=False) + 1x1 conv --------
    # The 1x1 conv is linear and bias-free, and the per-channel BN scale
    # commutes with the spatial average, so scale*conv(avgpool(x)) ==
    # avgpool(scale*conv(x)); the scaled conv is already column block
    # [208:272] of the merged matmul above.
    z3 = y[:, C_1X1:C_1X1_ALL]                                 # (HW, 64)
    pooled = _pool3x3_sum(z3.reshape(H, W, C_B3), H, W) * inv_ref[...]
    b3 = jnp.maximum(pooled + bias3_ref[...], 0.0)             # (HW, 64)

    # ---- lane-dense 320-wide output slab ------------------------------------
    out = jnp.concatenate([b0, b1, b2, b3], axis=-1)           # (HW, 320)
    o_ref[0] = out.reshape(H, W, C_OUT).astype(o_ref.dtype)


# ---------------------------------------------------------------------------
# pallas_call wrapper
# ---------------------------------------------------------------------------
def mixed_5b_pallas(x_nhwc, packed):
    N, H, W, Cin = x_nhwc.shape
    assert Cin == C_IN
    HW = H * W

    # 1 / (# valid elements in each 3x3 window) for count_include_pad=False.
    ih = jnp.arange(H)
    iw = jnp.arange(W)
    cnt_h = (jnp.minimum(ih + 1, H - 1) - jnp.maximum(ih - 1, 0) + 1).astype(jnp.float32)
    cnt_w = (jnp.minimum(iw + 1, W - 1) - jnp.maximum(iw - 1, 0) + 1).astype(jnp.float32)
    inv_counts = (1.0 / (cnt_h[:, None] * cnt_w[None, :])).reshape(HW, 1)

    kernel = functools.partial(_mixed_5b_kernel, H=H, W=W)
    return pl.pallas_call(
        kernel,
        out_shape=jax.ShapeDtypeStruct((N, H, W, C_OUT), x_nhwc.dtype),
        grid=(N,),
        in_specs=[
            pl.BlockSpec((1, H, W, C_IN), lambda n: (n, 0, 0, 0)),     # x
            pl.BlockSpec((C_IN, C_1X1_ALL), lambda n: (0, 0)),         # merged 1x1 W
            pl.BlockSpec((1, C_1X1), lambda n: (0, 0)),                # bias 208
            pl.BlockSpec((1, C_B3), lambda n: (0, 0)),                 # bias b3
            pl.BlockSpec((25 * C_B1_0, C_B1_1), lambda n: (0, 0)),     # b1_1 im2col W
            pl.BlockSpec((1, C_B1_1), lambda n: (0, 0)),
            pl.BlockSpec((9 * C_B2_0, C_B2_1), lambda n: (0, 0)),      # b2_1 im2col W
            pl.BlockSpec((1, C_B2_1), lambda n: (0, 0)),
            pl.BlockSpec((9 * C_B2_1, C_B2_2), lambda n: (0, 0)),      # b2_2 im2col W
            pl.BlockSpec((1, C_B2_2), lambda n: (0, 0)),
            pl.BlockSpec((HW, 1), lambda n: (0, 0)),                   # inv pool counts
        ],
        out_specs=pl.BlockSpec((1, H, W, C_OUT), lambda n: (n, 0, 0, 0)),
        compiler_params=pltpu.CompilerParams(
            dimension_semantics=("parallel",)),      # N=2 covers both v7x TCs
    )(x_nhwc, packed["w_1x1"], packed["bias_1x1"], packed["bias_b3"],
      packed["w_b1_1"], packed["bias_b1_1"],
      packed["w_b2_1"], packed["bias_b2_1"],
      packed["w_b2_2"], packed["bias_b2_2"],
      inv_counts)


# ---------------------------------------------------------------------------
# parameter init (deterministic, synthetic), BN folding and MXU packing
# ---------------------------------------------------------------------------
def _init_basic_conv(key, kh, kw, cin, cout, eps=1e-3):
    kw_, kg, kb, km, kv = jax.random.split(key, 5)
    fan_in = cin * kh * kw
    w = jax.random.normal(kw_, (kh, kw, cin, cout), jnp.float32) / jnp.sqrt(
        jnp.float32(fan_in))
    gamma = jax.random.uniform(kg, (cout,), jnp.float32, 0.5, 1.5)
    beta = 0.1 * jax.random.normal(kb, (cout,), jnp.float32)
    run_mean = 0.1 * jax.random.normal(km, (cout,), jnp.float32)
    run_var = jax.random.uniform(kv, (cout,), jnp.float32, 0.5, 1.5)
    scale = gamma / jnp.sqrt(run_var + eps)       # fold BN (eval mode)
    bias = beta - run_mean * scale
    return (w, scale, bias)    # w is HWIO


def init_mixed_5b_params(key):
    ks = jax.random.split(key, 7)
    return {
        "b0":   _init_basic_conv(ks[0], 1, 1, 192, 96),
        "b1_0": _init_basic_conv(ks[1], 1, 1, 192, 48),
        "b1_1": _init_basic_conv(ks[2], 5, 5, 48, 64),
        "b2_0": _init_basic_conv(ks[3], 1, 1, 192, 64),
        "b2_1": _init_basic_conv(ks[4], 3, 3, 64, 96),
        "b2_2": _init_basic_conv(ks[5], 3, 3, 96, 96),
        "b3":   _init_basic_conv(ks[6], 1, 1, 192, 64),
    }


def pack_mixed_5b_params(params):
    """Fold BN scale into the weights (f32), pack to MXU-friendly bf16."""
    def fold_w(p):                    # (KH,KW,Cin,Cout) -> (KH*KW*Cin, Cout), scaled
        w, scale, _ = p
        return (w * scale).reshape(-1, w.shape[3])

    def bias_row(*ps):                # (1, sum Cout)
        return jnp.concatenate([p[2] for p in ps])[None, :]

    b0, b1_0, b1_1 = params["b0"], params["b1_0"], params["b1_1"]
    b2_0, b2_1, b2_2, b3 = params["b2_0"], params["b2_1"], params["b2_2"], params["b3"]

    w_merged = jnp.concatenate(
        [fold_w(b0), fold_w(b1_0), fold_w(b2_0), fold_w(b3)], axis=1)   # (192, 272)

    return {
        "w_1x1": w_merged.astype(jnp.bfloat16),
        "bias_1x1": bias_row(b0, b1_0, b2_0),             # (1, 208) f32
        "bias_b3": bias_row(b3),                          # (1, 64)  f32
        "w_b1_1": fold_w(b1_1).astype(jnp.bfloat16),      # (1200, 64)
        "bias_b1_1": bias_row(b1_1),
        "w_b2_1": fold_w(b2_1).astype(jnp.bfloat16),      # (576, 96)
        "bias_b2_1": bias_row(b2_1),
        "w_b2_2": fold_w(b2_2).astype(jnp.bfloat16),      # (864, 96)
        "bias_b2_2": bias_row(b2_2),
    }


@jax.jit
def mixed_5b_forward(x_nchw, packed):
    x = jnp.transpose(x_nchw, (0, 2, 3, 1))       # NCHW -> NHWC (lane = channel)
    out = mixed_5b_pallas(x, packed)
    return jnp.transpose(out, (0, 3, 1, 2))       # NHWC -> NCHW


# ---------------------------------------------------------------------------
# pure-XLA f32 reference (for a loose numerical sanity check)
# ---------------------------------------------------------------------------
def _ref_basic_conv(x, w, scale, bias, padding):
    y = jax.lax.conv_general_dilated(
        x, w, window_strides=(1, 1),
        padding=((padding, padding), (padding, padding)),
        dimension_numbers=("NHWC", "HWIO", "NHWC"))
    return jnp.maximum(y * scale + bias, 0.0)


def mixed_5b_reference(x_nchw, params):
    x = jnp.transpose(x_nchw, (0, 2, 3, 1))
    x0 = _ref_basic_conv(x, *params["b0"], 0)
    t1 = _ref_basic_conv(x, *params["b1_0"], 0)
    x1 = _ref_basic_conv(t1, *params["b1_1"], 2)
    t2 = _ref_basic_conv(x, *params["b2_0"], 0)
    t2 = _ref_basic_conv(t2, *params["b2_1"], 1)
    x2 = _ref_basic_conv(t2, *params["b2_2"], 1)
    pad = ((0, 0), (1, 1), (1, 1), (0, 0))
    s = jax.lax.reduce_window(x, 0.0, jax.lax.add, (1, 3, 3, 1), (1, 1, 1, 1), pad)
    cnt = jax.lax.reduce_window(jnp.ones_like(x[..., :1]), 0.0, jax.lax.add,
                                (1, 3, 3, 1), (1, 1, 1, 1), pad)
    x3 = _ref_basic_conv(s / cnt, *params["b3"], 0)
    out = jnp.concatenate([x0, x1, x2, x3], axis=-1)
    return jnp.transpose(out, (0, 3, 1, 2))


# ---------------------------------------------------------------------------
# main
# ---------------------------------------------------------------------------
if __name__ == "__main__":
    key = jax.random.PRNGKey(0)
    k_x, k_p = jax.random.split(key)

    # Mixed_5b requires 192 input channels; keep batch/spatial small.
    N, C, H, W = 2, 192, 8, 8
    x = jax.random.normal(k_x, (N, C, H, W), jnp.float32)   # PyTorch-style NCHW
    params = init_mixed_5b_params(k_p)
    packed = pack_mixed_5b_params(params)

    out = mixed_5b_forward(x, packed)
    out = jax.block_until_ready(out)

    assert out.shape == (N, C_OUT, H, W), out.shape
    assert jnp.all(jnp.isfinite(out)), "non-finite values in output"

    # loose tolerance: kernel uses bf16 MXU inputs with f32 accumulation.
    ref = jax.block_until_ready(jax.jit(mixed_5b_reference)(x, params))
    err = jnp.abs(out - ref)
    assert float(jnp.mean(err)) < 0.05, f"mean abs err {float(jnp.mean(err))}"
    assert float(jnp.max(err)) < 1.0, f"max abs err {float(jnp.max(err))}"

    print("KERNEL_OK")
</pallas_src>

<mosaic_0001>
module attributes {stable_mosaic.version = 11 : i64} {
  func.func @_mixed_5b_kernel(%arg0: i32, %arg1: memref<1x8x8x192xf32, #tpu.memory_space<vmem>>, %arg2: memref<192x272xbf16, #tpu.memory_space<vmem>>, %arg3: memref<1x208xf32, #tpu.memory_space<vmem>>, %arg4: memref<1x64xf32, #tpu.memory_space<vmem>>, %arg5: memref<1200x64xbf16, #tpu.memory_space<vmem>>, %arg6: memref<1x64xf32, #tpu.memory_space<vmem>>, %arg7: memref<576x96xbf16, #tpu.memory_space<vmem>>, %arg8: memref<1x96xf32, #tpu.memory_space<vmem>>, %arg9: memref<864x96xbf16, #tpu.memory_space<vmem>>, %arg10: memref<1x96xf32, #tpu.memory_space<vmem>>, %arg11: memref<64x1xf32, #tpu.memory_space<vmem>>, %arg12: memref<1x8x8x320xf32, #tpu.memory_space<vmem>>) attributes {dimension_semantics = [#tpu.dimension_semantics<parallel>], iteration_bounds = array<i64: 2>, scalar_prefetch = 0 : i64, scratch_operands = 0 : i64, tpu.core_type = #tpu.core_type<tc>, window_params = [{transform_indices = @transform_0, window_bounds = array<i64: 1, 8, 8, 192>}, {pipeline_mode = #tpu.pipeline_mode<synchronous>, transform_indices = @transform_1, window_bounds = array<i64: 192, 272>}, {pipeline_mode = #tpu.pipeline_mode<synchronous>, transform_indices = @transform_2, window_bounds = array<i64: 1, 208>}, {pipeline_mode = #tpu.pipeline_mode<synchronous>, transform_indices = @transform_3, window_bounds = array<i64: 1, 64>}, {pipeline_mode = #tpu.pipeline_mode<synchronous>, transform_indices = @transform_4, window_bounds = array<i64: 1200, 64>}, {pipeline_mode = #tpu.pipeline_mode<synchronous>, transform_indices = @transform_5, window_bounds = array<i64: 1, 64>}, {pipeline_mode = #tpu.pipeline_mode<synchronous>, transform_indices = @transform_6, window_bounds = array<i64: 576, 96>}, {pipeline_mode = #tpu.pipeline_mode<synchronous>, transform_indices = @transform_7, window_bounds = array<i64: 1, 96>}, {pipeline_mode = #tpu.pipeline_mode<synchronous>, transform_indices = @transform_8, window_bounds = array<i64: 864, 96>}, {pipeline_mode = #tpu.pipeline_mode<synchronous>, transform_indices = @transform_9, window_bounds = array<i64: 1, 96>}, {pipeline_mode = #tpu.pipeline_mode<synchronous>, transform_indices = @transform_10, window_bounds = array<i64: 64, 1>}, {transform_indices = @transform_11, window_bounds = array<i64: 1, 8, 8, 320>}]} {
    %c0 = arith.constant 0 : index
    %c0_0 = arith.constant 0 : index
    %c0_1 = arith.constant 0 : index
    %c0_2 = arith.constant 0 : index
    %0 = vector.load %arg1[%c0, %c0_0, %c0_1, %c0_2] : memref<1x8x8x192xf32, #tpu.memory_space<vmem>>, vector<1x8x8x192xf32>
    %1 = vector.shape_cast %0 : vector<1x8x8x192xf32> to vector<8x8x192xf32>
    %2 = vector.shape_cast %1 : vector<8x8x192xf32> to vector<64x192xf32>
    %3 = arith.truncf %2 : vector<64x192xf32> to vector<64x192xbf16>
    %c0_3 = arith.constant 0 : index
    %c0_4 = arith.constant 0 : index
    %4 = vector.load %arg2[%c0_3, %c0_4] : memref<192x272xbf16, #tpu.memory_space<vmem>>, vector<192x272xbf16>
    %cst = arith.constant dense<0.000000e+00> : vector<64x272xf32>
    %5 = tpu.matmul %3, %4, %cst {dimension_numbers = #tpu.dot_dimension_numbers<[1], [0], [0], [1], [0, 0, 1, 1], [], []>} : vector<64x192xbf16>, vector<192x272xbf16>, vector<64x272xf32> -> vector<64x272xf32>
    %6 = vector.extract_strided_slice %5 {offsets = [0, 0], sizes = [64, 208], strides = [1, 1]} : vector<64x272xf32> to vector<64x208xf32>
    %c0_5 = arith.constant 0 : index
    %c0_6 = arith.constant 0 : index
    %7 = vector.load %arg3[%c0_5, %c0_6] : memref<1x208xf32, #tpu.memory_space<vmem>>, vector<1x208xf32>
    %8 = vector.broadcast %7 : vector<1x208xf32> to vector<64x208xf32>
    %9 = arith.addf %6, %8 : vector<64x208xf32>
    %cst_7 = arith.constant 0.000000e+00 : f32
    %10 = vector.broadcast %cst_7 : f32 to vector<64x208xf32>
    %11 = arith.maximumf %9, %10 : vector<64x208xf32>
    %12 = vector.extract_strided_slice %11 {offsets = [0, 0], sizes = [64, 96], strides = [1, 1]} : vector<64x208xf32> to vector<64x96xf32>
    %13 = vector.extract_strided_slice %11 {offsets = [0, 96], sizes = [64, 48], strides = [1, 1]} : vector<64x208xf32> to vector<64x48xf32>
    %14 = vector.extract_strided_slice %11 {offsets = [0, 144], sizes = [64, 64], strides = [1, 1]} : vector<64x208xf32> to vector<64x64xf32>
    %15 = arith.truncf %13 : vector<64x48xf32> to vector<64x48xbf16>
    %16 = vector.shape_cast %15 : vector<64x48xbf16> to vector<8x8x48xbf16>
    %cst_8 = arith.constant 0.000000e+00 : bf16
    %17 = vector.broadcast %cst_8 : bf16 to vector<2x8x48xbf16>
    %18 = tpu.concatenate %17, %16, %17 in 0 : vector<2x8x48xbf16>, vector<8x8x48xbf16>, vector<2x8x48xbf16> -> vector<12x8x48xbf16>
    %cst_9 = arith.constant 0.000000e+00 : bf16
    %19 = vector.broadcast %cst_9 : bf16 to vector<12x2x48xbf16>
    %20 = tpu.concatenate %19, %18, %19 in 1 : vector<12x2x48xbf16>, vector<12x8x48xbf16>, vector<12x2x48xbf16> -> vector<12x12x48xbf16>
    %21 = vector.extract_strided_slice %20 {offsets = [0, 0, 0], sizes = [8, 8, 48], strides = [1, 1, 1]} : vector<12x12x48xbf16> to vector<8x8x48xbf16>
    %22 = vector.shape_cast %21 : vector<8x8x48xbf16> to vector<64x48xbf16>
    %23 = vector.extract_strided_slice %20 {offsets = [0, 1, 0], sizes = [8, 8, 48], strides = [1, 1, 1]} : vector<12x12x48xbf16> to vector<8x8x48xbf16>
    %24 = vector.shape_cast %23 : vector<8x8x48xbf16> to vector<64x48xbf16>
    %25 = vector.extract_strided_slice %20 {offsets = [0, 2, 0], sizes = [8, 8, 48], strides = [1, 1, 1]} : vector<12x12x48xbf16> to vector<8x8x48xbf16>
    %26 = vector.shape_cast %25 : vector<8x8x48xbf16> to vector<64x48xbf16>
    %27 = vector.extract_strided_slice %20 {offsets = [0, 3, 0], sizes = [8, 8, 48], strides = [1, 1, 1]} : vector<12x12x48xbf16> to vector<8x8x48xbf16>
    %28 = vector.shape_cast %27 : vector<8x8x48xbf16> to vector<64x48xbf16>
    %29 = vector.extract_strided_slice %20 {offsets = [0, 4, 0], sizes = [8, 8, 48], strides = [1, 1, 1]} : vector<12x12x48xbf16> to vector<8x8x48xbf16>
    %30 = vector.shape_cast %29 : vector<8x8x48xbf16> to vector<64x48xbf16>
    %31 = vector.extract_strided_slice %20 {offsets = [1, 0, 0], sizes = [8, 8, 48], strides = [1, 1, 1]} : vector<12x12x48xbf16> to vector<8x8x48xbf16>
    %32 = vector.shape_cast %31 : vector<8x8x48xbf16> to vector<64x48xbf16>
    %33 = vector.extract_strided_slice %20 {offsets = [1, 1, 0], sizes = [8, 8, 48], strides = [1, 1, 1]} : vector<12x12x48xbf16> to vector<8x8x48xbf16>
    %34 = vector.shape_cast %33 : vector<8x8x48xbf16> to vector<64x48xbf16>
    %35 = vector.extract_strided_slice %20 {offsets = [1, 2, 0], sizes = [8, 8, 48], strides = [1, 1, 1]} : vector<12x12x48xbf16> to vector<8x8x48xbf16>
    %36 = vector.shape_cast %35 : vector<8x8x48xbf16> to vector<64x48xbf16>
    %37 = vector.extract_strided_slice %20 {offsets = [1, 3, 0], sizes = [8, 8, 48], strides = [1, 1, 1]} : vector<12x12x48xbf16> to vector<8x8x48xbf16>
    %38 = vector.shape_cast %37 : vector<8x8x48xbf16> to vector<64x48xbf16>
    %39 = vector.extract_strided_slice %20 {offsets = [1, 4, 0], sizes = [8, 8, 48], strides = [1, 1, 1]} : vector<12x12x48xbf16> to vector<8x8x48xbf16>
    %40 = vector.shape_cast %39 : vector<8x8x48xbf16> to vector<64x48xbf16>
    %41 = vector.extract_strided_slice %20 {offsets = [2, 0, 0], sizes = [8, 8, 48], strides = [1, 1, 1]} : vector<12x12x48xbf16> to vector<8x8x48xbf16>
    %42 = vector.shape_cast %41 : vector<8x8x48xbf16> to vector<64x48xbf16>
    %43 = vector.extract_strided_slice %20 {offsets = [2, 1, 0], sizes = [8, 8, 48], strides = [1, 1, 1]} : vector<12x12x48xbf16> to vector<8x8x48xbf16>
    %44 = vector.shape_cast %43 : vector<8x8x48xbf16> to vector<64x48xbf16>
    %45 = vector.extract_strided_slice %20 {offsets = [2, 2, 0], sizes = [8, 8, 48], strides = [1, 1, 1]} : vector<12x12x48xbf16> to vector<8x8x48xbf16>
    %46 = vector.shape_cast %45 : vector<8x8x48xbf16> to vector<64x48xbf16>
    %47 = vector.extract_strided_slice %20 {offsets = [2, 3, 0], sizes = [8, 8, 48], strides = [1, 1, 1]} : vector<12x12x48xbf16> to vector<8x8x48xbf16>
    %48 = vector.shape_cast %47 : vector<8x8x48xbf16> to vector<64x48xbf16>
    %49 = vector.extract_strided_slice %20 {offsets = [2, 4, 0], sizes = [8, 8, 48], strides = [1, 1, 1]} : vector<12x12x48xbf16> to vector<8x8x48xbf16>
    %50 = vector.shape_cast %49 : vector<8x8x48xbf16> to vector<64x48xbf16>
    %51 = vector.extract_strided_slice %20 {offsets = [3, 0, 0], sizes = [8, 8, 48], strides = [1, 1, 1]} : vector<12x12x48xbf16> to vector<8x8x48xbf16>
    %52 = vector.shape_cast %51 : vector<8x8x48xbf16> to vector<64x48xbf16>
    %53 = vector.extract_strided_slice %20 {offsets = [3, 1, 0], sizes = [8, 8, 48], strides = [1, 1, 1]} : vector<12x12x48xbf16> to vector<8x8x48xbf16>
    %54 = vector.shape_cast %53 : vector<8x8x48xbf16> to vector<64x48xbf16>
    %55 = vector.extract_strided_slice %20 {offsets = [3, 2, 0], sizes = [8, 8, 48], strides = [1, 1, 1]} : vector<12x12x48xbf16> to vector<8x8x48xbf16>
    %56 = vector.shape_cast %55 : vector<8x8x48xbf16> to vector<64x48xbf16>
    %57 = vector.extract_strided_slice %20 {offsets = [3, 3, 0], sizes = [8, 8, 48], strides = [1, 1, 1]} : vector<12x12x48xbf16> to vector<8x8x48xbf16>
    %58 = vector.shape_cast %57 : vector<8x8x48xbf16> to vector<64x48xbf16>
    %59 = vector.extract_strided_slice %20 {offsets = [3, 4, 0], sizes = [8, 8, 48], strides = [1, 1, 1]} : vector<12x12x48xbf16> to vector<8x8x48xbf16>
    %60 = vector.shape_cast %59 : vector<8x8x48xbf16> to vector<64x48xbf16>
    %61 = vector.extract_strided_slice %20 {offsets = [4, 0, 0], sizes = [8, 8, 48], strides = [1, 1, 1]} : vector<12x12x48xbf16> to vector<8x8x48xbf16>
    %62 = vector.shape_cast %61 : vector<8x8x48xbf16> to vector<64x48xbf16>
    %63 = vector.extract_strided_slice %20 {offsets = [4, 1, 0], sizes = [8, 8, 48], strides = [1, 1, 1]} : vector<12x12x48xbf16> to vector<8x8x48xbf16>
    %64 = vector.shape_cast %63 : vector<8x8x48xbf16> to vector<64x48xbf16>
    %65 = vector.extract_strided_slice %20 {offsets = [4, 2, 0], sizes = [8, 8, 48], strides = [1, 1, 1]} : vector<12x12x48xbf16> to vector<8x8x48xbf16>
    %66 = vector.shape_cast %65 : vector<8x8x48xbf16> to vector<64x48xbf16>
    %67 = vector.extract_strided_slice %20 {offsets = [4, 3, 0], sizes = [8, 8, 48], strides = [1, 1, 1]} : vector<12x12x48xbf16> to vector<8x8x48xbf16>
    %68 = vector.shape_cast %67 : vector<8x8x48xbf16> to vector<64x48xbf16>
    %69 = vector.extract_strided_slice %20 {offsets = [4, 4, 0], sizes = [8, 8, 48], strides = [1, 1, 1]} : vector<12x12x48xbf16> to vector<8x8x48xbf16>
    %70 = vector.shape_cast %69 : vector<8x8x48xbf16> to vector<64x48xbf16>
    %71 = tpu.concatenate %22, %24, %26, %28, %30, %32, %34, %36, %38, %40, %42, %44, %46, %48, %50, %52 in 1 : vector<64x48xbf16>, vector<64x48xbf16>, vector<64x48xbf16>, vector<64x48xbf16>, vector<64x48xbf16>, vector<64x48xbf16>, vector<64x48xbf16>, vector<64x48xbf16>, vector<64x48xbf16>, vector<64x48xbf16>, vector<64x48xbf16>, vector<64x48xbf16>, vector<64x48xbf16>, vector<64x48xbf16>, vector<64x48xbf16>, vector<64x48xbf16> -> vector<64x768xbf16>
    %72 = tpu.concatenate %54, %56, %58, %60, %62, %64, %66, %68, %70 in 1 : vector<64x48xbf16>, vector<64x48xbf16>, vector<64x48xbf16>, vector<64x48xbf16>, vector<64x48xbf16>, vector<64x48xbf16>, vector<64x48xbf16>, vector<64x48xbf16>, vector<64x48xbf16> -> vector<64x432xbf16>
    %73 = tpu.concatenate %71, %72 in 1 : vector<64x768xbf16>, vector<64x432xbf16> -> vector<64x1200xbf16>
    %c0_10 = arith.constant 0 : index
    %c0_11 = arith.constant 0 : index
    %74 = vector.load %arg5[%c0_10, %c0_11] : memref<1200x64xbf16, #tpu.memory_space<vmem>>, vector<1200x64xbf16>
    %cst_12 = arith.constant dense<0.000000e+00> : vector<64x64xf32>
    %75 = tpu.matmul %73, %74, %cst_12 {dimension_numbers = #tpu.dot_dimension_numbers<[1], [0], [0], [1], [0, 0, 1, 1], [], []>} : vector<64x1200xbf16>, vector<1200x64xbf16>, vector<64x64xf32> -> vector<64x64xf32>
    %c0_13 = arith.constant 0 : index
    %c0_14 = arith.constant 0 : index
    %76 = vector.load %arg6[%c0_13, %c0_14] : memref<1x64xf32, #tpu.memory_space<vmem>>, vector<1x64xf32>
    %77 = vector.broadcast %76 : vector<1x64xf32> to vector<64x64xf32>
    %78 = arith.addf %75, %77 : vector<64x64xf32>
    %cst_15 = arith.constant 0.000000e+00 : f32
    %79 = vector.broadcast %cst_15 : f32 to vector<64x64xf32>
    %80 = arith.maximumf %78, %79 : vector<64x64xf32>
    %81 = arith.truncf %14 : vector<64x64xf32> to vector<64x64xbf16>
    %82 = vector.shape_cast %81 : vector<64x64xbf16> to vector<8x8x64xbf16>
    %cst_16 = arith.constant 0.000000e+00 : bf16
    %83 = vector.broadcast %cst_16 : bf16 to vector<1x8x64xbf16>
    %84 = tpu.concatenate %83, %82, %83 in 0 : vector<1x8x64xbf16>, vector<8x8x64xbf16>, vector<1x8x64xbf16> -> vector<10x8x64xbf16>
    %cst_17 = arith.constant 0.000000e+00 : bf16
    %85 = vector.broadcast %cst_17 : bf16 to vector<10x1x64xbf16>
    %86 = tpu.concatenate %85, %84, %85 in 1 : vector<10x1x64xbf16>, vector<10x8x64xbf16>, vector<10x1x64xbf16> -> vector<10x10x64xbf16>
    %87 = vector.extract_strided_slice %86 {offsets = [0, 0, 0], sizes = [8, 8, 64], strides = [1, 1, 1]} : vector<10x10x64xbf16> to vector<8x8x64xbf16>
    %88 = vector.shape_cast %87 : vector<8x8x64xbf16> to vector<64x64xbf16>
    %89 = vector.extract_strided_slice %86 {offsets = [0, 1, 0], sizes = [8, 8, 64], strides = [1, 1, 1]} : vector<10x10x64xbf16> to vector<8x8x64xbf16>
    %90 = vector.shape_cast %89 : vector<8x8x64xbf16> to vector<64x64xbf16>
    %91 = vector.extract_strided_slice %86 {offsets = [0, 2, 0], sizes = [8, 8, 64], strides = [1, 1, 1]} : vector<10x10x64xbf16> to vector<8x8x64xbf16>
    %92 = vector.shape_cast %91 : vector<8x8x64xbf16> to vector<64x64xbf16>
    %93 = vector.extract_strided_slice %86 {offsets = [1, 0, 0], sizes = [8, 8, 64], strides = [1, 1, 1]} : vector<10x10x64xbf16> to vector<8x8x64xbf16>
    %94 = vector.shape_cast %93 : vector<8x8x64xbf16> to vector<64x64xbf16>
    %95 = vector.extract_strided_slice %86 {offsets = [1, 1, 0], sizes = [8, 8, 64], strides = [1, 1, 1]} : vector<10x10x64xbf16> to vector<8x8x64xbf16>
    %96 = vector.shape_cast %95 : vector<8x8x64xbf16> to vector<64x64xbf16>
    %97 = vector.extract_strided_slice %86 {offsets = [1, 2, 0], sizes = [8, 8, 64], strides = [1, 1, 1]} : vector<10x10x64xbf16> to vector<8x8x64xbf16>
    %98 = vector.shape_cast %97 : vector<8x8x64xbf16> to vector<64x64xbf16>
    %99 = vector.extract_strided_slice %86 {offsets = [2, 0, 0], sizes = [8, 8, 64], strides = [1, 1, 1]} : vector<10x10x64xbf16> to vector<8x8x64xbf16>
    %100 = vector.shape_cast %99 : vector<8x8x64xbf16> to vector<64x64xbf16>
    %101 = vector.extract_strided_slice %86 {offsets = [2, 1, 0], sizes = [8, 8, 64], strides = [1, 1, 1]} : vector<10x10x64xbf16> to vector<8x8x64xbf16>
    %102 = vector.shape_cast %101 : vector<8x8x64xbf16> to vector<64x64xbf16>
    %103 = vector.extract_strided_slice %86 {offsets = [2, 2, 0], sizes = [8, 8, 64], strides = [1, 1, 1]} : vector<10x10x64xbf16> to vector<8x8x64xbf16>
    %104 = vector.shape_cast %103 : vector<8x8x64xbf16> to vector<64x64xbf16>
    %105 = tpu.concatenate %88, %90, %92, %94, %96, %98, %100, %102, %104 in 1 : vector<64x64xbf16>, vector<64x64xbf16>, vector<64x64xbf16>, vector<64x64xbf16>, vector<64x64xbf16>, vector<64x64xbf16>, vector<64x64xbf16>, vector<64x64xbf16>, vector<64x64xbf16> -> vector<64x576xbf16>
    %c0_18 = arith.constant 0 : index
    %c0_19 = arith.constant 0 : index
    %106 = vector.load %arg7[%c0_18, %c0_19] : memref<576x96xbf16, #tpu.memory_space<vmem>>, vector<576x96xbf16>
    %cst_20 = arith.constant dense<0.000000e+00> : vector<64x96xf32>
    %107 = tpu.matmul %105, %106, %cst_20 {dimension_numbers = #tpu.dot_dimension_numbers<[1], [0], [0], [1], [0, 0, 1, 1], [], []>} : vector<64x576xbf16>, vector<576x96xbf16>, vector<64x96xf32> -> vector<64x96xf32>
    %c0_21 = arith.constant 0 : index
    %c0_22 = arith.constant 0 : index
    %108 = vector.load %arg8[%c0_21, %c0_22] : memref<1x96xf32, #tpu.memory_space<vmem>>, vector<1x96xf32>
    %109 = vector.broadcast %108 : vector<1x96xf32> to vector<64x96xf32>
    %110 = arith.addf %107, %109 : vector<64x96xf32>
    %cst_23 = arith.constant 0.000000e+00 : f32
    %111 = vector.broadcast %cst_23 : f32 to vector<64x96xf32>
    %112 = arith.maximumf %110, %111 : vector<64x96xf32>
    %113 = arith.truncf %112 : vector<64x96xf32> to vector<64x96xbf16>
    %114 = vector.shape_cast %113 : vector<64x96xbf16> to vector<8x8x96xbf16>
    %cst_24 = arith.constant 0.000000e+00 : bf16
    %115 = vector.broadcast %cst_24 : bf16 to vector<1x8x96xbf16>
    %116 = tpu.concatenate %115, %114, %115 in 0 : vector<1x8x96xbf16>, vector<8x8x96xbf16>, vector<1x8x96xbf16> -> vector<10x8x96xbf16>
    %cst_25 = arith.constant 0.000000e+00 : bf16
    %117 = vector.broadcast %cst_25 : bf16 to vector<10x1x96xbf16>
    %118 = tpu.concatenate %117, %116, %117 in 1 : vector<10x1x96xbf16>, vector<10x8x96xbf16>, vector<10x1x96xbf16> -> vector<10x10x96xbf16>
    %119 = vector.extract_strided_slice %118 {offsets = [0, 0, 0], sizes = [8, 8, 96], strides = [1, 1, 1]} : vector<10x10x96xbf16> to vector<8x8x96xbf16>
    %120 = vector.shape_cast %119 : vector<8x8x96xbf16> to vector<64x96xbf16>
    %121 = vector.extract_strided_slice %118 {offsets = [0, 1, 0], sizes = [8, 8, 96], strides = [1, 1, 1]} : vector<10x10x96xbf16> to vector<8x8x96xbf16>
    %122 = vector.shape_cast %121 : vector<8x8x96xbf16> to vector<64x96xbf16>
    %123 = vector.extract_strided_slice %118 {offsets = [0, 2, 0], sizes = [8, 8, 96], strides = [1, 1, 1]} : vector<10x10x96xbf16> to vector<8x8x96xbf16>
    %124 = vector.shape_cast %123 : vector<8x8x96xbf16> to vector<64x96xbf16>
    %125 = vector.extract_strided_slice %118 {offsets = [1, 0, 0], sizes = [8, 8, 96], strides = [1, 1, 1]} : vector<10x10x96xbf16> to vector<8x8x96xbf16>
    %126 = vector.shape_cast %125 : vector<8x8x96xbf16> to vector<64x96xbf16>
    %127 = vector.extract_strided_slice %118 {offsets = [1, 1, 0], sizes = [8, 8, 96], strides = [1, 1, 1]} : vector<10x10x96xbf16> to vector<8x8x96xbf16>
    %128 = vector.shape_cast %127 : vector<8x8x96xbf16> to vector<64x96xbf16>
    %129 = vector.extract_strided_slice %118 {offsets = [1, 2, 0], sizes = [8, 8, 96], strides = [1, 1, 1]} : vector<10x10x96xbf16> to vector<8x8x96xbf16>
    %130 = vector.shape_cast %129 : vector<8x8x96xbf16> to vector<64x96xbf16>
    %131 = vector.extract_strided_slice %118 {offsets = [2, 0, 0], sizes = [8, 8, 96], strides = [1, 1, 1]} : vector<10x10x96xbf16> to vector<8x8x96xbf16>
    %132 = vector.shape_cast %131 : vector<8x8x96xbf16> to vector<64x96xbf16>
    %133 = vector.extract_strided_slice %118 {offsets = [2, 1, 0], sizes = [8, 8, 96], strides = [1, 1, 1]} : vector<10x10x96xbf16> to vector<8x8x96xbf16>
    %134 = vector.shape_cast %133 : vector<8x8x96xbf16> to vector<64x96xbf16>
    %135 = vector.extract_strided_slice %118 {offsets = [2, 2, 0], sizes = [8, 8, 96], strides = [1, 1, 1]} : vector<10x10x96xbf16> to vector<8x8x96xbf16>
    %136 = vector.shape_cast %135 : vector<8x8x96xbf16> to vector<64x96xbf16>
    %137 = tpu.concatenate %120, %122, %124, %126, %128, %130, %132, %134, %136 in 1 : vector<64x96xbf16>, vector<64x96xbf16>, vector<64x96xbf16>, vector<64x96xbf16>, vector<64x96xbf16>, vector<64x96xbf16>, vector<64x96xbf16>, vector<64x96xbf16>, vector<64x96xbf16> -> vector<64x864xbf16>
    %c0_26 = arith.constant 0 : index
    %c0_27 = arith.constant 0 : index
    %138 = vector.load %arg9[%c0_26, %c0_27] : memref<864x96xbf16, #tpu.memory_space<vmem>>, vector<864x96xbf16>
    %cst_28 = arith.constant dense<0.000000e+00> : vector<64x96xf32>
    %139 = tpu.matmul %137, %138, %cst_28 {dimension_numbers = #tpu.dot_dimension_numbers<[1], [0], [0], [1], [0, 0, 1, 1], [], []>} : vector<64x864xbf16>, vector<864x96xbf16>, vector<64x96xf32> -> vector<64x96xf32>
    %c0_29 = arith.constant 0 : index
    %c0_30 = arith.constant 0 : index
    %140 = vector.load %arg10[%c0_29, %c0_30] : memref<1x96xf32, #tpu.memory_space<vmem>>, vector<1x96xf32>
    %141 = vector.broadcast %140 : vector<1x96xf32> to vector<64x96xf32>
    %142 = arith.addf %139, %141 : vector<64x96xf32>
    %cst_31 = arith.constant 0.000000e+00 : f32
    %143 = vector.broadcast %cst_31 : f32 to vector<64x96xf32>
    %144 = arith.maximumf %142, %143 : vector<64x96xf32>
    %145 = vector.extract_strided_slice %5 {offsets = [0, 208], sizes = [64, 64], strides = [1, 1]} : vector<64x272xf32> to vector<64x64xf32>
    %146 = vector.shape_cast %145 : vector<64x64xf32> to vector<8x8x64xf32>
    %cst_32 = arith.constant 0.000000e+00 : f32
    %147 = vector.broadcast %cst_32 : f32 to vector<1x8x64xf32>
    %148 = tpu.concatenate %147, %146, %147 in 0 : vector<1x8x64xf32>, vector<8x8x64xf32>, vector<1x8x64xf32> -> vector<10x8x64xf32>
    %cst_33 = arith.constant 0.000000e+00 : f32
    %149 = vector.broadcast %cst_33 : f32 to vector<10x1x64xf32>
    %150 = tpu.concatenate %149, %148, %149 in 1 : vector<10x1x64xf32>, vector<10x8x64xf32>, vector<10x1x64xf32> -> vector<10x10x64xf32>
    %151 = vector.extract_strided_slice %150 {offsets = [0, 0, 0], sizes = [8, 8, 64], strides = [1, 1, 1]} : vector<10x10x64xf32> to vector<8x8x64xf32>
    %152 = vector.extract_strided_slice %150 {offsets = [0, 1, 0], sizes = [8, 8, 64], strides = [1, 1, 1]} : vector<10x10x64xf32> to vector<8x8x64xf32>
    %153 = arith.addf %151, %152 : vector<8x8x64xf32>
    %154 = vector.extract_strided_slice %150 {offsets = [0, 2, 0], sizes = [8, 8, 64], strides = [1, 1, 1]} : vector<10x10x64xf32> to vector<8x8x64xf32>
    %155 = arith.addf %153, %154 : vector<8x8x64xf32>
    %156 = vector.extract_strided_slice %150 {offsets = [1, 0, 0], sizes = [8, 8, 64], strides = [1, 1, 1]} : vector<10x10x64xf32> to vector<8x8x64xf32>
    %157 = arith.addf %155, %156 : vector<8x8x64xf32>
    %158 = vector.extract_strided_slice %150 {offsets = [1, 1, 0], sizes = [8, 8, 64], strides = [1, 1, 1]} : vector<10x10x64xf32> to vector<8x8x64xf32>
    %159 = arith.addf %157, %158 : vector<8x8x64xf32>
    %160 = vector.extract_strided_slice %150 {offsets = [1, 2, 0], sizes = [8, 8, 64], strides = [1, 1, 1]} : vector<10x10x64xf32> to vector<8x8x64xf32>
    %161 = arith.addf %159, %160 : vector<8x8x64xf32>
    %162 = vector.extract_strided_slice %150 {offsets = [2, 0, 0], sizes = [8, 8, 64], strides = [1, 1, 1]} : vector<10x10x64xf32> to vector<8x8x64xf32>
    %163 = arith.addf %161, %162 : vector<8x8x64xf32>
    %164 = vector.extract_strided_slice %150 {offsets = [2, 1, 0], sizes = [8, 8, 64], strides = [1, 1, 1]} : vector<10x10x64xf32> to vector<8x8x64xf32>
    %165 = arith.addf %163, %164 : vector<8x8x64xf32>
    %166 = vector.extract_strided_slice %150 {offsets = [2, 2, 0], sizes = [8, 8, 64], strides = [1, 1, 1]} : vector<10x10x64xf32> to vector<8x8x64xf32>
    %167 = arith.addf %165, %166 : vector<8x8x64xf32>
    %168 = vector.shape_cast %167 : vector<8x8x64xf32> to vector<64x64xf32>
    %c0_34 = arith.constant 0 : index
    %c0_35 = arith.constant 0 : index
    %169 = vector.load %arg11[%c0_34, %c0_35] : memref<64x1xf32, #tpu.memory_space<vmem>>, vector<64x1xf32>
    %170 = vector.broadcast %169 : vector<64x1xf32> to vector<64x64xf32>
    %171 = arith.mulf %168, %170 : vector<64x64xf32>
    %c0_36 = arith.constant 0 : index
    %c0_37 = arith.constant 0 : index
    %172 = vector.load %arg4[%c0_36, %c0_37] : memref<1x64xf32, #tpu.memory_space<vmem>>, vector<1x64xf32>
    %173 = vector.broadcast %172 : vector<1x64xf32> to vector<64x64xf32>
    %174 = arith.addf %171, %173 : vector<64x64xf32>
    %cst_38 = arith.constant 0.000000e+00 : f32
    %175 = vector.broadcast %cst_38 : f32 to vector<64x64xf32>
    %176 = arith.maximumf %174, %175 : vector<64x64xf32>
    %177 = tpu.concatenate %12, %80, %144, %176 in 1 : vector<64x96xf32>, vector<64x64xf32>, vector<64x96xf32>, vector<64x64xf32> -> vector<64x320xf32>
    %178 = vector.shape_cast %177 : vector<64x320xf32> to vector<8x8x320xf32>
    %c0_39 = arith.constant 0 : index
    %c0_40 = arith.constant 0 : index
    %c0_41 = arith.constant 0 : index
    %c0_42 = arith.constant 0 : index
    %179 = vector.load %arg12[%c0_39, %c0_40, %c0_41, %c0_42] : memref<1x8x8x320xf32, #tpu.memory_space<vmem>>, vector<1x8x8x320xf32>
    %180 = vector.shape_cast %179 : vector<1x8x8x320xf32> to vector<8x8x320xf32>
    %181 = vector.shape_cast %178 : vector<8x8x320xf32> to vector<1x8x8x320xf32>
    tpu.vector_store %arg12[%c0_39, %c0_40, %c0_41, %c0_42], %181 {strides = array<i32>} : memref<1x8x8x320xf32, #tpu.memory_space<vmem>>, vector<1x8x8x320xf32>,
    return
  }
  func.func @transform_0(%arg0: i32) -> (i32, i32, i32, i32) {
    %c0_i32 = arith.constant 0 : i32
    %c0_i32_0 = arith.constant 0 : i32
    %c0_i32_1 = arith.constant 0 : i32
    %c0_i32_2 = arith.constant 0 : i32
    return %arg0, %c0_i32, %c0_i32_0, %c0_i32_1 : i32, i32, i32, i32
  }
  func.func @transform_1(%arg0: i32) -> (i32, i32) {
    %c0_i32 = arith.constant 0 : i32
    %c0_i32_0 = arith.constant 0 : i32
    %c0_i32_1 = arith.constant 0 : i32
    return %c0_i32, %c0_i32_0 : i32, i32
  }
  func.func @transform_2(%arg0: i32) -> (i32, i32) {
    %c0_i32 = arith.constant 0 : i32
    %c0_i32_0 = arith.constant 0 : i32
    %c0_i32_1 = arith.constant 0 : i32
    return %c0_i32, %c0_i32_0 : i32, i32
  }
  func.func @transform_3(%arg0: i32) -> (i32, i32) {
    %c0_i32 = arith.constant 0 : i32
    %c0_i32_0 = arith.constant 0 : i32
    %c0_i32_1 = arith.constant 0 : i32
    return %c0_i32, %c0_i32_0 : i32, i32
  }
  func.func @transform_4(%arg0: i32) -> (i32, i32) {
    %c0_i32 = arith.constant 0 : i32
    %c0_i32_0 = arith.constant 0 : i32
    %c0_i32_1 = arith.constant 0 : i32
    return %c0_i32, %c0_i32_0 : i32, i32
  }
  func.func @transform_5(%arg0: i32) -> (i32, i32) {
    %c0_i32 = arith.constant 0 : i32
    %c0_i32_0 = arith.constant 0 : i32
    %c0_i32_1 = arith.constant 0 : i32
    return %c0_i32, %c0_i32_0 : i32, i32
  }
  func.func @transform_6(%arg0: i32) -> (i32, i32) {
    %c0_i32 = arith.constant 0 : i32
    %c0_i32_0 = arith.constant 0 : i32
    %c0_i32_1 = arith.constant 0 : i32
    return %c0_i32, %c0_i32_0 : i32, i32
  }
  func.func @transform_7(%arg0: i32) -> (i32, i32) {
    %c0_i32 = arith.constant 0 : i32
    %c0_i32_0 = arith.constant 0 : i32
    %c0_i32_1 = arith.constant 0 : i32
    return %c0_i32, %c0_i32_0 : i32, i32
  }
  func.func @transform_8(%arg0: i32) -> (i32, i32) {
    %c0_i32 = arith.constant 0 : i32
    %c0_i32_0 = arith.constant 0 : i32
    %c0_i32_1 = arith.constant 0 : i32
    return %c0_i32, %c0_i32_0 : i32, i32
  }
  func.func @transform_9(%arg0: i32) -> (i32, i32) {
    %c0_i32 = arith.constant 0 : i32
    %c0_i32_0 = arith.constant 0 : i32
    %c0_i32_1 = arith.constant 0 : i32
    return %c0_i32, %c0_i32_0 : i32, i32
  }
  func.func @transform_10(%arg0: i32) -> (i32, i32) {
    %c0_i32 = arith.constant 0 : i32
    %c0_i32_0 = arith.constant 0 : i32
    %c0_i32_1 = arith.constant 0 : i32
    return %c0_i32, %c0_i32_0 : i32, i32
  }
  func.func @transform_11(%arg0: i32) -> (i32, i32, i32, i32) {
    %c0_i32 = arith.constant 0 : i32
    %c0_i32_0 = arith.constant 0 : i32
    %c0_i32_1 = arith.constant 0 : i32
    %c0_i32_2 = arith.constant 0 : i32
    return %arg0, %c0_i32, %c0_i32_0, %c0_i32_1 : i32, i32, i32, i32
  }
}

</mosaic_0001>

<llo_original>
// kernel: mixed_5b_forward.1
$region0: #{mixed_5b_forward.1}
  #allocation0 [shape = 'u32[]', space=smem, size = 0x4, offset = 0x4, fixed_abs, tag = 'smem constant byte address 0x4 - core index']
  #allocation1 [shape = 'u32[144,128]{1,0:T(1,128)}', space=vmem, size = 0x12000, scoped, tag = 'internal scratch']
  %s0 = inlined_call_operand.vmem [shape: f32[2,8,8,192], index: 0, kind: input, shape index: {}]
  %s1 = inlined_call_operand.vmem [shape: bf16[192,272], index: 1, kind: input, shape index: {}]
  %s2 = inlined_call_operand.vmem [shape: f32[1,208], index: 2, kind: input, shape index: {}]
  %s3 = inlined_call_operand.vmem [shape: f32[1,64], index: 3, kind: input, shape index: {}]
  %s4 = inlined_call_operand.vmem [shape: bf16[1200,64], index: 4, kind: input, shape index: {}]
  %s5 = inlined_call_operand.vmem [shape: f32[1,64], index: 5, kind: input, shape index: {}]
  %s6 = inlined_call_operand.vmem [shape: bf16[576,96], index: 6, kind: input, shape index: {}]
  %s7 = inlined_call_operand.vmem [shape: f32[1,96], index: 7, kind: input, shape index: {}]
  %s8 = inlined_call_operand.vmem [shape: bf16[864,96], index: 8, kind: input, shape index: {}]
  %s9 = inlined_call_operand.vmem [shape: f32[1,96], index: 9, kind: input, shape index: {}]
  %s10 = inlined_call_operand.vmem [shape: f32[64,1], index: 10, kind: input, shape index: {}]
  %s11 = inlined_call_operand.hbm [shape: f32[2,8,8,320], index: 11, kind: output, shape index: {}]
  %s12 = sld [smem:[#allocation0]]
  $region77: #{mixed_5b_forward.1} parent=0
    _
  %s14 = ssub.s32 1, %s12
  %s15 = scalar_select 0, %s14, %s12
  $region1: #{mixed_5b_forward.1} parent=0
    #allocation2 [shape = 'u8[196608]{0}', space=vmem, size = 0x30000, scoped, tag = 'output window, operand 0']
    #allocation3 [shape = 's32[2]{0}', space=sflag, size = 0x8, scoped, tag = 'scoped memory for mixed_5b_forward.1']
    %16 = vsyncpa [#allocation3], 0
    %s17 = scalar_lea.sflag [#allocation3], 1
    %18 = vsyncpa %s17, 0
    loop: start=0, step=1, limit=4
    $region2: #{mixed_5b_forward.1} parent=1 // loop_pre_header
      _
    $region3: #{mixed_5b_forward.1} parent=1 // loop_header
      %s20 = sphi 0, %s24
      %p21 = scmp.ge.s32.totalorder %s20, 4
      %s30 = sphi 0, %s32
      %s33 = sphi 0, %s30
      %s34 = sphi 0, %s33
      %s50 = sphi 0, %s34
      %s54 = sphi 0, %s54
      %s56 = sphi 0, %s54
      %s57 = sphi 0, %s56
      %s71 = sphi 0, %s57
      %s75 = sphi 0, %s75
      %s77 = sphi 0, %s75
      %s78 = sphi 0, %s77
      %s92 = sphi 0, %s78
      %s96 = sphi 0, %s96
      %s98 = sphi 0, %s96
      %s99 = sphi 0, %s98
      %s113 = sphi 0, %s99
      %s117 = sphi 0, %s117
      %s119 = sphi 0, %s117
      %s120 = sphi 0, %s119
      %s134 = sphi 0, %s120
      %s138 = sphi 0, %s138
      %s140 = sphi 0, %s138
      %s141 = sphi 0, %s140
      %s155 = sphi 0, %s141
      %s159 = sphi 0, %s159
      %s161 = sphi 0, %s159
      %s162 = sphi 0, %s161
      %s176 = sphi 0, %s162
      %s180 = sphi 0, %s180
      %s182 = sphi 0, %s180
      %s183 = sphi 0, %s182
      %s197 = sphi 0, %s183
      %s201 = sphi 0, %s201
      %s203 = sphi 0, %s201
      %s204 = sphi 0, %s203
      %s218 = sphi 0, %s204
      %s222 = sphi 0, %s222
      %s224 = sphi 0, %s222
      %s225 = sphi 0, %s224
      %s239 = sphi 0, %s225
      %s243 = sphi 0, %s243
      %s245 = sphi 0, %s243
      %s246 = sphi 0, %s245
      %s260 = sphi 0, %s246
      %s266 = sphi 0, %s268
      %s269 = sphi 0, %s266
      %s270 = sphi 0, %s269
      %s286 = sphi 0, %s270
    $region4: #{mixed_5b_forward.1} parent=1 // loop_header_branch
      %23 = sbr.rel (%p21) target = $region8
    $region5: #{mixed_5b_forward.1} parent=1 // loop_body
      %s25 = ssub.s32 %s20, 1
      %s26 = ssub.s32 %s20, 2
      %s27 = sadd.s32 %s20, 1
      %s28 = ssub.s32 %s20, %s27
      %p29 = scmp.eq.s32.totalorder %s28, 0
      %s31 = sadd.s32 %s30, 1
      %s32 = scalar_select %p29, %s30, %s31
      %p35 = pneg %p29
      %p36 = scmp.eq.s32.totalorder %s20, 1
      %p37 = por %p35, %p36
      %p38 = scmp.ne.s32.totalorder %s30, %s33
      %p39 = scmp.eq.s32.totalorder %s20, 0
      %p40 = por %p38, %p39
      %p41 = scmp.ne.s32.totalorder %s30, %s33
      %p42 = scmp.eq.s32.totalorder %s25, 1
      %p43 = por %p41, %p42
      %p44 = scmp.ne.s32.totalorder %s33, %s34
      %p45 = scmp.eq.s32.totalorder %s25, 0
      %p46 = por %p44, %p45
      %p47 = scmp.ne.s32.totalorder %s33, %s34
      %p48 = scmp.eq.s32.totalorder %s26, 1
      %p49 = por %p47, %p48
      %p51 = scmp.ne.s32.totalorder %s34, %s50
      %p52 = scmp.eq.s32.totalorder %s26, 0
      %p53 = por %p51, %p52
      %s55 = sadd.s32 %s54, 1
      %p58 = scmp.eq.s32.totalorder %s20, 1
      %p59 = scmp.ne.s32.totalorder %s54, %s56
      %p60 = scmp.eq.s32.totalorder %s20, 0
      %p61 = por %p59, %p60
      %p62 = scmp.ne.s32.totalorder %s54, %s56
      %p63 = scmp.eq.s32.totalorder %s25, 1
      %p64 = por %p62, %p63
      %p65 = scmp.ne.s32.totalorder %s56, %s57
      %p66 = scmp.eq.s32.totalorder %s25, 0
      %p67 = por %p65, %p66
      %p68 = scmp.ne.s32.totalorder %s56, %s57
      %p69 = scmp.eq.s32.totalorder %s26, 1
      %p70 = por %p68, %p69
      %p72 = scmp.ne.s32.totalorder %s57, %s71
      %p73 = scmp.eq.s32.totalorder %s26, 0
      %p74 = por %p72, %p73
      %s76 = sadd.s32 %s75, 1
      %p79 = scmp.eq.s32.totalorder %s20, 1
      %p80 = scmp.ne.s32.totalorder %s75, %s77
      %p81 = scmp.eq.s32.totalorder %s20, 0
      %p82 = por %p80, %p81
      %p83 = scmp.ne.s32.totalorder %s75, %s77
      %p84 = scmp.eq.s32.totalorder %s25, 1
      %p85 = por %p83, %p84
      %p86 = scmp.ne.s32.totalorder %s77, %s78
      %p87 = scmp.eq.s32.totalorder %s25, 0
      %p88 = por %p86, %p87
      %p89 = scmp.ne.s32.totalorder %s77, %s78
      %p90 = scmp.eq.s32.totalorder %s26, 1
      %p91 = por %p89, %p90
      %p93 = scmp.ne.s32.totalorder %s78, %s92
      %p94 = scmp.eq.s32.totalorder %s26, 0
      %p95 = por %p93, %p94
      %s97 = sadd.s32 %s96, 1
      %p100 = scmp.eq.s32.totalorder %s20, 1
      %p101 = scmp.ne.s32.totalorder %s96, %s98
      %p102 = scmp.eq.s32.totalorder %s20, 0
      %p103 = por %p101, %p102
      %p104 = scmp.ne.s32.totalorder %s96, %s98
      %p105 = scmp.eq.s32.totalorder %s25, 1
      %p106 = por %p104, %p105
      %p107 = scmp.ne.s32.totalorder %s98, %s99
      %p108 = scmp.eq.s32.totalorder %s25, 0
      %p109 = por %p107, %p108
      %p110 = scmp.ne.s32.totalorder %s98, %s99
      %p111 = scmp.eq.s32.totalorder %s26, 1
      %p112 = por %p110, %p111
      %p114 = scmp.ne.s32.totalorder %s99, %s113
      %p115 = scmp.eq.s32.totalorder %s26, 0
      %p116 = por %p114, %p115
      %s118 = sadd.s32 %s117, 1
      %p121 = scmp.eq.s32.totalorder %s20, 1
      %p122 = scmp.ne.s32.totalorder %s117, %s119
      %p123 = scmp.eq.s32.totalorder %s20, 0
      %p124 = por %p122, %p123
      %p125 = scmp.ne.s32.totalorder %s117, %s119
      %p126 = scmp.eq.s32.totalorder %s25, 1
      %p127 = por %p125, %p126
      %p128 = scmp.ne.s32.totalorder %s119, %s120
      %p129 = scmp.eq.s32.totalorder %s25, 0
      %p130 = por %p128, %p129
      %p131 = scmp.ne.s32.totalorder %s119, %s120
      %p132 = scmp.eq.s32.totalorder %s26, 1
      %p133 = por %p131, %p132
      %p135 = scmp.ne.s32.totalorder %s120, %s134
      %p136 = scmp.eq.s32.totalorder %s26, 0
      %p137 = por %p135, %p136
      %s139 = sadd.s32 %s138, 1
      %p142 = scmp.eq.s32.totalorder %s20, 1
      %p143 = scmp.ne.s32.totalorder %s138, %s140
      %p144 = scmp.eq.s32.totalorder %s20, 0
      %p145 = por %p143, %p144
      %p146 = scmp.ne.s32.totalorder %s138, %s140
      %p147 = scmp.eq.s32.totalorder %s25, 1
      %p148 = por %p146, %p147
      %p149 = scmp.ne.s32.totalorder %s140, %s141
      %p150 = scmp.eq.s32.totalorder %s25, 0
      %p151 = por %p149, %p150
      %p152 = scmp.ne.s32.totalorder %s140, %s141
      %p153 = scmp.eq.s32.totalorder %s26, 1
      %p154 = por %p152, %p153
      %p156 = scmp.ne.s32.totalorder %s141, %s155
      %p157 = scmp.eq.s32.totalorder %s26, 0
      %p158 = por %p156, %p157
      %s160 = sadd.s32 %s159, 1
      %p163 = scmp.eq.s32.totalorder %s20, 1
      %p164 = scmp.ne.s32.totalorder %s159, %s161
      %p165 = scmp.eq.s32.totalorder %s20, 0
      %p166 = por %p164, %p165
      %p167 = scmp.ne.s32.totalorder %s159, %s161
      %p168 = scmp.eq.s32.totalorder %s25, 1
      %p169 = por %p167, %p168
      %p170 = scmp.ne.s32.totalorder %s161, %s162
      %p171 = scmp.eq.s32.totalorder %s25, 0
      %p172 = por %p170, %p171
      %p173 = scmp.ne.s32.totalorder %s161, %s162
      %p174 = scmp.eq.s32.totalorder %s26, 1
      %p175 = por %p173, %p174
      %p177 = scmp.ne.s32.totalorder %s162, %s176
      %p178 = scmp.eq.s32.totalorder %s26, 0
      %p179 = por %p177, %p178
      %s181 = sadd.s32 %s180, 1
      %p184 = scmp.eq.s32.totalorder %s20, 1
      %p185 = scmp.ne.s32.totalorder %s180, %s182
      %p186 = scmp.eq.s32.totalorder %s20, 0
      %p187 = por %p185, %p186
      %p188 = scmp.ne.s32.totalorder %s180, %s182
      %p189 = scmp.eq.s32.totalorder %s25, 1
      %p190 = por %p188, %p189
      %p191 = scmp.ne.s32.totalorder %s182, %s183
      %p192 = scmp.eq.s32.totalorder %s25, 0
      %p193 = por %p191, %p192
      %p194 = scmp.ne.s32.totalorder %s182, %s183
      %p195 = scmp.eq.s32.totalorder %s26, 1
      %p196 = por %p194, %p195
      %p198 = scmp.ne.s32.totalorder %s183, %s197
      %p199 = scmp.eq.s32.totalorder %s26, 0
      %p200 = por %p198, %p199
      %s202 = sadd.s32 %s201, 1
      %p205 = scmp.eq.s32.totalorder %s20, 1
      %p206 = scmp.ne.s32.totalorder %s201, %s203
      %p207 = scmp.eq.s32.totalorder %s20, 0
      %p208 = por %p206, %p207
      %p209 = scmp.ne.s32.totalorder %s201, %s203
      %p210 = scmp.eq.s32.totalorder %s25, 1
      %p211 = por %p209, %p210
      %p212 = scmp.ne.s32.totalorder %s203, %s204
      %p213 = scmp.eq.s32.totalorder %s25, 0
      %p214 = por %p212, %p213
      %p215 = scmp.ne.s32.totalorder %s203, %s204
      %p216 = scmp.eq.s32.totalorder %s26, 1
      %p217 = por %p215, %p216
      %p219 = scmp.ne.s32.totalorder %s204, %s218
      %p220 = scmp.eq.s32.totalorder %s26, 0
      %p221 = por %p219, %p220
      %s223 = sadd.s32 %s222, 1
      %p226 = scmp.eq.s32.totalorder %s20, 1
      %p227 = scmp.ne.s32.totalorder %s222, %s224
      %p228 = scmp.eq.s32.totalorder %s20, 0
      %p229 = por %p227, %p228
      %p230 = scmp.ne.s32.totalorder %s222, %s224
      %p231 = scmp.eq.s32.totalorder %s25, 1
      %p232 = por %p230, %p231
      %p233 = scmp.ne.s32.totalorder %s224, %s225
      %p234 = scmp.eq.s32.totalorder %s25, 0
      %p235 = por %p233, %p234
      %p236 = scmp.ne.s32.totalorder %s224, %s225
      %p237 = scmp.eq.s32.totalorder %s26, 1
      %p238 = por %p236, %p237
      %p240 = scmp.ne.s32.totalorder %s225, %s239
      %p241 = scmp.eq.s32.totalorder %s26, 0
      %p242 = por %p240, %p241
      %s244 = sadd.s32 %s243, 1
      %p247 = scmp.eq.s32.totalorder %s20, 1
      %p248 = scmp.ne.s32.totalorder %s243, %s245
      %p249 = scmp.eq.s32.totalorder %s20, 0
      %p250 = por %p248, %p249
      %p251 = scmp.ne.s32.totalorder %s243, %s245
      %p252 = scmp.eq.s32.totalorder %s25, 1
      %p253 = por %p251, %p252
      %p254 = scmp.ne.s32.totalorder %s245, %s246
      %p255 = scmp.eq.s32.totalorder %s25, 0
      %p256 = por %p254, %p255
      %p257 = scmp.ne.s32.totalorder %s245, %s246
      %p258 = scmp.eq.s32.totalorder %s26, 1
      %p259 = por %p257, %p258
      %p261 = scmp.ne.s32.totalorder %s246, %s260
      %p262 = scmp.eq.s32.totalorder %s26, 0
      %p263 = por %p261, %p262
      %s264 = ssub.s32 %s20, %s27
      %p265 = scmp.eq.s32.totalorder %s264, 0
      %s267 = sadd.s32 %s266, 1
      %s268 = scalar_select %p265, %s266, %s267
      %p271 = pneg %p265
      %p272 = scmp.eq.s32.totalorder %s20, 1
      %p273 = por %p271, %p272
      %p274 = scmp.ne.s32.totalorder %s266, %s269
      %p275 = scmp.eq.s32.totalorder %s20, 0
      %p276 = por %p274, %p275
      %p277 = scmp.ne.s32.totalorder %s266, %s269
      %p278 = scmp.eq.s32.totalorder %s25, 1
      %p279 = por %p277, %p278
      %p280 = scmp.ne.s32.totalorder %s269, %s270
      %p281 = scmp.eq.s32.totalorder %s25, 0
      %p282 = por %p280, %p281
      %p283 = scmp.ne.s32.totalorder %s269, %s270
      %p284 = scmp.eq.s32.totalorder %s26, 1
      %p285 = por %p283, %p284
      %p287 = scmp.ne.s32.totalorder %s270, %s286
      %p288 = scmp.eq.s32.totalorder %s26, 0
      %p289 = por %p287, %p288
      %p290 = scmp.le.s32.totalorder 1, %s20
      %p291 = scmp.lt.s32.totalorder %s20, 3
      %p292 = pnand %p290, %p291
      %p293 = pneg %p292
      // Predicated region
      $region9: #{mixed_5b_forward.1} parent=5 // pred_check
        _
      $region10: #{mixed_5b_forward.1} parent=5 // pred_check_branch
        %295 = sbr.rel (%p292) target = $region12
      $region11: #{mixed_5b_forward.1} parent=5 // pred_region
        %s296 = ssub.s32 %s20, 1
        // Predicated region
        $region13: #{mixed_5b_forward.1} parent=11 // pred_check
          %p297 = pneg %p67
        $region14: #{mixed_5b_forward.1} parent=11 // pred_check_branch
          %299 = sbr.rel (%p297) target = $region16
        $region15: #{mixed_5b_forward.1} parent=11 // pred_region
          _
        $region16: #{mixed_5b_forward.1} parent=11 // pred_fallthru
          _
        // Predicated region
        $region17: #{mixed_5b_forward.1} parent=11 // pred_check
          %p300 = pneg %p88
        $region18: #{mixed_5b_forward.1} parent=11 // pred_check_branch
          %302 = sbr.rel (%p300) target = $region20
        $region19: #{mixed_5b_forward.1} parent=11 // pred_region
          _
        $region20: #{mixed_5b_forward.1} parent=11 // pred_fallthru
          _
        // Predicated region
        $region21: #{mixed_5b_forward.1} parent=11 // pred_check
          %p303 = pneg %p109
        $region22: #{mixed_5b_forward.1} parent=11 // pred_check_branch
          %305 = sbr.rel (%p303) target = $region24
        $region23: #{mixed_5b_forward.1} parent=11 // pred_region
          _
        $region24: #{mixed_5b_forward.1} parent=11 // pred_fallthru
          _
        // Predicated region
        $region25: #{mixed_5b_forward.1} parent=11 // pred_check
          %p306 = pneg %p130
        $region26: #{mixed_5b_forward.1} parent=11 // pred_check_branch
          %308 = sbr.rel (%p306) target = $region28
        $region27: #{mixed_5b_forward.1} parent=11 // pred_region
          _
        $region28: #{mixed_5b_forward.1} parent=11 // pred_fallthru
          _
        // Predicated region
        $region29: #{mixed_5b_forward.1} parent=11 // pred_check
          %p309 = pneg %p151
        $region30: #{mixed_5b_forward.1} parent=11 // pred_check_branch
          %311 = sbr.rel (%p309) target = $region32
        $region31: #{mixed_5b_forward.1} parent=11 // pred_region
          _
        $region32: #{mixed_5b_forward.1} parent=11 // pred_fallthru
          _
        // Predicated region
        $region33: #{mixed_5b_forward.1} parent=11 // pred_check
          %p312 = pneg %p172
        $region34: #{mixed_5b_forward.1} parent=11 // pred_check_branch
          %314 = sbr.rel (%p312) target = $region36
        $region35: #{mixed_5b_forward.1} parent=11 // pred_region
          _
        $region36: #{mixed_5b_forward.1} parent=11 // pred_fallthru
          _
        // Predicated region
        $region37: #{mixed_5b_forward.1} parent=11 // pred_check
          %p315 = pneg %p193
        $region38: #{mixed_5b_forward.1} parent=11 // pred_check_branch
          %317 = sbr.rel (%p315) target = $region40
        $region39: #{mixed_5b_forward.1} parent=11 // pred_region
          _
        $region40: #{mixed_5b_forward.1} parent=11 // pred_fallthru
          _
        // Predicated region
        $region41: #{mixed_5b_forward.1} parent=11 // pred_check
          %p318 = pneg %p214
        $region42: #{mixed_5b_forward.1} parent=11 // pred_check_branch
          %320 = sbr.rel (%p318) target = $region44
        $region43: #{mixed_5b_forward.1} parent=11 // pred_region
          _
        $region44: #{mixed_5b_forward.1} parent=11 // pred_fallthru
          _
        // Predicated region
        $region45: #{mixed_5b_forward.1} parent=11 // pred_check
          %p321 = pneg %p235
        $region46: #{mixed_5b_forward.1} parent=11 // pred_check_branch
          %323 = sbr.rel (%p321) target = $region48
        $region47: #{mixed_5b_forward.1} parent=11 // pred_region
          _
        $region48: #{mixed_5b_forward.1} parent=11 // pred_fallthru
          _
        // Predicated region
        $region49: #{mixed_5b_forward.1} parent=11 // pred_check
          %p324 = pneg %p256
        $region50: #{mixed_5b_forward.1} parent=11 // pred_check_branch
          %326 = sbr.rel (%p324) target = $region52
        $region51: #{mixed_5b_forward.1} parent=11 // pred_region
          _
        $region52: #{mixed_5b_forward.1} parent=11 // pred_fallthru
          _
      $region12: #{mixed_5b_forward.1} parent=5 // pred_fallthru
        _
      %p327 = scmp.lt.s32.totalorder %s20, 2
      // Predicated region
      $region53: #{mixed_5b_forward.1} parent=5 // pred_check
        %p328 = pneg %p327
      $region54: #{mixed_5b_forward.1} parent=5 // pred_check_branch
        %330 = sbr.rel (%p328) target = $region56
      $region55: #{mixed_5b_forward.1} parent=5 // pred_region
        // Predicated region
        $region57: #{mixed_5b_forward.1} parent=55 // pred_check
          %p331 = pneg %p40
        $region58: #{mixed_5b_forward.1} parent=55 // pred_check_branch
          %333 = sbr.rel (%p331) target = $region60
        $region59: #{mixed_5b_forward.1} parent=55 // pred_region
          %p334 = scmp.lt.s32.totalorder %s20, 1
          %s335 = scalar_select %p334, %s20, 1
          %s336 = smul.addr %s335, 16
          %s337 = smul.addr %s336, 8
          %s338 = scalar_lea.vmem %s0, %s337
        $region60: #{mixed_5b_forward.1} parent=55 // pred_fallthru
          _
      $region56: #{mixed_5b_forward.1} parent=5 // pred_fallthru
        _
      %p339 = scmp.le.s32.totalorder 1, %s20
      %p340 = scmp.lt.s32.totalorder %s20, 3
      %p341 = pnand %p339, %p340
      %p342 = pneg %p341
      // Predicated region
      $region61: #{mixed_5b_forward.1} parent=5 // pred_check
        _
      $region62: #{mixed_5b_forward.1} parent=5 // pred_check_branch
        %344 = sbr.rel (%p341) target = $region64
      $region63: #{mixed_5b_forward.1} parent=5 // pred_region
        %s345 = ssub.s32 %s20, 1
        %p346 = scmp.lt.s32.totalorder %s25, 1
        %s347 = scalar_select %p346, %s25, 1
        %s348 = smul.addr %s347, 16
        %s349 = smul.addr %s348, 8
        %s350 = scalar_lea.vmem %s0, %s349
        %p351 = pneg %p46
        %p352 = pneg %p43
        %p353 = pneg %p67
        %p354 = pneg %p64
        %p355 = pneg %p88
        %p356 = pneg %p85
        %p357 = pneg %p109
        %p358 = pneg %p106
        %p359 = pneg %p130
        %p360 = pneg %p127
        %p361 = pneg %p151
        %p362 = pneg %p148
        %p363 = pneg %p172
        %p364 = pneg %p169
        %p365 = pneg %p193
        %p366 = pneg %p190
        %p367 = pneg %p214
        %p368 = pneg %p211
        %p369 = pneg %p235
        %p370 = pneg %p232
        %p371 = pneg %p256
        %p372 = pneg %p253
        %p373 = pneg %p282
        %p374 = pneg %p279
        %s375 = sand.u32 %s269, 1
        %s376 = scalar_lea.sflag [#allocation3], %s375
        %s377 = sand.u32 %s269, 1
        %s378 = smul.addr %s377, 192
        %s379 = scalar_lea.vmem [#allocation2], %s378
        %p380 = scmp.lt.s32.totalorder %s25, 1
        %s381 = scalar_select %p380, %s25, 1
        %s382 = smul.addr %s381, 16
        %s383 = smul.addr %s382, 8
        %s384 = scalar_lea.vmem %s0, %s383
        %v386 = vld [vmem:[%s384] sm:$0xff]
        %v387 = vld [vmem:[%s384 + $0x8] sm:$0xff]
        %v388 = vld [vmem:[%s384 + $0x10] sm:$0xff]
        %v389 = vld [vmem:[%s384 + $0x18] sm:$0xff]
        %v390 = vld [vmem:[%s384 + $0x20] sm:$0xff]
        %v391 = vld [vmem:[%s384 + $0x28] sm:$0xff]
        %v392 = vld [vmem:[%s384 + $0x30] sm:$0xff]
        %v393 = vld [vmem:[%s384 + $0x38] sm:$0xff]
        %v394 = vld [vmem:[%s384 + $0x40] sm:$0xff]
        %v395 = vld [vmem:[%s384 + $0x48] sm:$0xff]
        %v396 = vld [vmem:[%s384 + $0x50] sm:$0xff]
        %v397 = vld [vmem:[%s384 + $0x58] sm:$0xff]
        %v398 = vld [vmem:[%s384 + $0x60] sm:$0xff]
        %v399 = vld [vmem:[%s384 + $0x68] sm:$0xff]
        %v400 = vld [vmem:[%s384 + $0x70] sm:$0xff]
        %v401 = vld [vmem:[%s384 + $0x78] sm:$0xff]
        %v402 = vpack.c.bf16 %v388, %v386
        %v403 = vpack.c.bf16 %v389, %v387
        %v404 = vpack.c.bf16 %v392, %v390
        %v405 = vpack.c.bf16 %v393, %v391
        %v406 = vpack.c.bf16 %v396, %v394
        %v407 = vpack.c.bf16 %v397, %v395
        %v408 = vpack.c.bf16 %v400, %v398
        %v409 = vpack.c.bf16 %v401, %v399
        %v410 = vld [vmem:[%s1] sm:$0xff]
        %v411 = vld [vmem:[%s1 + $0x8] sm:$0xf]
        %v412 = vld [vmem:[%s1 + $0xc] sm:$0xff]
        %v413 = vld [vmem:[%s1 + $0x14] sm:$0xf]
        %v414 = vld [vmem:[%s1 + $0x18] sm:$0xff]
        %v415 = vld [vmem:[%s1 + $0x20] sm:$0xf]
        %v416 = vld [vmem:[%s1 + $0x24] sm:$0xff]
        %v417 = vld [vmem:[%s1 + $0x2c] sm:$0xf]
        %v418 = vld [vmem:[%s1 + $0x30] sm:$0xff]
        %v419 = vld [vmem:[%s1 + $0x38] sm:$0xf]
        %v420 = vld [vmem:[%s1 + $0x3c] sm:$0xff]
        %v421 = vld [vmem:[%s1 + $0x44] sm:$0xf]
        %v422 = vld [vmem:[%s1 + $0x48] sm:$0xff]
        %v423 = vld [vmem:[%s1 + $0x50] sm:$0xf]
        %v424 = vld [vmem:[%s1 + $0x54] sm:$0xff]
        %v425 = vld [vmem:[%s1 + $0x5c] sm:$0xf]
        %v426 = vld [vmem:[%s1 + $0x60] sm:$0xff]
        %v427 = vld [vmem:[%s1 + $0x68] sm:$0xf]
        %v428 = vld [vmem:[%s1 + $0x6c] sm:$0xff]
        %v429 = vld [vmem:[%s1 + $0x74] sm:$0xf]
        %v430 = vld [vmem:[%s1 + $0x78] sm:$0xff]
        %v431 = vld [vmem:[%s1 + $0x80] sm:$0xf]
        %v432 = vld [vmem:[%s1 + $0x84] sm:$0xff]
        %v433 = vld [vmem:[%s1 + $0x8c] sm:$0xf]
        %v434 = vld [vmem:[%s1 + $0x90] sm:$0xff]
        %v435 = vld [vmem:[%s1 + $0x98] sm:$0xf]
        %v436 = vld [vmem:[%s1 + $0x9c] sm:$0xff]
        %v437 = vld [vmem:[%s1 + $0xa4] sm:$0xf]
        %v438 = vld [vmem:[%s1 + $0xa8] sm:$0xff]
        %v439 = vld [vmem:[%s1 + $0xb0] sm:$0xf]
        %v440 = vld [vmem:[%s1 + $0xb4] sm:$0xff]
        %v441 = vld [vmem:[%s1 + $0xbc] sm:$0xf]
        %v442 = vld [vmem:[%s1 + $0xc0] sm:$0xff]
        %v443 = vld [vmem:[%s1 + $0xc8] sm:$0xf]
        %v444 = vld [vmem:[%s1 + $0xcc] sm:$0xff]
        %v445 = vld [vmem:[%s1 + $0xd4] sm:$0xf]
        %v446 = vld [vmem:[%s1 + $0xd8] sm:$0xff]
        %v447 = vld [vmem:[%s1 + $0xe0] sm:$0xf]
        %v448 = vld [vmem:[%s1 + $0xe4] sm:$0xff]
        %v449 = vld [vmem:[%s1 + $0xec] sm:$0xf]
        %v450 = vld [vmem:[%s1 + $0xf0] sm:$0xff]
        %v451 = vld [vmem:[%s1 + $0xf8] sm:$0xf]
        %v452 = vld [vmem:[%s1 + $0xfc] sm:$0xff]
        %v453 = vld [vmem:[%s1 + $0x104] sm:$0xf]
        %v454 = vld [vmem:[%s1 + $0x108] sm:$0xff]
        %v455 = vld [vmem:[%s1 + $0x110] sm:$0xf]
        %v456 = vld [vmem:[%s1 + $0x114] sm:$0xff]
        %v457 = vld [vmem:[%s1 + $0x11c] sm:$0xf]
        %v506 = vunpack.c.l.b16 %v410
        %v507 = vunpack.c.h.b16 %v410
        %v508 = vunpack.c.l.b16 %v411
        %v509 = vunpack.c.l.b16 %v412
        %v510 = vunpack.c.h.b16 %v412
        %v511 = vunpack.c.l.b16 %v413
        %v512 = vunpack.c.l.b16 %v414
        %v513 = vunpack.c.h.b16 %v414
        %v514 = vunpack.c.l.b16 %v415
        %v515 = vunpack.c.l.b16 %v416
        %v516 = vunpack.c.h.b16 %v416
        %v517 = vunpack.c.l.b16 %v417
        %v518 = vunpack.c.l.b16 %v418
        %v519 = vunpack.c.h.b16 %v418
        %v520 = vunpack.c.l.b16 %v419
        %v521 = vunpack.c.l.b16 %v420
        %v522 = vunpack.c.h.b16 %v420
        %v523 = vunpack.c.l.b16 %v421
        %v524 = vunpack.c.l.b16 %v422
        %v525 = vunpack.c.h.b16 %v422
        %v526 = vunpack.c.l.b16 %v423
        %v527 = vunpack.c.l.b16 %v424
        %v528 = vunpack.c.h.b16 %v424
        %v529 = vunpack.c.l.b16 %v425
        %v530 = vunpack.c.l.b16 %v426
        %v531 = vunpack.c.h.b16 %v426
        %v532 = vunpack.c.l.b16 %v427
        %v533 = vunpack.c.l.b16 %v428
        %v534 = vunpack.c.h.b16 %v428
        %v535 = vunpack.c.l.b16 %v429
        %v536 = vunpack.c.l.b16 %v430
        %v537 = vunpack.c.h.b16 %v430
        %v538 = vunpack.c.l.b16 %v431
        %v539 = vunpack.c.l.b16 %v432
        %v540 = vunpack.c.h.b16 %v432
        %v541 = vunpack.c.l.b16 %v433
        %v542 = vunpack.c.l.b16 %v434
        %v543 = vunpack.c.h.b16 %v434
        %v544 = vunpack.c.l.b16 %v435
        %v545 = vunpack.c.l.b16 %v436
        %v546 = vunpack.c.h.b16 %v436
        %v547 = vunpack.c.l.b16 %v437
        %v548 = vunpack.c.l.b16 %v438
        %v549 = vunpack.c.h.b16 %v438
        %v550 = vunpack.c.l.b16 %v439
        %v551 = vunpack.c.l.b16 %v440
        %v552 = vunpack.c.h.b16 %v440
        %v553 = vunpack.c.l.b16 %v441
        %v554 = vunpack.c.l.b16 %v442
        %v555 = vunpack.c.h.b16 %v442
        %v556 = vunpack.c.l.b16 %v443
        %v557 = vunpack.c.l.b16 %v444
        %v558 = vunpack.c.h.b16 %v444
        %v559 = vunpack.c.l.b16 %v445
        %v560 = vunpack.c.l.b16 %v446
        %v561 = vunpack.c.h.b16 %v446
        %v562 = vunpack.c.l.b16 %v447
        %v563 = vunpack.c.l.b16 %v448
        %v564 = vunpack.c.h.b16 %v448
        %v565 = vunpack.c.l.b16 %v449
        %v566 = vunpack.c.l.b16 %v450
        %v567 = vunpack.c.h.b16 %v450
        %v568 = vunpack.c.l.b16 %v451
        %v569 = vunpack.c.l.b16 %v452
        %v570 = vunpack.c.h.b16 %v452
        %v571 = vunpack.c.l.b16 %v453
        %v572 = vunpack.c.l.b16 %v454
        %v573 = vunpack.c.h.b16 %v454
        %v574 = vunpack.c.l.b16 %v455
        %v575 = vunpack.c.l.b16 %v456
        %v576 = vunpack.c.h.b16 %v456
        %v577 = vunpack.c.l.b16 %v457
        %v578 = vpack.c.b16 %v509, %v506
        %v579 = vpack.c.b16 %v510, %v507
        %v580 = vpack.c.b16 %v511, %v508
        %v581 = vpack.c.b16 %v515, %v512
        %v582 = vpack.c.b16 %v516, %v513
        %v583 = vpack.c.b16 %v517, %v514
        %v584 = vpack.c.b16 %v521, %v518
        %v585 = vpack.c.b16 %v522, %v519
        %v586 = vpack.c.b16 %v523, %v520
        %v587 = vpack.c.b16 %v527, %v524
        %v588 = vpack.c.b16 %v528, %v525
        %v589 = vpack.c.b16 %v529, %v526
        %v590 = vpack.c.b16 %v533, %v530
        %v591 = vpack.c.b16 %v534, %v531
        %v592 = vpack.c.b16 %v535, %v532
        %v593 = vpack.c.b16 %v539, %v536
        %v594 = vpack.c.b16 %v540, %v537
        %v595 = vpack.c.b16 %v541, %v538
        %v596 = vpack.c.b16 %v545, %v542
        %v597 = vpack.c.b16 %v546, %v543
        %v598 = vpack.c.b16 %v547, %v544
        %v599 = vpack.c.b16 %v551, %v548
        %v600 = vpack.c.b16 %v552, %v549
        %v601 = vpack.c.b16 %v553, %v550
        %v602 = vpack.c.b16 %v557, %v554
        %v603 = vpack.c.b16 %v558, %v555
        %v604 = vpack.c.b16 %v559, %v556
        %v605 = vpack.c.b16 %v563, %v560
        %v606 = vpack.c.b16 %v564, %v561
        %v607 = vpack.c.b16 %v565, %v562
        %v608 = vpack.c.b16 %v569, %v566
        %v609 = vpack.c.b16 %v570, %v567
        %v610 = vpack.c.b16 %v571, %v568
        %v611 = vpack.c.b16 %v575, %v572
        %v612 = vpack.c.b16 %v576, %v573
        %v613 = vpack.c.b16 %v577, %v574
        %vm650 = vcmask 523264
        %v652 = vsel %vm650, %v403, 0
        %v655 = vsel %vm650, %v405, 0
        %v658 = vsel %vm650, %v407, 0
        %v661 = vsel %vm650, %v409, 0
        %663 = vmatprep.subr.bf16.mxu0 %v600
        %664 = vmatpush1.bf16.msra.mxu0 %v599
        %665 = vmatprep.subr.bf16.mxu0 %v597
        %666 = vmatpush1.bf16.msra.mxu0 %v596
        %667 = vmatprep.subr.bf16.mxu0 %v594
        %668 = vmatpush1.bf16.msra.mxu0 %v593
        %669 = vmatprep.subr.bf16.mxu0 %v591
        %670 = vmatpush1.bf16.msra.mxu0 %v590
        %671 = vmatprep.subr.bf16.mxu0 %v588
        %672 = vmatpush1.bf16.msra.mxu0 %v587
        %673 = vmatprep.subr.bf16.mxu0 %v585
        %674 = vmatpush1.bf16.msra.mxu0 %v584
        %675 = vmatprep.subr.bf16.mxu0 %v582
        %676 = vmatpush1.bf16.msra.mxu0 %v581
        %677 = vmatprep.subr.bf16.mxu0 %v579
        %678 = vmatpush1.bf16.msra.mxu0 %v578
        %679 = vmatprep.subr.bf16.mxu0 0
        %680 = vmatpush2.bf16.msra.mxu0 0
        %681 = vmatprep.subr.bf16.mxu0 0
        %682 = vmatpush2.bf16.msra.mxu0 0
        %683 = vmatprep.subr.bf16.mxu0 0
        %684 = vmatpush2.bf16.msra.mxu0 0
        %685 = vmatprep.subr.bf16.mxu0 0
        %686 = vmatpush2.bf16.msra.mxu0 0
        %687 = vmatprep.subr.bf16.mxu0 %v612
        %688 = vmatpush2.bf16.msra.mxu0 %v611
        %689 = vmatprep.subr.bf16.mxu0 %v609
        %690 = vmatpush2.bf16.msra.mxu0 %v608
        %691 = vmatprep.subr.bf16.mxu0 %v606
        %692 = vmatpush2.bf16.msra.mxu0 %v605
        %693 = vmatprep.subr.bf16.mxu0 %v603
        %694 = vmatpush2.bf16.msra.mxu0 %v602
        %695 = vmatprep.mubr.bf16.mxu0 %v652
        %696 = vmatmul.mubr.bf16.gmra.mxu0 %v402
        %v697 = vpop.f32.mrf.mxu0
        %v698 = vadd.f32 0.0, %v697
        %v699 = vpop.f32.mrf.mxu0
        %v700 = vadd.f32 0.0, %v699
        %v701 = vpop.f32.mrf.mxu0
        %v702 = vadd.f32 0.0, %v701
        %v703 = vpop.f32.mrf.mxu0
        %v704 = vadd.f32 0.0, %v703
        %705 = vmatprep.mubr.bf16.mxu0 %v655
        %706 = vmatmul.mubr.bf16.gmra.mxu0 %v404
        %v707 = vpop.f32.mrf.mxu0
        %v708 = vadd.f32 0.0, %v707
        %v709 = vpop.f32.mrf.mxu0
        %v710 = vadd.f32 0.0, %v709
        %v711 = vpop.f32.mrf.mxu0
        %v712 = vadd.f32 0.0, %v711
        %v713 = vpop.f32.mrf.mxu0
        %v714 = vadd.f32 0.0, %v713
        %715 = vmatprep.mubr.bf16.mxu0 %v658
        %716 = vmatmul.mubr.bf16.gmra.mxu0 %v406
        %v717 = vpop.f32.mrf.mxu0
        %v718 = vadd.f32 0.0, %v717
        %v719 = vpop.f32.mrf.mxu0
        %v720 = vadd.f32 0.0, %v719
        %v721 = vpop.f32.mrf.mxu0
        %v722 = vadd.f32 0.0, %v721
        %v723 = vpop.f32.mrf.mxu0
        %v724 = vadd.f32 0.0, %v723
        %725 = vmatprep.mubr.bf16.mxu0 %v661
        %726 = vmatmul.mubr.bf16.gmra.mxu0 %v408
        %v727 = vpop.f32.mrf.mxu0
        %v728 = vadd.f32 0.0, %v727
        %v729 = vpop.f32.mrf.mxu0
        %v730 = vadd.f32 0.0, %v729
        %v731 = vpop.f32.mrf.mxu0
        %v732 = vadd.f32 0.0, %v731
        %v733 = vpop.f32.mrf.mxu0
        %v734 = vadd.f32 0.0, %v733
        %735 = vdwg.mxu0
        %736 = vmatprep.subr.bf16.mxu0 0
        %737 = vmatpush1.bf16.msra.mxu0 %v601
        %738 = vmatprep.subr.bf16.mxu0 0
        %739 = vmatpush1.bf16.msra.mxu0 %v598
        %740 = vmatprep.subr.bf16.mxu0 0
        %741 = vmatpush1.bf16.msra.mxu0 %v595
        %742 = vmatprep.subr.bf16.mxu0 0
        %743 = vmatpush1.bf16.msra.mxu0 %v592
        %744 = vmatprep.subr.bf16.mxu0 0
        %745 = vmatpush1.bf16.msra.mxu0 %v589
        %746 = vmatprep.subr.bf16.mxu0 0
        %747 = vmatpush1.bf16.msra.mxu0 %v586
        %748 = vmatprep.subr.bf16.mxu0 0
        %749 = vmatpush1.bf16.msra.mxu0 %v583
        %750 = vmatprep.subr.bf16.mxu0 0
        %751 = vmatpush1.bf16.msra.mxu0 %v580
        %752 = vmatprep.subr.bf16.mxu0 0
        %753 = vmatpush2.bf16.msra.mxu0 0
        %754 = vmatprep.subr.bf16.mxu0 0
        %755 = vmatpush2.bf16.msra.mxu0 0
        %756 = vmatprep.subr.bf16.mxu0 0
        %757 = vmatpush2.bf16.msra.mxu0 0
        %758 = vmatprep.subr.bf16.mxu0 0
        %759 = vmatpush2.bf16.msra.mxu0 0
        %760 = vmatprep.subr.bf16.mxu0 0
        %761 = vmatpush2.bf16.msra.mxu0 %v613
        %762 = vmatprep.subr.bf16.mxu0 0
        %763 = vmatpush2.bf16.msra.mxu0 %v610
        %764 = vmatprep.subr.bf16.mxu0 0
        %765 = vmatpush2.bf16.msra.mxu0 %v607
        %766 = vmatprep.subr.bf16.mxu0 0
        %767 = vmatpush2.bf16.msra.mxu0 %v604
        %768 = vmatprep.mubr.bf16.mxu0 %v652
        %769 = vmatmul.mubr.bf16.gmra.mxu0 %v402
        %v770 = vpop.f32.mrf.mxu0
        %v771 = vadd.f32 0.0, %v770
        %v772 = vpop.f32.mrf.mxu0
        %v773 = vpop.f32.mrf.mxu0
        %v774 = vadd.f32 0.0, %v773
        %v775 = vpop.f32.mrf.mxu0
        %776 = vmatprep.mubr.bf16.mxu0 %v655
        %777 = vmatmul.mubr.bf16.gmra.mxu0 %v404
        %v778 = vpop.f32.mrf.mxu0
        %v779 = vadd.f32 0.0, %v778
        %v780 = vpop.f32.mrf.mxu0
        %v781 = vpop.f32.mrf.mxu0
        %v782 = vadd.f32 0.0, %v781
        %v783 = vpop.f32.mrf.mxu0
        %784 = vmatprep.mubr.bf16.mxu0 %v658
        %785 = vmatmul.mubr.bf16.gmra.mxu0 %v406
        %v786 = vpop.f32.mrf.mxu0
        %v787 = vadd.f32 0.0, %v786
        %v788 = vpop.f32.mrf.mxu0
        %v789 = vpop.f32.mrf.mxu0
        %v790 = vadd.f32 0.0, %v789
        %v791 = vpop.f32.mrf.mxu0
        %792 = vmatprep.mubr.bf16.mxu0 %v661
        %793 = vmatmul.mubr.bf16.gmra.mxu0 %v408
        %v794 = vpop.f32.mrf.mxu0
        %v795 = vadd.f32 0.0, %v794
        %v796 = vpop.f32.mrf.mxu0
        %v797 = vpop.f32.mrf.mxu0
        %v798 = vadd.f32 0.0, %v797
        %v799 = vpop.f32.mrf.mxu0
        %800 = vdwg.mxu0
        %v801 = vld [vmem:[%s2] sm:$0x3]
        %v803 = vlaneseq
        %v804 = vshrl.u32 %v803, 7
        %v805 = vsub.s32 0, %v804
        %v806 = vrot.slane %v801, %v805
        %v807 = vlaneseq
        %v808 = vshrl.u32 %v807, 7
        %v809 = vsub.s32 1, %v808
        %v810 = vrot.slane %v801, %v809
        %v813 = vadd.f32 %v698, %v806
        %v814 = vadd.f32 %v700, %v810
        %v815 = vadd.f32 %v702, %v806
        %v816 = vadd.f32 %v704, %v810
        %v817 = vadd.f32 %v708, %v806
        %v818 = vadd.f32 %v710, %v810
        %v819 = vadd.f32 %v712, %v806
        %v820 = vadd.f32 %v714, %v810
        %v821 = vadd.f32 %v718, %v806
        %v822 = vadd.f32 %v720, %v810
        %v823 = vadd.f32 %v722, %v806
        %v824 = vadd.f32 %v724, %v810
        %v825 = vadd.f32 %v728, %v806
        %v826 = vadd.f32 %v730, %v810
        %v827 = vadd.f32 %v732, %v806
        %v828 = vadd.f32 %v734, %v810
        %v829 = vmax.f32 %v813, 0.0
        %v830 = vmax.f32 %v814, 0.0
        %v831 = vmax.f32 %v815, 0.0
        %v832 = vmax.f32 %v816, 0.0
        %v833 = vmax.f32 %v817, 0.0
        %v834 = vmax.f32 %v818, 0.0
        %v835 = vmax.f32 %v819, 0.0
        %v836 = vmax.f32 %v820, 0.0
        %v837 = vmax.f32 %v821, 0.0
        %v838 = vmax.f32 %v822, 0.0
        %v839 = vmax.f32 %v823, 0.0
        %v840 = vmax.f32 %v824, 0.0
        %v841 = vmax.f32 %v825, 0.0
        %v842 = vmax.f32 %v826, 0.0
        %v843 = vmax.f32 %v827, 0.0
        %v844 = vmax.f32 %v828, 0.0
        %v845 = vpack.c.bf16 %v831, %v829
        %v846 = vpack.c.bf16 %v832, %v830
        %v847 = vpack.c.bf16 %v835, %v833
        %v848 = vpack.c.bf16 %v836, %v834
        %v849 = vpack.c.bf16 %v839, %v837
        %v850 = vpack.c.bf16 %v840, %v838
        %v851 = vpack.c.bf16 %v843, %v841
        %v852 = vpack.c.bf16 %v844, %v842
        %v861 = vunpack.c.l.b16 %v845
        %v862 = vunpack.c.l.b16 %v846
        %v863 = vunpack.c.h.b16 %v845
        %v864 = vunpack.c.h.b16 %v846
        %v865 = vunpack.c.l.b16 %v847
        %v866 = vunpack.c.l.b16 %v848
        %v867 = vunpack.c.h.b16 %v847
        %v868 = vunpack.c.h.b16 %v848
        %v869 = vunpack.c.l.b16 %v849
        %v870 = vunpack.c.l.b16 %v850
        %v871 = vunpack.c.h.b16 %v849
        %v872 = vunpack.c.h.b16 %v850
        %v873 = vunpack.c.l.b16 %v851
        %v874 = vunpack.c.l.b16 %v852
        %v875 = vunpack.c.h.b16 %v851
        %v876 = vunpack.c.h.b16 %v852
        %v877 = vpack.c.b16 %v861, %v861
        %v878 = vpack.c.b16 %v862, %v862
        %v879 = vpack.c.b16 %v863, %v863
        %v880 = vpack.c.b16 %v864, %v864
        %v881 = vpack.c.b16 %v865, %v865
        %v882 = vpack.c.b16 %v866, %v866
        %v883 = vpack.c.b16 %v867, %v867
        %v884 = vpack.c.b16 %v868, %v868
        %v885 = vpack.c.b16 %v869, %v869
        %v886 = vpack.c.b16 %v870, %v870
        %v887 = vpack.c.b16 %v871, %v871
        %v888 = vpack.c.b16 %v872, %v872
        %v889 = vpack.c.b16 %v873, %v873
        %v890 = vpack.c.b16 %v874, %v874
        %v891 = vpack.c.b16 %v875, %v875
        %v892 = vpack.c.b16 %v876, %v876
        %893 = vrot.lane.b32.xlu0 %v877, 32
        %v894 = vpop.permute.xlu0 %893
        %895 = vrot.lane.b32.xlu0 %v878, 32
        %v896 = vpop.permute.xlu0 %895
        %897 = vrot.lane.b32.xlu0 %v879, 32
        %v898 = vpop.permute.xlu0 %897
        %899 = vrot.lane.b32.xlu0 %v880, 32
        %v900 = vpop.permute.xlu0 %899
        %901 = vrot.lane.b32.xlu0 %v881, 32
        %v902 = vpop.permute.xlu0 %901
        %903 = vrot.lane.b32.xlu0 %v882, 32
        %v904 = vpop.permute.xlu0 %903
        %905 = vrot.lane.b32.xlu0 %v883, 32
        %v906 = vpop.permute.xlu0 %905
        %907 = vrot.lane.b32.xlu0 %v884, 32
        %v908 = vpop.permute.xlu0 %907
        %909 = vrot.lane.b32.xlu0 %v885, 32
        %v910 = vpop.permute.xlu0 %909
        %911 = vrot.lane.b32.xlu0 %v886, 32
        %v912 = vpop.permute.xlu0 %911
        %913 = vrot.lane.b32.xlu0 %v887, 32
        %v914 = vpop.permute.xlu0 %913
        %915 = vrot.lane.b32.xlu0 %v888, 32
        %v916 = vpop.permute.xlu0 %915
        %917 = vrot.lane.b32.xlu0 %v889, 32
        %v918 = vpop.permute.xlu0 %917
        %919 = vrot.lane.b32.xlu0 %v890, 32
        %v920 = vpop.permute.xlu0 %919
        %921 = vrot.lane.b32.xlu0 %v891, 32
        %v922 = vpop.permute.xlu0 %921
        %923 = vrot.lane.b32.xlu0 %v892, 32
        %v924 = vpop.permute.xlu0 %923
        %vm925 = vcmask 261120
        %v926 = vsel %vm925, %v894, %v896
        %v927 = vsel %vm925, %v898, %v900
        %v928 = vsel %vm925, %v902, %v904
        %v929 = vsel %vm925, %v906, %v908
        %v930 = vsel %vm925, %v910, %v912
        %v931 = vsel %vm925, %v914, %v916
        %v932 = vsel %vm925, %v918, %v920
        %v933 = vsel %vm925, %v922, %v924
        %v935 = vrot.slane 0, 7
        %v936 = vrot.slane %v926, 7
        %v937 = vrot.slane %v927, 7
        %v938 = vrot.slane %v928, 7
        %v939 = vrot.slane %v929, 7
        %v940 = vrot.slane %v930, 7
        %v941 = vrot.slane %v931, 7
        %v942 = vrot.slane %v932, 7
        %v943 = vrot.slane %v933, 7
        %vm944 = vcmask 1040384
        %v947 = vsel %vm944, 0, %v935
        %v949 = vsel %vm944, 0, %v936
        %v951 = vsel %vm944, 0, %v937
        %v953 = vsel %vm944, 0, %v938
        %v955 = vsel %vm944, 0, %v939
        %v957 = vsel %vm944, 0, %v940
        %v959 = vsel %vm944, 0, %v941
        %v961 = vsel %vm944, 0, %v942
        %v963 = vsel %vm944, 0, %v943
        %vm964 = vcmask 1044480
        %v965 = vsel %vm964, %v947, 0
        %v966 = vsel %vm964, %v949, 0
        %v967 = vsel %vm964, %v951, 0
        %v968 = vsel %vm964, %v953, 0
        %v969 = vsel %vm964, %v955, 0
        %v970 = vsel %vm964, %v957, 0
        %v971 = vsel %vm964, %v959, 0
        %v972 = vsel %vm964, %v961, 0
        %v973 = vsel %vm964, %v963, 0
        %v981 = vunpack.c.l.b16 %v965
        %v982 = vunpack.c.h.b16 %v965
        %v983 = vunpack.c.l.b16 %v966
        %v984 = vunpack.c.h.b16 %v966
        %v985 = vunpack.c.l.b16 %v967
        %v986 = vunpack.c.h.b16 %v967
        %v987 = vunpack.c.l.b16 %v968
        %v988 = vunpack.c.h.b16 %v968
        %v989 = vunpack.c.l.b16 %v969
        %v990 = vunpack.c.h.b16 %v969
        %v991 = vunpack.c.l.b16 %v970
        %v992 = vunpack.c.h.b16 %v970
        %v993 = vunpack.c.l.b16 %v971
        %v994 = vunpack.c.h.b16 %v971
        %v995 = vpack.c.b16 %v981, %v981
        %v996 = vpack.c.b16 %v982, %v982
        %v997 = vpack.c.b16 %v983, %v983
        %v998 = vpack.c.b16 %v984, %v984
        %v999 = vpack.c.b16 %v985, %v985
        %v1000 = vpack.c.b16 %v986, %v986
        %v1001 = vpack.c.b16 %v987, %v987
        %v1002 = vpack.c.b16 %v988, %v988
        %v1003 = vpack.c.b16 %v989, %v989
        %v1004 = vpack.c.b16 %v990, %v990
        %v1005 = vpack.c.b16 %v991, %v991
        %v1006 = vpack.c.b16 %v992, %v992
        %v1007 = vpack.c.b16 %v993, %v993
        %v1008 = vpack.c.b16 %v994, %v994
        %vm1009 = vsmask.f32 3328
        %vm1010 = vsmask.f32 7440
        %vm1011 = vmor %vm1009, %vm1010
        %v1013 = vshrl.u32 %v995, 16
        %v1015 = vrot.slane %v1013, 4
        %v1016 = vshll.u32 %v995, 16
        %v1018 = vrot.slane %v1016, 5
        %v1019 = vor.u32 %v1015, %v1018
        %v1020 = vrot.slane %v1019, 4
        %v1022 = vshll.u32 %v996, 16
        %v1024 = vrot.slane %v1022, 5
        %v1025 = vsel %vm1011, %v1020, %v1024
        %v1027 = vshrl.u32 %v997, 16
        %v1029 = vrot.slane %v1027, 4
        %v1030 = vshll.u32 %v997, 16
        %v1032 = vrot.slane %v1030, 5
        %v1033 = vor.u32 %v1029, %v1032
        %v1034 = vrot.slane %v1033, 4
        %v1036 = vshll.u32 %v998, 16
        %v1038 = vrot.slane %v1036, 5
        %v1039 = vsel %vm1011, %v1034, %v1038
        %v1041 = vshrl.u32 %v999, 16
        %v1043 = vrot.slane %v1041, 4
        %v1044 = vshll.u32 %v999, 16
        %v1046 = vrot.slane %v1044, 5
        %v1047 = vor.u32 %v1043, %v1046
        %v1048 = vrot.slane %v1047, 4
        %v1050 = vshll.u32 %v1000, 16
        %v1052 = vrot.slane %v1050, 5
        %v1053 = vsel %vm1011, %v1048, %v1052
        %v1055 = vshrl.u32 %v1001, 16
        %v1057 = vrot.slane %v1055, 4
        %v1058 = vshll.u32 %v1001, 16
        %v1060 = vrot.slane %v1058, 5
        %v1061 = vor.u32 %v1057, %v1060
        %v1062 = vrot.slane %v1061, 4
        %v1064 = vshll.u32 %v1002, 16
        %v1066 = vrot.slane %v1064, 5
        %v1067 = vsel %vm1011, %v1062, %v1066
        %v1069 = vshrl.u32 %v1003, 16
        %v1071 = vrot.slane %v1069, 4
        %v1072 = vshll.u32 %v1003, 16
        %v1074 = vrot.slane %v1072, 5
        %v1075 = vor.u32 %v1071, %v1074
        %v1076 = vrot.slane %v1075, 4
        %v1078 = vshll.u32 %v1004, 16
        %v1080 = vrot.slane %v1078, 5
        %v1081 = vsel %vm1011, %v1076, %v1080
        %v1083 = vshrl.u32 %v1005, 16
        %v1085 = vrot.slane %v1083, 4
        %v1086 = vshll.u32 %v1005, 16
        %v1088 = vrot.slane %v1086, 5
        %v1089 = vor.u32 %v1085, %v1088
        %v1090 = vrot.slane %v1089, 4
        %v1092 = vshll.u32 %v1006, 16
        %v1094 = vrot.slane %v1092, 5
        %v1095 = vsel %vm1011, %v1090, %v1094
        %v1097 = vshrl.u32 %v1007, 16
        %v1099 = vrot.slane %v1097, 4
        %v1100 = vshll.u32 %v1007, 16
        %v1102 = vrot.slane %v1100, 5
        %v1103 = vor.u32 %v1099, %v1102
        %v1104 = vrot.slane %v1103, 4
        %v1106 = vshll.u32 %v1008, 16
        %v1108 = vrot.slane %v1106, 5
        %v1109 = vsel %vm1011, %v1104, %v1108
        %vm1110 = vcmask 1042432
        %vm1111 = vcmask 1046532
        %vm1112 = vmor %vm1110, %vm1111
        %v1113 = vrot.slane %v995, 5
        %v1114 = vrot.slane %v1113, 4
        %v1115 = vrot.slane %v996, 5
        %v1116 = vsel %vm1112, %v1114, %v1115
        %v1117 = vrot.slane %v997, 5
        %v1118 = vrot.slane %v1117, 4
        %v1119 = vrot.slane %v998, 5
        %v1120 = vsel %vm1112, %v1118, %v1119
        %v1121 = vrot.slane %v999, 5
        %v1122 = vrot.slane %v1121, 4
        %v1123 = vrot.slane %v1000, 5
        %v1124 = vsel %vm1112, %v1122, %v1123
        %v1125 = vrot.slane %v1001, 5
        %v1126 = vrot.slane %v1125, 4
        %v1127 = vrot.slane %v1002, 5
        %v1128 = vsel %vm1112, %v1126, %v1127
        %v1129 = vrot.slane %v1003, 5
        %v1130 = vrot.slane %v1129, 4
        %v1131 = vrot.slane %v1004, 5
        %v1132 = vsel %vm1112, %v1130, %v1131
        %v1133 = vrot.slane %v1005, 5
        %v1134 = vrot.slane %v1133, 4
        %v1135 = vrot.slane %v1006, 5
        %v1136 = vsel %vm1112, %v1134, %v1135
        %v1137 = vrot.slane %v1007, 5
        %v1138 = vrot.slane %v1137, 4
        %v1139 = vrot.slane %v1008, 5
        %v1140 = vsel %vm1112, %v1138, %v1139
        %vm1141 = vsmask.f32 2304
        %vm1142 = vsmask.f32 6416
        %vm1143 = vmor %vm1141, %vm1142
        %v1144 = vrot.slane %v1013, 5
        %v1145 = vrot.slane %v1016, 6
        %v1146 = vor.u32 %v1144, %v1145
        %v1147 = vrot.slane %v1146, 4
        %v1148 = vshrl.u32 %v996, 16
        %v1150 = vrot.slane %v1148, 5
        %v1151 = vrot.slane %v1022, 6
        %v1152 = vor.u32 %v1150, %v1151
        %v1153 = vsel %vm1143, %v1147, %v1152
        %v1154 = vrot.slane %v1027, 5
        %v1155 = vrot.slane %v1030, 6
        %v1156 = vor.u32 %v1154, %v1155
        %v1157 = vrot.slane %v1156, 4
        %v1158 = vshrl.u32 %v998, 16
        %v1160 = vrot.slane %v1158, 5
        %v1161 = vrot.slane %v1036, 6
        %v1162 = vor.u32 %v1160, %v1161
        %v1163 = vsel %vm1143, %v1157, %v1162
        %v1164 = vrot.slane %v1041, 5
        %v1165 = vrot.slane %v1044, 6
        %v1166 = vor.u32 %v1164, %v1165
        %v1167 = vrot.slane %v1166, 4
        %v1168 = vshrl.u32 %v1000, 16
        %v1170 = vrot.slane %v1168, 5
        %v1171 = vrot.slane %v1050, 6
        %v1172 = vor.u32 %v1170, %v1171
        %v1173 = vsel %vm1143, %v1167, %v1172
        %v1174 = vrot.slane %v1055, 5
        %v1175 = vrot.slane %v1058, 6
        %v1176 = vor.u32 %v1174, %v1175
        %v1177 = vrot.slane %v1176, 4
        %v1178 = vshrl.u32 %v1002, 16
        %v1180 = vrot.slane %v1178, 5
        %v1181 = vrot.slane %v1064, 6
        %v1182 = vor.u32 %v1180, %v1181
        %v1183 = vsel %vm1143, %v1177, %v1182
        %v1184 = vrot.slane %v1069, 5
        %v1185 = vrot.slane %v1072, 6
        %v1186 = vor.u32 %v1184, %v1185
        %v1187 = vrot.slane %v1186, 4
        %v1188 = vshrl.u32 %v1004, 16
        %v1190 = vrot.slane %v1188, 5
        %v1191 = vrot.slane %v1078, 6
        %v1192 = vor.u32 %v1190, %v1191
        %v1193 = vsel %vm1143, %v1187, %v1192
        %v1194 = vrot.slane %v1083, 5
        %v1195 = vrot.slane %v1086, 6
        %v1196 = vor.u32 %v1194, %v1195
        %v1197 = vrot.slane %v1196, 4
        %v1198 = vshrl.u32 %v1006, 16
        %v1200 = vrot.slane %v1198, 5
        %v1201 = vrot.slane %v1092, 6
        %v1202 = vor.u32 %v1200, %v1201
        %v1203 = vsel %vm1143, %v1197, %v1202
        %v1204 = vrot.slane %v1097, 5
        %v1205 = vrot.slane %v1100, 6
        %v1206 = vor.u32 %v1204, %v1205
        %v1207 = vrot.slane %v1206, 4
        %v1208 = vshrl.u32 %v1008, 16
        %v1210 = vrot.slane %v1208, 5
        %v1211 = vrot.slane %v1106, 6
        %v1212 = vor.u32 %v1210, %v1211
        %v1213 = vsel %vm1143, %v1207, %v1212
        %vm1214 = vcmask 1041408
        %vm1215 = vcmask 1045508
        %vm1216 = vmor %vm1214, %vm1215
        %v1217 = vrot.slane %v995, 6
        %v1218 = vrot.slane %v1217, 4
        %v1219 = vrot.slane %v996, 6
        %v1220 = vsel %vm1216, %v1218, %v1219
        %v1221 = vrot.slane %v997, 6
        %v1222 = vrot.slane %v1221, 4
        %v1223 = vrot.slane %v998, 6
        %v1224 = vsel %vm1216, %v1222, %v1223
        %v1225 = vrot.slane %v999, 6
        %v1226 = vrot.slane %v1225, 4
        %v1227 = vrot.slane %v1000, 6
        %v1228 = vsel %vm1216, %v1226, %v1227
        %v1229 = vrot.slane %v1001, 6
        %v1230 = vrot.slane %v1229, 4
        %v1231 = vrot.slane %v1002, 6
        %v1232 = vsel %vm1216, %v1230, %v1231
        %v1233 = vrot.slane %v1003, 6
        %v1234 = vrot.slane %v1233, 4
        %v1235 = vrot.slane %v1004, 6
        %v1236 = vsel %vm1216, %v1234, %v1235
        %v1237 = vrot.slane %v1005, 6
        %v1238 = vrot.slane %v1237, 4
        %v1239 = vrot.slane %v1006, 6
        %v1240 = vsel %vm1216, %v1238, %v1239
        %v1241 = vrot.slane %v1007, 6
        %v1242 = vrot.slane %v1241, 4
        %v1243 = vrot.slane %v1008, 6
        %v1244 = vsel %vm1216, %v1242, %v1243
        %v1246 = vunpack.c.l.b16 %v972
        %v1247 = vunpack.c.h.b16 %v972
        %v1248 = vpack.c.b16 %v1246, %v1246
        %v1249 = vpack.c.b16 %v1247, %v1247
        %v1251 = vshrl.u32 %v1248, 16
        %v1253 = vrot.slane %v1251, 4
        %v1254 = vshll.u32 %v1248, 16
        %v1256 = vrot.slane %v1254, 5
        %v1257 = vor.u32 %v1253, %v1256
        %v1258 = vrot.slane %v1257, 4
        %v1260 = vshll.u32 %v1249, 16
        %v1262 = vrot.slane %v1260, 5
        %v1263 = vsel %vm1011, %v1258, %v1262
        %v1264 = vrot.slane %v1248, 5
        %v1265 = vrot.slane %v1264, 4
        %v1266 = vrot.slane %v1249, 5
        %v1267 = vsel %vm1112, %v1265, %v1266
        %v1268 = vrot.slane %v1251, 5
        %v1269 = vrot.slane %v1254, 6
        %v1270 = vor.u32 %v1268, %v1269
        %v1271 = vrot.slane %v1270, 4
        %v1272 = vshrl.u32 %v1249, 16
        %v1274 = vrot.slane %v1272, 5
        %v1275 = vrot.slane %v1260, 6
        %v1276 = vor.u32 %v1274, %v1275
        %v1277 = vsel %vm1143, %v1271, %v1276
        %v1278 = vrot.slane %v1248, 6
        %v1279 = vrot.slane %v1278, 4
        %v1280 = vrot.slane %v1249, 6
        %v1281 = vsel %vm1216, %v1279, %v1280
        %v1283 = vunpack.c.l.b16 %v973
        %v1284 = vunpack.c.h.b16 %v973
        %v1285 = vpack.c.b16 %v1283, %v1283
        %v1286 = vpack.c.b16 %v1284, %v1284
        %v1288 = vshrl.u32 %v1285, 16
        %v1290 = vrot.slane %v1288, 4
        %v1291 = vshll.u32 %v1285, 16
        %v1293 = vrot.slane %v1291, 5
        %v1294 = vor.u32 %v1290, %v1293
        %v1295 = vrot.slane %v1294, 4
        %v1297 = vshll.u32 %v1286, 16
        %v1299 = vrot.slane %v1297, 5
        %v1300 = vsel %vm1011, %v1295, %v1299
        %v1301 = vrot.slane %v1285, 5
        %v1302 = vrot.slane %v1301, 4
        %v1303 = vrot.slane %v1286, 5
        %v1304 = vsel %vm1112, %v1302, %v1303
        %v1305 = vrot.slane %v1288, 5
        %v1306 = vrot.slane %v1291, 6
        %v1307 = vor.u32 %v1305, %v1306
        %v1308 = vrot.slane %v1307, 4
        %v1309 = vshrl.u32 %v1286, 16
        %v1311 = vrot.slane %v1309, 5
        %v1312 = vrot.slane %v1297, 6
        %v1313 = vor.u32 %v1311, %v1312
        %v1314 = vsel %vm1143, %v1308, %v1313
        %v1315 = vrot.slane %v1285, 6
        %v1316 = vrot.slane %v1315, 4
        %v1317 = vrot.slane %v1286, 6
        %v1318 = vsel %vm1216, %v1316, %v1317
        %v1319 = vpack.c.b16 %v985, %v983
        %v1320 = vpack.c.b16 %v989, %v987
        %v1321 = vpack.c.b16 %v993, %v991
        %v1322 = vunpack.c.l.b16 %v1025
        %v1323 = vunpack.c.l.b16 %v1039
        %v1324 = vunpack.c.l.b16 %v1053
        %v1325 = vunpack.c.l.b16 %v1067
        %v1326 = vunpack.c.l.b16 %v1081
        %v1327 = vunpack.c.l.b16 %v1095
        %v1328 = vunpack.c.l.b16 %v1109
        %v1329 = vpack.c.b16 %v1322, %v1322
        %v1330 = vpack.c.b16 %v1324, %v1323
        %v1331 = vpack.c.b16 %v1326, %v1325
        %v1332 = vpack.c.b16 %v1328, %v1327
        %1333 = vrot.lane.b32.xlu0 %v1329, 48
        %v1334 = vpop.permute.xlu0 %1333
        %1335 = vrot.lane.b32.xlu0 %v1330, 48
        %v1336 = vpop.permute.xlu0 %1335
        %1337 = vrot.lane.b32.xlu0 %v1331, 48
        %v1338 = vpop.permute.xlu0 %1337
        %1339 = vrot.lane.b32.xlu0 %v1332, 48
        %v1340 = vpop.permute.xlu0 %1339
        %v1341 = vunpack.c.l.b16 %v1116
        %v1342 = vunpack.c.l.b16 %v1120
        %v1343 = vunpack.c.l.b16 %v1124
        %v1344 = vunpack.c.l.b16 %v1128
        %v1345 = vunpack.c.l.b16 %v1132
        %v1346 = vunpack.c.l.b16 %v1136
        %v1347 = vunpack.c.l.b16 %v1140
        %v1348 = vpack.c.b16 %v1341, %v1341
        %v1349 = vpack.c.b16 %v1343, %v1342
        %v1350 = vpack.c.b16 %v1345, %v1344
        %v1351 = vpack.c.b16 %v1347, %v1346
        %1352 = vrot.lane.b32.xlu0 %v1348, 96
        %v1353 = vpop.permute.xlu0 %1352
        %1354 = vrot.lane.b32.xlu0 %v1349, 96
        %v1355 = vpop.permute.xlu0 %1354
        %1356 = vrot.lane.b32.xlu0 %v1350, 96
        %v1357 = vpop.permute.xlu0 %1356
        %1358 = vrot.lane.b32.xlu0 %v1351, 96
        %v1359 = vpop.permute.xlu0 %1358
        %v1360 = vunpack.c.l.b16 %v1153
        %v1361 = vunpack.c.l.b16 %v1163
        %v1362 = vunpack.c.l.b16 %v1173
        %v1363 = vunpack.c.l.b16 %v1183
        %v1364 = vunpack.c.l.b16 %v1193
        %v1365 = vunpack.c.l.b16 %v1203
        %v1366 = vunpack.c.l.b16 %v1213
        %v1367 = vpack.c.b16 %v1360, %v1360
        %v1368 = vpack.c.b16 %v1362, %v1361
        %v1369 = vpack.c.b16 %v1364, %v1363
        %v1370 = vpack.c.b16 %v1366, %v1365
        %1371 = vrot.lane.b32.xlu0 %v1367, 16
        %v1372 = vpop.permute.xlu0 %1371
        %1373 = vrot.lane.b32.xlu0 %v1368, 16
        %v1374 = vpop.permute.xlu0 %1373
        %1375 = vrot.lane.b32.xlu0 %v1369, 16
        %v1376 = vpop.permute.xlu0 %1375
        %1377 = vrot.lane.b32.xlu0 %v1370, 16
        %v1378 = vpop.permute.xlu0 %1377
        %v1379 = vunpack.c.l.b16 %v1220
        %v1380 = vunpack.c.l.b16 %v1224
        %v1381 = vunpack.c.l.b16 %v1228
        %v1382 = vunpack.c.l.b16 %v1232
        %v1383 = vunpack.c.l.b16 %v1236
        %v1384 = vunpack.c.l.b16 %v1240
        %v1385 = vunpack.c.l.b16 %v1244
        %v1386 = vpack.c.b16 %v1379, %v1379
        %v1387 = vpack.c.b16 %v1381, %v1380
        %v1388 = vpack.c.b16 %v1383, %v1382
        %v1389 = vpack.c.b16 %v1385, %v1384
        %1390 = vrot.lane.b32.xlu0 %v1386, 64
        %v1391 = vpop.permute.xlu0 %1390
        %1392 = vrot.lane.b32.xlu0 %v1387, 64
        %v1393 = vpop.permute.xlu0 %1392
        %1394 = vrot.lane.b32.xlu0 %v1388, 64
        %v1395 = vpop.permute.xlu0 %1394
        %1396 = vrot.lane.b32.xlu0 %v1389, 64
        %v1397 = vpop.permute.xlu0 %1396
        %v1398 = vpack.c.b16 %v983, %v981
        %v1399 = vpack.c.b16 %v987, %v985
        %v1400 = vpack.c.b16 %v991, %v989
        %v1401 = vpack.c.b16 %v1246, %v993
        %1402 = vrot.lane.b32.xlu0 %v1398, 112
        %v1403 = vpop.permute.xlu0 %1402
        %1404 = vrot.lane.b32.xlu0 %v1399, 112
        %v1405 = vpop.permute.xlu0 %1404
        %1406 = vrot.lane.b32.xlu0 %v1400, 112
        %v1407 = vpop.permute.xlu0 %1406
        %1408 = vrot.lane.b32.xlu0 %v1401, 112
        %v1409 = vpop.permute.xlu0 %1408
        %v1410 = vunpack.c.l.b16 %v1263
        %v1411 = vpack.c.b16 %v1323, %v1322
        %v1412 = vpack.c.b16 %v1325, %v1324
        %v1413 = vpack.c.b16 %v1327, %v1326
        %v1414 = vpack.c.b16 %v1410, %v1328
        %1415 = vrot.lane.b32.xlu0 %v1411, 32
        %v1416 = vpop.permute.xlu0 %1415
        %1417 = vrot.lane.b32.xlu0 %v1412, 32
        %v1418 = vpop.permute.xlu0 %1417
        %1419 = vrot.lane.b32.xlu0 %v1413, 32
        %v1420 = vpop.permute.xlu0 %1419
        %1421 = vrot.lane.b32.xlu0 %v1414, 32
        %v1422 = vpop.permute.xlu0 %1421
        %v1423 = vunpack.c.l.b16 %v1267
        %v1424 = vpack.c.b16 %v1342, %v1341
        %v1425 = vpack.c.b16 %v1344, %v1343
        %v1426 = vpack.c.b16 %v1346, %v1345
        %v1427 = vpack.c.b16 %v1423, %v1347
        %1428 = vrot.lane.b32.xlu0 %v1424, 80
        %v1429 = vpop.permute.xlu0 %1428
        %1430 = vrot.lane.b32.xlu0 %v1425, 80
        %v1431 = vpop.permute.xlu0 %1430
        %1432 = vrot.lane.b32.xlu0 %v1426, 80
        %v1433 = vpop.permute.xlu0 %1432
        %1434 = vrot.lane.b32.xlu0 %v1427, 80
        %v1435 = vpop.permute.xlu0 %1434
        %v1436 = vunpack.c.l.b16 %v1277
        %v1437 = vpack.c.b16 %v1361, %v1360
        %v1438 = vpack.c.b16 %v1363, %v1362
        %v1439 = vpack.c.b16 %v1365, %v1364
        %v1440 = vpack.c.b16 %v1436, %v1366
        %v1441 = vunpack.c.l.b16 %v1281
        %v1442 = vpack.c.b16 %v1380, %v1379
        %v1443 = vpack.c.b16 %v1382, %v1381
        %v1444 = vpack.c.b16 %v1384, %v1383
        %v1445 = vpack.c.b16 %v1441, %v1385
        %1446 = vrot.lane.b32.xlu0 %v1442, 48
        %v1447 = vpop.permute.xlu0 %1446
        %1448 = vrot.lane.b32.xlu0 %v1443, 48
        %v1449 = vpop.permute.xlu0 %1448
        %1450 = vrot.lane.b32.xlu0 %v1444, 48
        %v1451 = vpop.permute.xlu0 %1450
        %1452 = vrot.lane.b32.xlu0 %v1445, 48
        %v1453 = vpop.permute.xlu0 %1452
        %v1454 = vpack.c.b16 %v1283, %v1246
        %1455 = vrot.lane.b32.xlu0 %v1319, 96
        %v1456 = vpop.permute.xlu0 %1455
        %1457 = vrot.lane.b32.xlu0 %v1320, 96
        %v1458 = vpop.permute.xlu0 %1457
        %1459 = vrot.lane.b32.xlu0 %v1321, 96
        %v1460 = vpop.permute.xlu0 %1459
        %1461 = vrot.lane.b32.xlu0 %v1454, 96
        %v1462 = vpop.permute.xlu0 %1461
        %v1463 = vunpack.c.l.b16 %v1300
        %v1464 = vpack.c.b16 %v1463, %v1410
        %1465 = vrot.lane.b32.xlu0 %v1330, 16
        %v1466 = vpop.permute.xlu0 %1465
        %1467 = vrot.lane.b32.xlu0 %v1331, 16
        %v1468 = vpop.permute.xlu0 %1467
        %1469 = vrot.lane.b32.xlu0 %v1332, 16
        %v1470 = vpop.permute.xlu0 %1469
        %1471 = vrot.lane.b32.xlu0 %v1464, 16
        %v1472 = vpop.permute.xlu0 %1471
        %v1473 = vunpack.c.l.b16 %v1304
        %v1474 = vpack.c.b16 %v1473, %v1423
        %1475 = vrot.lane.b32.xlu0 %v1349, 64
        %v1476 = vpop.permute.xlu0 %1475
        %1477 = vrot.lane.b32.xlu0 %v1350, 64
        %v1478 = vpop.permute.xlu0 %1477
        %1479 = vrot.lane.b32.xlu0 %v1351, 64
        %v1480 = vpop.permute.xlu0 %1479
        %1481 = vrot.lane.b32.xlu0 %v1474, 64
        %v1482 = vpop.permute.xlu0 %1481
        %v1483 = vunpack.c.l.b16 %v1314
        %v1484 = vpack.c.b16 %v1483, %v1436
        %1485 = vrot.lane.b32.xlu0 %v1368, 112
        %v1486 = vpop.permute.xlu0 %1485
        %1487 = vrot.lane.b32.xlu0 %v1369, 112
        %v1488 = vpop.permute.xlu0 %1487
        %1489 = vrot.lane.b32.xlu0 %v1370, 112
        %v1490 = vpop.permute.xlu0 %1489
        %1491 = vrot.lane.b32.xlu0 %v1484, 112
        %v1492 = vpop.permute.xlu0 %1491
        %v1493 = vunpack.c.l.b16 %v1318
        %v1494 = vpack.c.b16 %v1493, %v1441
        %1495 = vrot.lane.b32.xlu0 %v1387, 32
        %v1496 = vpop.permute.xlu0 %1495
        %1497 = vrot.lane.b32.xlu0 %v1388, 32
        %v1498 = vpop.permute.xlu0 %1497
        %1499 = vrot.lane.b32.xlu0 %v1389, 32
        %v1500 = vpop.permute.xlu0 %1499
        %1501 = vrot.lane.b32.xlu0 %v1494, 32
        %v1502 = vpop.permute.xlu0 %1501
        %v1503 = vpack.c.b16 %v981, %v1283
        %1504 = vrot.lane.b32.xlu0 %v1399, 80
        %v1505 = vpop.permute.xlu0 %1504
        %1506 = vrot.lane.b32.xlu0 %v1400, 80
        %v1507 = vpop.permute.xlu0 %1506
        %1508 = vrot.lane.b32.xlu0 %v1401, 80
        %v1509 = vpop.permute.xlu0 %1508
        %1510 = vrot.lane.b32.xlu0 %v1503, 80
        %v1511 = vpop.permute.xlu0 %1510
        %vm1512 = vcmask 392192
        %v1514 = vsel %vm1512, %v995, %v1334
        %v1517 = vsel %vm1512, %v1319, %v1336
        %v1520 = vsel %vm1512, %v1320, %v1338
        %v1523 = vsel %vm1512, %v1321, %v1340
        %vm1524 = vcmask 785408
        %v1526 = vsel %vm1524, %v1514, %v1353
        %v1529 = vsel %vm1524, %v1517, %v1355
        %v1532 = vsel %vm1524, %v1520, %v1357
        %v1535 = vsel %vm1524, %v1523, %v1359
        %vm1537 = vcmask 130048
        %v1539 = vsel %vm1537, %v1353, %v1372
        %v1541 = vsel %vm1537, %v1355, %v1374
        %v1543 = vsel %vm1537, %v1357, %v1376
        %v1545 = vsel %vm1537, %v1359, %v1378
        %v1547 = vsel %vm650, %v1539, %v1391
        %v1549 = vsel %vm650, %v1541, %v1393
        %v1551 = vsel %vm650, %v1543, %v1395
        %v1553 = vsel %vm650, %v1545, %v1397
        %vm1554 = vcmask 916480
        %v1556 = vsel %vm1554, %v1547, %v1403
        %v1559 = vsel %vm1554, %v1549, %v1405
        %v1562 = vsel %vm1554, %v1551, %v1407
        %v1565 = vsel %vm1554, %v1553, %v1409
        %vm1567 = vcmask 261120
        %v1569 = vsel %vm1567, %v1403, %v1416
        %v1571 = vsel %vm1567, %v1405, %v1418
        %v1573 = vsel %vm1567, %v1407, %v1420
        %v1575 = vsel %vm1567, %v1409, %v1422
        %vm1576 = vcmask 654336
        %v1578 = vsel %vm1576, %v1569, %v1429
        %v1581 = vsel %vm1576, %v1571, %v1431
        %v1584 = vsel %vm1576, %v1573, %v1433
        %v1587 = vsel %vm1576, %v1575, %v1435
        %v1591 = vsel %vm1512, %v1437, %v1447
        %v1594 = vsel %vm1512, %v1438, %v1449
        %v1597 = vsel %vm1512, %v1439, %v1451
        %v1600 = vsel %vm1512, %v1440, %v1453
        %v1602 = vsel %vm1524, %v1591, %v1456
        %v1605 = vsel %vm1524, %v1594, %v1458
        %v1608 = vsel %vm1524, %v1597, %v1460
        %v1611 = vsel %vm1524, %v1600, %v1462
        %v1614 = vsel %vm1537, %v1456, %v1466
        %v1616 = vsel %vm1537, %v1458, %v1468
        %v1618 = vsel %vm1537, %v1460, %v1470
        %v1620 = vsel %vm1537, %v1462, %v1472
        %v1622 = vsel %vm650, %v1614, %v1476
        %v1624 = vsel %vm650, %v1616, %v1478
        %v1626 = vsel %vm650, %v1618, %v1480
        %v1628 = vsel %vm650, %v1620, %v1482
        %v1630 = vsel %vm1554, %v1622, %v1486
        %v1633 = vsel %vm1554, %v1624, %v1488
        %v1636 = vsel %vm1554, %v1626, %v1490
        %v1639 = vsel %vm1554, %v1628, %v1492
        %v1642 = vsel %vm1567, %v1486, %v1496
        %v1644 = vsel %vm1567, %v1488, %v1498
        %v1646 = vsel %vm1567, %v1490, %v1500
        %v1648 = vsel %vm1567, %v1492, %v1502
        %v1650 = vsel %vm1576, %v1642, %v1505
        %v1653 = vsel %vm1576, %v1644, %v1507
        %v1656 = vsel %vm1576, %v1646, %v1509
        %v1659 = vsel %vm1576, %v1648, %v1511
        %v1661 = vpack.c.b16 %v1322, %v1463
        %v1662 = vpack.c.b16 %v1341, %v1473
        %1663 = vrot.lane.b32.xlu0 %v1425, 48
        %v1664 = vpop.permute.xlu0 %1663
        %1665 = vrot.lane.b32.xlu0 %v1426, 48
        %v1666 = vpop.permute.xlu0 %1665
        %1667 = vrot.lane.b32.xlu0 %v1427, 48
        %v1668 = vpop.permute.xlu0 %1667
        %1669 = vrot.lane.b32.xlu0 %v1662, 48
        %v1670 = vpop.permute.xlu0 %1669
        %v1671 = vpack.c.b16 %v1360, %v1483
        %1672 = vrot.lane.b32.xlu0 %v1438, 96
        %v1673 = vpop.permute.xlu0 %1672
        %1674 = vrot.lane.b32.xlu0 %v1439, 96
        %v1675 = vpop.permute.xlu0 %1674
        %1676 = vrot.lane.b32.xlu0 %v1440, 96
        %v1677 = vpop.permute.xlu0 %1676
        %1678 = vrot.lane.b32.xlu0 %v1671, 96
        %v1679 = vpop.permute.xlu0 %1678
        %v1680 = vpack.c.b16 %v1379, %v1493
        %1681 = vrot.lane.b32.xlu0 %v1443, 16
        %v1682 = vpop.permute.xlu0 %1681
        %1683 = vrot.lane.b32.xlu0 %v1444, 16
        %v1684 = vpop.permute.xlu0 %1683
        %1685 = vrot.lane.b32.xlu0 %v1445, 16
        %v1686 = vpop.permute.xlu0 %1685
        %1687 = vrot.lane.b32.xlu0 %v1680, 16
        %v1688 = vpop.permute.xlu0 %1687
        %1689 = vrot.lane.b32.xlu0 %v1320, 64
        %v1690 = vpop.permute.xlu0 %1689
        %1691 = vrot.lane.b32.xlu0 %v1321, 64
        %v1692 = vpop.permute.xlu0 %1691
        %1693 = vrot.lane.b32.xlu0 %v1454, 64
        %v1694 = vpop.permute.xlu0 %1693
        %1695 = vrot.lane.b32.xlu0 %v995, 64
        %v1696 = vpop.permute.xlu0 %1695
        %1697 = vrot.lane.b32.xlu0 %v1331, 112
        %v1698 = vpop.permute.xlu0 %1697
        %1699 = vrot.lane.b32.xlu0 %v1332, 112
        %v1700 = vpop.permute.xlu0 %1699
        %1701 = vrot.lane.b32.xlu0 %v1464, 112
        %v1702 = vpop.permute.xlu0 %1701
        %1703 = vrot.lane.b32.xlu0 %v1329, 112
        %v1704 = vpop.permute.xlu0 %1703
        %1705 = vrot.lane.b32.xlu0 %v1350, 32
        %v1706 = vpop.permute.xlu0 %1705
        %1707 = vrot.lane.b32.xlu0 %v1351, 32
        %v1708 = vpop.permute.xlu0 %1707
        %1709 = vrot.lane.b32.xlu0 %v1474, 32
        %v1710 = vpop.permute.xlu0 %1709
        %1711 = vrot.lane.b32.xlu0 %v1348, 32
        %v1712 = vpop.permute.xlu0 %1711
        %1713 = vrot.lane.b32.xlu0 %v1369, 80
        %v1714 = vpop.permute.xlu0 %1713
        %1715 = vrot.lane.b32.xlu0 %v1370, 80
        %v1716 = vpop.permute.xlu0 %1715
        %1717 = vrot.lane.b32.xlu0 %v1484, 80
        %v1718 = vpop.permute.xlu0 %1717
        %1719 = vrot.lane.b32.xlu0 %v1367, 80
        %v1720 = vpop.permute.xlu0 %1719
        %v1723 = vsel %vm1512, %v1412, %v1664
        %v1726 = vsel %vm1512, %v1413, %v1666
        %v1729 = vsel %vm1512, %v1414, %v1668
        %v1732 = vsel %vm1512, %v1661, %v1670
        %v1734 = vsel %vm1524, %v1723, %v1673
        %v1737 = vsel %vm1524, %v1726, %v1675
        %v1740 = vsel %vm1524, %v1729, %v1677
        %v1743 = vsel %vm1524, %v1732, %v1679
        %v1746 = vsel %vm1537, %v1673, %v1682
        %v1748 = vsel %vm1537, %v1675, %v1684
        %v1750 = vsel %vm1537, %v1677, %v1686
        %v1752 = vsel %vm1537, %v1679, %v1688
        %v1754 = vsel %vm650, %v1746, %v1690
        %v1756 = vsel %vm650, %v1748, %v1692
        %v1758 = vsel %vm650, %v1750, %v1694
        %v1760 = vsel %vm650, %v1752, %v1696
        %v1762 = vsel %vm1554, %v1754, %v1698
        %v1765 = vsel %vm1554, %v1756, %v1700
        %v1768 = vsel %vm1554, %v1758, %v1702
        %v1771 = vsel %vm1554, %v1760, %v1704
        %v1774 = vsel %vm1567, %v1698, %v1706
        %v1776 = vsel %vm1567, %v1700, %v1708
        %v1778 = vsel %vm1567, %v1702, %v1710
        %v1780 = vsel %vm1567, %v1704, %v1712
        %v1782 = vsel %vm1576, %v1774, %v1714
        %v1785 = vsel %vm1576, %v1776, %v1716
        %v1788 = vsel %vm1576, %v1778, %v1718
        %v1791 = vsel %vm1576, %v1780, %v1720
        %v1793 = vld [vmem:[%s4] sm:$0xf]
        %v1794 = vld [vmem:[%s4 + $0x4] sm:$0xf]
        %v1795 = vld [vmem:[%s4 + $0x8] sm:$0xf]
        %v1796 = vld [vmem:[%s4 + $0xc] sm:$0xf]
        %v1797 = vld [vmem:[%s4 + $0x10] sm:$0xf]
        %v1798 = vld [vmem:[%s4 + $0x14] sm:$0xf]
        %v1799 = vld [vmem:[%s4 + $0x18] sm:$0xf]
        %v1800 = vld [vmem:[%s4 + $0x1c] sm:$0xf]
        %v1801 = vld [vmem:[%s4 + $0x20] sm:$0xf]
        %v1802 = vld [vmem:[%s4 + $0x24] sm:$0xf]
        %v1803 = vld [vmem:[%s4 + $0x28] sm:$0xf]
        %v1804 = vld [vmem:[%s4 + $0x2c] sm:$0xf]
        %v1805 = vld [vmem:[%s4 + $0x30] sm:$0xf]
        %v1806 = vld [vmem:[%s4 + $0x34] sm:$0xf]
        %v1807 = vld [vmem:[%s4 + $0x38] sm:$0xf]
        %v1808 = vld [vmem:[%s4 + $0x3c] sm:$0xf]
        %v1809 = vld [vmem:[%s4 + $0x40] sm:$0xf]
        %v1810 = vld [vmem:[%s4 + $0x44] sm:$0xf]
        %v1811 = vld [vmem:[%s4 + $0x48] sm:$0xf]
        %v1812 = vld [vmem:[%s4 + $0x4c] sm:$0xf]
        %v1813 = vld [vmem:[%s4 + $0x50] sm:$0xf]
        %v1814 = vld [vmem:[%s4 + $0x54] sm:$0xf]
        %v1815 = vld [vmem:[%s4 + $0x58] sm:$0xf]
        %v1816 = vld [vmem:[%s4 + $0x5c] sm:$0xf]
        %v1817 = vld [vmem:[%s4 + $0x60] sm:$0xf]
        %v1818 = vld [vmem:[%s4 + $0x64] sm:$0xf]
        %v1819 = vld [vmem:[%s4 + $0x68] sm:$0xf]
        %v1820 = vld [vmem:[%s4 + $0x6c] sm:$0xf]
        %v1821 = vld [vmem:[%s4 + $0x70] sm:$0xf]
        %v1822 = vld [vmem:[%s4 + $0x74] sm:$0xf]
        %v1823 = vld [vmem:[%s4 + $0x78] sm:$0xf]
        %v1824 = vld [vmem:[%s4 + $0x7c] sm:$0xf]
        %v1825 = vld [vmem:[%s4 + $0x80] sm:$0xf]
        %v1826 = vld [vmem:[%s4 + $0x84] sm:$0xf]
        %v1827 = vld [vmem:[%s4 + $0x88] sm:$0xf]
        %v1828 = vld [vmem:[%s4 + $0x8c] sm:$0xf]
        %v1829 = vld [vmem:[%s4 + $0x90] sm:$0xf]
        %v1830 = vld [vmem:[%s4 + $0x94] sm:$0xf]
        %v1831 = vld [vmem:[%s4 + $0x98] sm:$0xf]
        %v1832 = vld [vmem:[%s4 + $0x9c] sm:$0xf]
        %v1833 = vld [vmem:[%s4 + $0xa0] sm:$0xf]
        %v1834 = vld [vmem:[%s4 + $0xa4] sm:$0xf]
        %v1835 = vld [vmem:[%s4 + $0xa8] sm:$0xf]
        %v1836 = vld [vmem:[%s4 + $0xac] sm:$0xf]
        %v1837 = vld [vmem:[%s4 + $0xb0] sm:$0xf]
        %v1838 = vld [vmem:[%s4 + $0xb4] sm:$0xf]
        %v1839 = vld [vmem:[%s4 + $0xb8] sm:$0xf]
        %v1840 = vld [vmem:[%s4 + $0xbc] sm:$0xf]
        %v1841 = vld [vmem:[%s4 + $0xc0] sm:$0xf]
        %v1842 = vld [vmem:[%s4 + $0xc4] sm:$0xf]
        %v1843 = vld [vmem:[%s4 + $0xc8] sm:$0xf]
        %v1844 = vld [vmem:[%s4 + $0xcc] sm:$0xf]
        %v1845 = vld [vmem:[%s4 + $0xd0] sm:$0xf]
        %v1846 = vld [vmem:[%s4 + $0xd4] sm:$0xf]
        %v1847 = vld [vmem:[%s4 + $0xd8] sm:$0xf]
        %v1848 = vld [vmem:[%s4 + $0xdc] sm:$0xf]
        %v1849 = vld [vmem:[%s4 + $0xe0] sm:$0xf]
        %v1850 = vld [vmem:[%s4 + $0xe4] sm:$0xf]
        %v1851 = vld [vmem:[%s4 + $0xe8] sm:$0xf]
        %v1852 = vld [vmem:[%s4 + $0xec] sm:$0xf]
        %v1853 = vld [vmem:[%s4 + $0xf0] sm:$0xf]
        %v1854 = vld [vmem:[%s4 + $0xf4] sm:$0xf]
        %v1855 = vld [vmem:[%s4 + $0xf8] sm:$0xf]
        %v1856 = vld [vmem:[%s4 + $0xfc] sm:$0xf]
        %v1857 = vld [vmem:[%s4 + $0x100] sm:$0xf]
        %v1858 = vld [vmem:[%s4 + $0x104] sm:$0xf]
        %v1859 = vld [vmem:[%s4 + $0x108] sm:$0xf]
        %v1860 = vld [vmem:[%s4 + $0x10c] sm:$0xf]
        %v1861 = vld [vmem:[%s4 + $0x110] sm:$0xf]
        %v1862 = vld [vmem:[%s4 + $0x114] sm:$0xf]
        %v1863 = vld [vmem:[%s4 + $0x118] sm:$0xf]
        %v1864 = vld [vmem:[%s4 + $0x11c] sm:$0xf]
        %v1865 = vld [vmem:[%s4 + $0x120] sm:$0xf]
        %v1866 = vld [vmem:[%s4 + $0x124] sm:$0xf]
        %v1867 = vld [vmem:[%s4 + $0x128] sm:$0xf]
        %v1868 = vld [vmem:[%s4 + $0x12c] sm:$0xf]
        %v1869 = vld [vmem:[%s4 + $0x130] sm:$0xf]
        %v1870 = vld [vmem:[%s4 + $0x134] sm:$0xf]
        %v1871 = vld [vmem:[%s4 + $0x138] sm:$0xf]
        %v1872 = vld [vmem:[%s4 + $0x13c] sm:$0xf]
        %v1873 = vld [vmem:[%s4 + $0x140] sm:$0xf]
        %v1874 = vld [vmem:[%s4 + $0x144] sm:$0xf]
        %v1875 = vld [vmem:[%s4 + $0x148] sm:$0xf]
        %v1876 = vld [vmem:[%s4 + $0x14c] sm:$0xf]
        %v1877 = vld [vmem:[%s4 + $0x150] sm:$0xf]
        %v1878 = vld [vmem:[%s4 + $0x154] sm:$0xf]
        %v1879 = vld [vmem:[%s4 + $0x158] sm:$0xf]
        %v1880 = vld [vmem:[%s4 + $0x15c] sm:$0xf]
        %v1881 = vld [vmem:[%s4 + $0x160] sm:$0xf]
        %v1882 = vld [vmem:[%s4 + $0x164] sm:$0xf]
        %v1883 = vld [vmem:[%s4 + $0x168] sm:$0xf]
        %v1884 = vld [vmem:[%s4 + $0x16c] sm:$0xf]
        %v1885 = vld [vmem:[%s4 + $0x170] sm:$0xf]
        %v1886 = vld [vmem:[%s4 + $0x174] sm:$0xf]
        %v1887 = vld [vmem:[%s4 + $0x178] sm:$0xf]
        %v1888 = vld [vmem:[%s4 + $0x17c] sm:$0xf]
        %v1889 = vld [vmem:[%s4 + $0x180] sm:$0xf]
        %v1890 = vld [vmem:[%s4 + $0x184] sm:$0xf]
        %v1891 = vld [vmem:[%s4 + $0x188] sm:$0xf]
        %v1892 = vld [vmem:[%s4 + $0x18c] sm:$0xf]
        %v1893 = vld [vmem:[%s4 + $0x190] sm:$0xf]
        %v1894 = vld [vmem:[%s4 + $0x194] sm:$0xf]
        %v1895 = vld [vmem:[%s4 + $0x198] sm:$0xf]
        %v1896 = vld [vmem:[%s4 + $0x19c] sm:$0xf]
        %v1897 = vld [vmem:[%s4 + $0x1a0] sm:$0xf]
        %v1898 = vld [vmem:[%s4 + $0x1a4] sm:$0xf]
        %v1899 = vld [vmem:[%s4 + $0x1a8] sm:$0xf]
        %v1900 = vld [vmem:[%s4 + $0x1ac] sm:$0xf]
        %v1901 = vld [vmem:[%s4 + $0x1b0] sm:$0xf]
        %v1902 = vld [vmem:[%s4 + $0x1b4] sm:$0xf]
        %v1903 = vld [vmem:[%s4 + $0x1b8] sm:$0xf]
        %v1904 = vld [vmem:[%s4 + $0x1bc] sm:$0xf]
        %v1905 = vld [vmem:[%s4 + $0x1c0] sm:$0xf]
        %v1906 = vld [vmem:[%s4 + $0x1c4] sm:$0xf]
        %v1907 = vld [vmem:[%s4 + $0x1c8] sm:$0xf]
        %v1908 = vld [vmem:[%s4 + $0x1cc] sm:$0xf]
        %v1909 = vld [vmem:[%s4 + $0x1d0] sm:$0xf]
        %v1910 = vld [vmem:[%s4 + $0x1d4] sm:$0xf]
        %v1911 = vld [vmem:[%s4 + $0x1d8] sm:$0xf]
        %v1912 = vld [vmem:[%s4 + $0x1dc] sm:$0xf]
        %v1913 = vld [vmem:[%s4 + $0x1e0] sm:$0xf]
        %v1914 = vld [vmem:[%s4 + $0x1e4] sm:$0xf]
        %v1915 = vld [vmem:[%s4 + $0x1e8] sm:$0xf]
        %v1916 = vld [vmem:[%s4 + $0x1ec] sm:$0xf]
        %v1917 = vld [vmem:[%s4 + $0x1f0] sm:$0xf]
        %v1918 = vld [vmem:[%s4 + $0x1f4] sm:$0xf]
        %v1919 = vld [vmem:[%s4 + $0x1f8] sm:$0xf]
        %v1920 = vld [vmem:[%s4 + $0x1fc] sm:$0xf]
        %v1921 = vld [vmem:[%s4 + $0x200] sm:$0xf]
        %v1922 = vld [vmem:[%s4 + $0x204] sm:$0xf]
        %v1923 = vld [vmem:[%s4 + $0x208] sm:$0xf]
        %v1924 = vld [vmem:[%s4 + $0x20c] sm:$0xf]
        %v1925 = vld [vmem:[%s4 + $0x210] sm:$0xf]
        %v1926 = vld [vmem:[%s4 + $0x214] sm:$0xf]
        %v1927 = vld [vmem:[%s4 + $0x218] sm:$0xf]
        %v1928 = vld [vmem:[%s4 + $0x21c] sm:$0xf]
        %v1929 = vld [vmem:[%s4 + $0x220] sm:$0xf]
        %v1930 = vld [vmem:[%s4 + $0x224] sm:$0xf]
        %v1931 = vld [vmem:[%s4 + $0x228] sm:$0xf]
        %v1932 = vld [vmem:[%s4 + $0x22c] sm:$0xf]
        %v1933 = vld [vmem:[%s4 + $0x230] sm:$0xf]
        %v1934 = vld [vmem:[%s4 + $0x234] sm:$0xf]
        %v1935 = vld [vmem:[%s4 + $0x238] sm:$0xf]
        %v1936 = vld [vmem:[%s4 + $0x23c] sm:$0xf]
        %v1937 = vld [vmem:[%s4 + $0x240] sm:$0xf]
        %v1938 = vld [vmem:[%s4 + $0x244] sm:$0xf]
        %v1939 = vld [vmem:[%s4 + $0x248] sm:$0xf]
        %v1940 = vld [vmem:[%s4 + $0x24c] sm:$0xf]
        %v1941 = vld [vmem:[%s4 + $0x250] sm:$0xf]
        %v1942 = vld [vmem:[%s4 + $0x254] sm:$0xf]
        %v1943 = vld [vmem:[%s5] sm:$0x1]
        %v1945 = vlaneseq
        %v1946 = vshrl.u32 %v1945, 7
        %v1947 = vsub.s32 0, %v1946
        %v1948 = vrot.slane %v1943, %v1947
        %v2100 = vunpack.c.l.b16 %v1793
        %v2101 = vunpack.c.l.b16 %v1794
        %v2102 = vunpack.c.l.b16 %v1795
        %v2103 = vunpack.c.l.b16 %v1796
        %v2104 = vunpack.c.l.b16 %v1797
        %v2105 = vunpack.c.l.b16 %v1798
        %v2106 = vunpack.c.l.b16 %v1799
        %v2107 = vunpack.c.l.b16 %v1800
        %v2108 = vunpack.c.l.b16 %v1801
        %v2109 = vunpack.c.l.b16 %v1802
        %v2110 = vunpack.c.l.b16 %v1803
        %v2111 = vunpack.c.l.b16 %v1804
        %v2112 = vunpack.c.l.b16 %v1805
        %v2113 = vunpack.c.l.b16 %v1806
        %v2114 = vunpack.c.l.b16 %v1807
        %v2115 = vunpack.c.l.b16 %v1808
        %v2116 = vunpack.c.l.b16 %v1809
        %v2117 = vunpack.c.l.b16 %v1810
        %v2118 = vunpack.c.l.b16 %v1811
        %v2119 = vunpack.c.l.b16 %v1812
        %v2120 = vunpack.c.l.b16 %v1813
        %v2121 = vunpack.c.l.b16 %v1814
        %v2122 = vunpack.c.l.b16 %v1815
        %v2123 = vunpack.c.l.b16 %v1816
        %v2124 = vunpack.c.l.b16 %v1817
        %v2125 = vunpack.c.l.b16 %v1818
        %v2126 = vunpack.c.l.b16 %v1819
        %v2127 = vunpack.c.l.b16 %v1820
        %v2128 = vunpack.c.l.b16 %v1821
        %v2129 = vunpack.c.l.b16 %v1822
        %v2130 = vunpack.c.l.b16 %v1823
        %v2131 = vunpack.c.l.b16 %v1824
        %v2132 = vunpack.c.l.b16 %v1825
        %v2133 = vunpack.c.l.b16 %v1826
        %v2134 = vunpack.c.l.b16 %v1827
        %v2135 = vunpack.c.l.b16 %v1828
        %v2136 = vunpack.c.l.b16 %v1829
        %v2137 = vunpack.c.l.b16 %v1830
        %v2138 = vunpack.c.l.b16 %v1831
        %v2139 = vunpack.c.l.b16 %v1832
        %v2140 = vunpack.c.l.b16 %v1833
        %v2141 = vunpack.c.l.b16 %v1834
        %v2142 = vunpack.c.l.b16 %v1835
        %v2143 = vunpack.c.l.b16 %v1836
        %v2144 = vunpack.c.l.b16 %v1837
        %v2145 = vunpack.c.l.b16 %v1838
        %v2146 = vunpack.c.l.b16 %v1839
        %v2147 = vunpack.c.l.b16 %v1840
        %v2148 = vunpack.c.l.b16 %v1841
        %v2149 = vunpack.c.l.b16 %v1842
        %v2150 = vunpack.c.l.b16 %v1843
        %v2151 = vunpack.c.l.b16 %v1844
        %v2152 = vunpack.c.l.b16 %v1845
        %v2153 = vunpack.c.l.b16 %v1846
        %v2154 = vunpack.c.l.b16 %v1847
        %v2155 = vunpack.c.l.b16 %v1848
        %v2156 = vunpack.c.l.b16 %v1849
        %v2157 = vunpack.c.l.b16 %v1850
        %v2158 = vunpack.c.l.b16 %v1851
        %v2159 = vunpack.c.l.b16 %v1852
        %v2160 = vunpack.c.l.b16 %v1853
        %v2161 = vunpack.c.l.b16 %v1854
        %v2162 = vunpack.c.l.b16 %v1855
        %v2163 = vunpack.c.l.b16 %v1856
        %v2164 = vunpack.c.l.b16 %v1857
        %v2165 = vunpack.c.l.b16 %v1858
        %v2166 = vunpack.c.l.b16 %v1859
        %v2167 = vunpack.c.l.b16 %v1860
        %v2168 = vunpack.c.l.b16 %v1861
        %v2169 = vunpack.c.l.b16 %v1862
        %v2170 = vunpack.c.l.b16 %v1863
        %v2171 = vunpack.c.l.b16 %v1864
        %v2172 = vunpack.c.l.b16 %v1865
        %v2173 = vunpack.c.l.b16 %v1866
        %v2174 = vunpack.c.l.b16 %v1867
        %v2175 = vunpack.c.l.b16 %v1868
        %v2176 = vunpack.c.l.b16 %v1869
        %v2177 = vunpack.c.l.b16 %v1870
        %v2178 = vunpack.c.l.b16 %v1871
        %v2179 = vunpack.c.l.b16 %v1872
        %v2180 = vunpack.c.l.b16 %v1873
        %v2181 = vunpack.c.l.b16 %v1874
        %v2182 = vunpack.c.l.b16 %v1875
        %v2183 = vunpack.c.l.b16 %v1876
        %v2184 = vunpack.c.l.b16 %v1877
        %v2185 = vunpack.c.l.b16 %v1878
        %v2186 = vunpack.c.l.b16 %v1879
        %v2187 = vunpack.c.l.b16 %v1880
        %v2188 = vunpack.c.l.b16 %v1881
        %v2189 = vunpack.c.l.b16 %v1882
        %v2190 = vunpack.c.l.b16 %v1883
        %v2191 = vunpack.c.l.b16 %v1884
        %v2192 = vunpack.c.l.b16 %v1885
        %v2193 = vunpack.c.l.b16 %v1886
        %v2194 = vunpack.c.l.b16 %v1887
        %v2195 = vunpack.c.l.b16 %v1888
        %v2196 = vunpack.c.l.b16 %v1889
        %v2197 = vunpack.c.l.b16 %v1890
        %v2198 = vunpack.c.l.b16 %v1891
        %v2199 = vunpack.c.l.b16 %v1892
        %v2200 = vunpack.c.l.b16 %v1893
        %v2201 = vunpack.c.l.b16 %v1894
        %v2202 = vunpack.c.l.b16 %v1895
        %v2203 = vunpack.c.l.b16 %v1896
        %v2204 = vunpack.c.l.b16 %v1897
        %v2205 = vunpack.c.l.b16 %v1898
        %v2206 = vunpack.c.l.b16 %v1899
        %v2207 = vunpack.c.l.b16 %v1900
        %v2208 = vunpack.c.l.b16 %v1901
        %v2209 = vunpack.c.l.b16 %v1902
        %v2210 = vunpack.c.l.b16 %v1903
        %v2211 = vunpack.c.l.b16 %v1904
        %v2212 = vunpack.c.l.b16 %v1905
        %v2213 = vunpack.c.l.b16 %v1906
        %v2214 = vunpack.c.l.b16 %v1907
        %v2215 = vunpack.c.l.b16 %v1908
        %v2216 = vunpack.c.l.b16 %v1909
        %v2217 = vunpack.c.l.b16 %v1910
        %v2218 = vunpack.c.l.b16 %v1911
        %v2219 = vunpack.c.l.b16 %v1912
        %v2220 = vunpack.c.l.b16 %v1913
        %v2221 = vunpack.c.l.b16 %v1914
        %v2222 = vunpack.c.l.b16 %v1915
        %v2223 = vunpack.c.l.b16 %v1916
        %v2224 = vunpack.c.l.b16 %v1917
        %v2225 = vunpack.c.l.b16 %v1918
        %v2226 = vunpack.c.l.b16 %v1919
        %v2227 = vunpack.c.l.b16 %v1920
        %v2228 = vunpack.c.l.b16 %v1921
        %v2229 = vunpack.c.l.b16 %v1922
        %v2230 = vunpack.c.l.b16 %v1923
        %v2231 = vunpack.c.l.b16 %v1924
        %v2232 = vunpack.c.l.b16 %v1925
        %v2233 = vunpack.c.l.b16 %v1926
        %v2234 = vunpack.c.l.b16 %v1927
        %v2235 = vunpack.c.l.b16 %v1928
        %v2236 = vunpack.c.l.b16 %v1929
        %v2237 = vunpack.c.l.b16 %v1930
        %v2238 = vunpack.c.l.b16 %v1931
        %v2239 = vunpack.c.l.b16 %v1932
        %v2240 = vunpack.c.l.b16 %v1933
        %v2241 = vunpack.c.l.b16 %v1934
        %v2242 = vunpack.c.l.b16 %v1935
        %v2243 = vunpack.c.l.b16 %v1936
        %v2244 = vunpack.c.l.b16 %v1937
        %v2245 = vunpack.c.l.b16 %v1938
        %v2246 = vunpack.c.l.b16 %v1939
        %v2247 = vunpack.c.l.b16 %v1940
        %v2248 = vunpack.c.l.b16 %v1941
        %v2249 = vunpack.c.l.b16 %v1942
        %v2250 = vpack.c.b16 %v2101, %v2100
        %v2251 = vpack.c.b16 %v2103, %v2102
        %v2252 = vpack.c.b16 %v2105, %v2104
        %v2253 = vpack.c.b16 %v2107, %v2106
        %v2254 = vpack.c.b16 %v2109, %v2108
        %v2255 = vpack.c.b16 %v2111, %v2110
        %v2256 = vpack.c.b16 %v2113, %v2112
        %v2257 = vpack.c.b16 %v2115, %v2114
        %v2258 = vpack.c.b16 %v2117, %v2116
        %v2259 = vpack.c.b16 %v2119, %v2118
        %v2260 = vpack.c.b16 %v2121, %v2120
        %v2261 = vpack.c.b16 %v2123, %v2122
        %v2262 = vpack.c.b16 %v2125, %v2124
        %v2263 = vpack.c.b16 %v2127, %v2126
        %v2264 = vpack.c.b16 %v2129, %v2128
        %v2265 = vpack.c.b16 %v2131, %v2130
        %v2266 = vpack.c.b16 %v2133, %v2132
        %v2267 = vpack.c.b16 %v2135, %v2134
        %v2268 = vpack.c.b16 %v2137, %v2136
        %v2269 = vpack.c.b16 %v2139, %v2138
        %v2270 = vpack.c.b16 %v2141, %v2140
        %v2271 = vpack.c.b16 %v2143, %v2142
        %v2272 = vpack.c.b16 %v2145, %v2144
        %v2273 = vpack.c.b16 %v2147, %v2146
        %v2274 = vpack.c.b16 %v2149, %v2148
        %v2275 = vpack.c.b16 %v2151, %v2150
        %v2276 = vpack.c.b16 %v2153, %v2152
        %v2277 = vpack.c.b16 %v2155, %v2154
        %v2278 = vpack.c.b16 %v2157, %v2156
        %v2279 = vpack.c.b16 %v2159, %v2158
        %v2280 = vpack.c.b16 %v2161, %v2160
        %v2281 = vpack.c.b16 %v2163, %v2162
        %v2282 = vpack.c.b16 %v2165, %v2164
        %v2283 = vpack.c.b16 %v2167, %v2166
        %v2284 = vpack.c.b16 %v2169, %v2168
        %v2285 = vpack.c.b16 %v2171, %v2170
        %v2286 = vpack.c.b16 %v2173, %v2172
        %v2287 = vpack.c.b16 %v2175, %v2174
        %v2288 = vpack.c.b16 %v2177, %v2176
        %v2289 = vpack.c.b16 %v2179, %v2178
        %v2290 = vpack.c.b16 %v2181, %v2180
        %v2291 = vpack.c.b16 %v2183, %v2182
        %v2292 = vpack.c.b16 %v2185, %v2184
        %v2293 = vpack.c.b16 %v2187, %v2186
        %v2294 = vpack.c.b16 %v2189, %v2188
        %v2295 = vpack.c.b16 %v2191, %v2190
        %v2296 = vpack.c.b16 %v2193, %v2192
        %v2297 = vpack.c.b16 %v2195, %v2194
        %v2298 = vpack.c.b16 %v2197, %v2196
        %v2299 = vpack.c.b16 %v2199, %v2198
        %v2300 = vpack.c.b16 %v2201, %v2200
        %v2301 = vpack.c.b16 %v2203, %v2202
        %v2302 = vpack.c.b16 %v2205, %v2204
        %v2303 = vpack.c.b16 %v2207, %v2206
        %v2304 = vpack.c.b16 %v2209, %v2208
        %v2305 = vpack.c.b16 %v2211, %v2210
        %v2306 = vpack.c.b16 %v2213, %v2212
        %v2307 = vpack.c.b16 %v2215, %v2214
        %v2308 = vpack.c.b16 %v2217, %v2216
        %v2309 = vpack.c.b16 %v2219, %v2218
        %v2310 = vpack.c.b16 %v2221, %v2220
        %v2311 = vpack.c.b16 %v2223, %v2222
        %v2312 = vpack.c.b16 %v2225, %v2224
        %v2313 = vpack.c.b16 %v2227, %v2226
        %v2314 = vpack.c.b16 %v2229, %v2228
        %v2315 = vpack.c.b16 %v2231, %v2230
        %v2316 = vpack.c.b16 %v2233, %v2232
        %v2317 = vpack.c.b16 %v2235, %v2234
        %v2318 = vpack.c.b16 %v2237, %v2236
        %v2319 = vpack.c.b16 %v2239, %v2238
        %v2320 = vpack.c.b16 %v2241, %v2240
        %v2321 = vpack.c.b16 %v2243, %v2242
        %v2322 = vpack.c.b16 %v2245, %v2244
        %v2323 = vpack.c.b16 %v2247, %v2246
        %v2324 = vpack.c.b16 %v2249, %v2248
        %v2401 = vsel %vm1512, %v1388, 0
        %v2404 = vsel %vm1512, %v1389, 0
        %v2407 = vsel %vm1512, %v1494, 0
        %v2410 = vsel %vm1512, %v1386, 0
        %2412 = vmatprep.subr.bf16.mxu0 0
        %2413 = vmatpush1.bf16.msra.mxu0 %v2257
        %2414 = vmatprep.subr.bf16.mxu0 0
        %2415 = vmatpush1.bf16.msra.mxu0 %v2256
        %2416 = vmatprep.subr.bf16.mxu0 0
        %2417 = vmatpush1.bf16.msra.mxu0 %v2255
        %2418 = vmatprep.subr.bf16.mxu0 0
        %2419 = vmatpush1.bf16.msra.mxu0 %v2254
        %2420 = vmatprep.subr.bf16.mxu0 0
        %2421 = vmatpush1.bf16.msra.mxu0 %v2253
        %2422 = vmatprep.subr.bf16.mxu0 0
        %2423 = vmatpush1.bf16.msra.mxu0 %v2252
        %2424 = vmatprep.subr.bf16.mxu0 0
        %2425 = vmatpush1.bf16.msra.mxu0 %v2251
        %2426 = vmatprep.subr.bf16.mxu0 0
        %2427 = vmatpush1.bf16.msra.mxu0 %v2250
        %2428 = vmatprep.subr.bf16.mxu0 0
        %2429 = vmatpush2.bf16.msra.mxu0 %v2265
        %2430 = vmatprep.subr.bf16.mxu0 0
        %2431 = vmatpush2.bf16.msra.mxu0 %v2264
        %2432 = vmatprep.subr.bf16.mxu0 0
        %2433 = vmatpush2.bf16.msra.mxu0 %v2263
        %2434 = vmatprep.subr.bf16.mxu0 0
        %2435 = vmatpush2.bf16.msra.mxu0 %v2262
        %2436 = vmatprep.subr.bf16.mxu0 0
        %2437 = vmatpush2.bf16.msra.mxu0 %v2261
        %2438 = vmatprep.subr.bf16.mxu0 0
        %2439 = vmatpush2.bf16.msra.mxu0 %v2260
        %2440 = vmatprep.subr.bf16.mxu0 0
        %2441 = vmatpush2.bf16.msra.mxu0 %v2259
        %2442 = vmatprep.subr.bf16.mxu0 0
        %2443 = vmatpush2.bf16.msra.mxu0 %v2258
        %2444 = vmatprep.mubr.bf16.mxu0 %v1556
        %2445 = vmatmul.mubr.bf16.gmra.mxu0 %v1526
        %v2446 = vpop.f32.mrf.mxu0
        %v2447 = vadd.f32 %v1948, %v2446
        %v2448 = vpop.f32.mrf.mxu0
        %v2449 = vpop.f32.mrf.mxu0
        %v2450 = vadd.f32 %v1948, %v2449
        %v2451 = vpop.f32.mrf.mxu0
        %2452 = vmatprep.mubr.bf16.mxu0 %v1559
        %2453 = vmatmul.mubr.bf16.gmra.mxu0 %v1529
        %v2454 = vpop.f32.mrf.mxu0
        %v2455 = vadd.f32 %v1948, %v2454
        %v2456 = vpop.f32.mrf.mxu0
        %v2457 = vpop.f32.mrf.mxu0
        %v2458 = vadd.f32 %v1948, %v2457
        %v2459 = vpop.f32.mrf.mxu0
        %2460 = vmatprep.mubr.bf16.mxu0 %v1562
        %2461 = vmatmul.mubr.bf16.gmra.mxu0 %v1532
        %v2462 = vpop.f32.mrf.mxu0
        %v2463 = vadd.f32 %v1948, %v2462
        %v2464 = vpop.f32.mrf.mxu0
        %v2465 = vpop.f32.mrf.mxu0
        %v2466 = vadd.f32 %v1948, %v2465
        %v2467 = vpop.f32.mrf.mxu0
        %2468 = vmatprep.mubr.bf16.mxu0 %v1565
        %2469 = vmatmul.mubr.bf16.gmra.mxu0 %v1535
        %v2470 = vpop.f32.mrf.mxu0
        %v2471 = vadd.f32 %v1948, %v2470
        %v2472 = vpop.f32.mrf.mxu0
        %v2473 = vpop.f32.mrf.mxu0
        %v2474 = vadd.f32 %v1948, %v2473
        %v2475 = vpop.f32.mrf.mxu0
        %2476 = vdwg.mxu0
        %2477 = vmatprep.subr.bf16.mxu0 0
        %2478 = vmatpush1.bf16.msra.mxu0 %v2273
        %2479 = vmatprep.subr.bf16.mxu0 0
        %2480 = vmatpush1.bf16.msra.mxu0 %v2272
        %2481 = vmatprep.subr.bf16.mxu0 0
        %2482 = vmatpush1.bf16.msra.mxu0 %v2271
        %2483 = vmatprep.subr.bf16.mxu0 0
        %2484 = vmatpush1.bf16.msra.mxu0 %v2270
        %2485 = vmatprep.subr.bf16.mxu0 0
        %2486 = vmatpush1.bf16.msra.mxu0 %v2269
        %2487 = vmatprep.subr.bf16.mxu0 0
        %2488 = vmatpush1.bf16.msra.mxu0 %v2268
        %2489 = vmatprep.subr.bf16.mxu0 0
        %2490 = vmatpush1.bf16.msra.mxu0 %v2267
        %2491 = vmatprep.subr.bf16.mxu0 0
        %2492 = vmatpush1.bf16.msra.mxu0 %v2266
        %2493 = vmatprep.subr.bf16.mxu0 0
        %2494 = vmatpush2.bf16.msra.mxu0 %v2281
        %2495 = vmatprep.subr.bf16.mxu0 0
        %2496 = vmatpush2.bf16.msra.mxu0 %v2280
        %2497 = vmatprep.subr.bf16.mxu0 0
        %2498 = vmatpush2.bf16.msra.mxu0 %v2279
        %2499 = vmatprep.subr.bf16.mxu0 0
        %2500 = vmatpush2.bf16.msra.mxu0 %v2278
        %2501 = vmatprep.subr.bf16.mxu0 0
        %2502 = vmatpush2.bf16.msra.mxu0 %v2277
        %2503 = vmatprep.subr.bf16.mxu0 0
        %2504 = vmatpush2.bf16.msra.mxu0 %v2276
        %2505 = vmatprep.subr.bf16.mxu0 0
        %2506 = vmatpush2.bf16.msra.mxu0 %v2275
        %2507 = vmatprep.subr.bf16.mxu0 0
        %2508 = vmatpush2.bf16.msra.mxu0 %v2274
        %2509 = vmatprep.mubr.bf16.mxu0 %v1602
        %2510 = vmatmul.mubr.bf16.gmra.mxu0 %v1578
        %v2511 = vpop.f32.mrf.mxu0
        %v2512 = vadd.f32 %v2447, %v2511
        %v2513 = vpop.f32.mrf.mxu0
        %v2514 = vpop.f32.mrf.mxu0
        %v2515 = vadd.f32 %v2450, %v2514
        %v2516 = vpop.f32.mrf.mxu0
        %2517 = vmatprep.mubr.bf16.mxu0 %v1605
        %2518 = vmatmul.mubr.bf16.gmra.mxu0 %v1581
        %v2519 = vpop.f32.mrf.mxu0
        %v2520 = vadd.f32 %v2455, %v2519
        %v2521 = vpop.f32.mrf.mxu0
        %v2522 = vpop.f32.mrf.mxu0
        %v2523 = vadd.f32 %v2458, %v2522
        %v2524 = vpop.f32.mrf.mxu0
        %2525 = vmatprep.mubr.bf16.mxu0 %v1608
        %2526 = vmatmul.mubr.bf16.gmra.mxu0 %v1584
        %v2527 = vpop.f32.mrf.mxu0
        %v2528 = vadd.f32 %v2463, %v2527
        %v2529 = vpop.f32.mrf.mxu0
        %v2530 = vpop.f32.mrf.mxu0
        %v2531 = vadd.f32 %v2466, %v2530
        %v2532 = vpop.f32.mrf.mxu0
        %2533 = vmatprep.mubr.bf16.mxu0 %v1611
        %2534 = vmatmul.mubr.bf16.gmra.mxu0 %v1587
        %v2535 = vpop.f32.mrf.mxu0
        %v2536 = vadd.f32 %v2471, %v2535
        %v2537 = vpop.f32.mrf.mxu0
        %v2538 = vpop.f32.mrf.mxu0
        %v2539 = vadd.f32 %v2474, %v2538
        %v2540 = vpop.f32.mrf.mxu0
        %2541 = vdwg.mxu0
        %2542 = vmatprep.subr.bf16.mxu0 0
        %2543 = vmatpush1.bf16.msra.mxu0 %v2289
        %2544 = vmatprep.subr.bf16.mxu0 0
        %2545 = vmatpush1.bf16.msra.mxu0 %v2288
        %2546 = vmatprep.subr.bf16.mxu0 0
        %2547 = vmatpush1.bf16.msra.mxu0 %v2287
        %2548 = vmatprep.subr.bf16.mxu0 0
        %2549 = vmatpush1.bf16.msra.mxu0 %v2286
        %2550 = vmatprep.subr.bf16.mxu0 0
        %2551 = vmatpush1.bf16.msra.mxu0 %v2285
        %2552 = vmatprep.subr.bf16.mxu0 0
        %2553 = vmatpush1.bf16.msra.mxu0 %v2284
        %2554 = vmatprep.subr.bf16.mxu0 0
        %2555 = vmatpush1.bf16.msra.mxu0 %v2283
        %2556 = vmatprep.subr.bf16.mxu0 0
        %2557 = vmatpush1.bf16.msra.mxu0 %v2282
        %2558 = vmatprep.subr.bf16.mxu0 0
        %2559 = vmatpush2.bf16.msra.mxu0 %v2297
        %2560 = vmatprep.subr.bf16.mxu0 0
        %2561 = vmatpush2.bf16.msra.mxu0 %v2296
        %2562 = vmatprep.subr.bf16.mxu0 0
        %2563 = vmatpush2.bf16.msra.mxu0 %v2295
        %2564 = vmatprep.subr.bf16.mxu0 0
        %2565 = vmatpush2.bf16.msra.mxu0 %v2294
        %2566 = vmatprep.subr.bf16.mxu0 0
        %2567 = vmatpush2.bf16.msra.mxu0 %v2293
        %2568 = vmatprep.subr.bf16.mxu0 0
        %2569 = vmatpush2.bf16.msra.mxu0 %v2292
        %2570 = vmatprep.subr.bf16.mxu0 0
        %2571 = vmatpush2.bf16.msra.mxu0 %v2291
        %2572 = vmatprep.subr.bf16.mxu0 0
        %2573 = vmatpush2.bf16.msra.mxu0 %v2290
        %2574 = vmatprep.mubr.bf16.mxu0 %v1650
        %2575 = vmatmul.mubr.bf16.gmra.mxu0 %v1630
        %v2576 = vpop.f32.mrf.mxu0
        %v2577 = vadd.f32 %v2512, %v2576
        %v2578 = vpop.f32.mrf.mxu0
        %v2579 = vpop.f32.mrf.mxu0
        %v2580 = vadd.f32 %v2515, %v2579
        %v2581 = vpop.f32.mrf.mxu0
        %2582 = vmatprep.mubr.bf16.mxu0 %v1653
        %2583 = vmatmul.mubr.bf16.gmra.mxu0 %v1633
        %v2584 = vpop.f32.mrf.mxu0
        %v2585 = vadd.f32 %v2520, %v2584
        %v2586 = vpop.f32.mrf.mxu0
        %v2587 = vpop.f32.mrf.mxu0
        %v2588 = vadd.f32 %v2523, %v2587
        %v2589 = vpop.f32.mrf.mxu0
        %2590 = vmatprep.mubr.bf16.mxu0 %v1656
        %2591 = vmatmul.mubr.bf16.gmra.mxu0 %v1636
        %v2592 = vpop.f32.mrf.mxu0
        %v2593 = vadd.f32 %v2528, %v2592
        %v2594 = vpop.f32.mrf.mxu0
        %v2595 = vpop.f32.mrf.mxu0
        %v2596 = vadd.f32 %v2531, %v2595
        %v2597 = vpop.f32.mrf.mxu0
        %2598 = vmatprep.mubr.bf16.mxu0 %v1659
        %2599 = vmatmul.mubr.bf16.gmra.mxu0 %v1639
        %v2600 = vpop.f32.mrf.mxu0
        %v2601 = vadd.f32 %v2536, %v2600
        %v2602 = vpop.f32.mrf.mxu0
        %v2603 = vpop.f32.mrf.mxu0
        %v2604 = vadd.f32 %v2539, %v2603
        %v2605 = vpop.f32.mrf.mxu0
        %2606 = vdwg.mxu0
        %2607 = vmatprep.subr.bf16.mxu0 0
        %2608 = vmatpush1.bf16.msra.mxu0 %v2305
        %2609 = vmatprep.subr.bf16.mxu0 0
        %2610 = vmatpush1.bf16.msra.mxu0 %v2304
        %2611 = vmatprep.subr.bf16.mxu0 0
        %2612 = vmatpush1.bf16.msra.mxu0 %v2303
        %2613 = vmatprep.subr.bf16.mxu0 0
        %2614 = vmatpush1.bf16.msra.mxu0 %v2302
        %2615 = vmatprep.subr.bf16.mxu0 0
        %2616 = vmatpush1.bf16.msra.mxu0 %v2301
        %2617 = vmatprep.subr.bf16.mxu0 0
        %2618 = vmatpush1.bf16.msra.mxu0 %v2300
        %2619 = vmatprep.subr.bf16.mxu0 0
        %2620 = vmatpush1.bf16.msra.mxu0 %v2299
        %2621 = vmatprep.subr.bf16.mxu0 0
        %2622 = vmatpush1.bf16.msra.mxu0 %v2298
        %2623 = vmatprep.subr.bf16.mxu0 0
        %2624 = vmatpush2.bf16.msra.mxu0 %v2313
        %2625 = vmatprep.subr.bf16.mxu0 0
        %2626 = vmatpush2.bf16.msra.mxu0 %v2312
        %2627 = vmatprep.subr.bf16.mxu0 0
        %2628 = vmatpush2.bf16.msra.mxu0 %v2311
        %2629 = vmatprep.subr.bf16.mxu0 0
        %2630 = vmatpush2.bf16.msra.mxu0 %v2310
        %2631 = vmatprep.subr.bf16.mxu0 0
        %2632 = vmatpush2.bf16.msra.mxu0 %v2309
        %2633 = vmatprep.subr.bf16.mxu0 0
        %2634 = vmatpush2.bf16.msra.mxu0 %v2308
        %2635 = vmatprep.subr.bf16.mxu0 0
        %2636 = vmatpush2.bf16.msra.mxu0 %v2307
        %2637 = vmatprep.subr.bf16.mxu0 0
        %2638 = vmatpush2.bf16.msra.mxu0 %v2306
        %2639 = vmatprep.mubr.bf16.mxu0 %v1762
        %2640 = vmatmul.mubr.bf16.gmra.mxu0 %v1734
        %v2641 = vpop.f32.mrf.mxu0
        %v2642 = vadd.f32 %v2577, %v2641
        %v2643 = vpop.f32.mrf.mxu0
        %v2644 = vpop.f32.mrf.mxu0
        %v2645 = vadd.f32 %v2580, %v2644
        %v2646 = vpop.f32.mrf.mxu0
        %2647 = vmatprep.mubr.bf16.mxu0 %v1765
        %2648 = vmatmul.mubr.bf16.gmra.mxu0 %v1737
        %v2649 = vpop.f32.mrf.mxu0
        %v2650 = vadd.f32 %v2585, %v2649
        %v2651 = vpop.f32.mrf.mxu0
        %v2652 = vpop.f32.mrf.mxu0
        %v2653 = vadd.f32 %v2588, %v2652
        %v2654 = vpop.f32.mrf.mxu0
        %2655 = vmatprep.mubr.bf16.mxu0 %v1768
        %2656 = vmatmul.mubr.bf16.gmra.mxu0 %v1740
        %v2657 = vpop.f32.mrf.mxu0
        %v2658 = vadd.f32 %v2593, %v2657
        %v2659 = vpop.f32.mrf.mxu0
        %v2660 = vpop.f32.mrf.mxu0
        %v2661 = vadd.f32 %v2596, %v2660
        %v2662 = vpop.f32.mrf.mxu0
        %2663 = vmatprep.mubr.bf16.mxu0 %v1771
        %2664 = vmatmul.mubr.bf16.gmra.mxu0 %v1743
        %v2665 = vpop.f32.mrf.mxu0
        %v2666 = vadd.f32 %v2601, %v2665
        %v2667 = vpop.f32.mrf.mxu0
        %v2668 = vpop.f32.mrf.mxu0
        %v2669 = vadd.f32 %v2604, %v2668
        %v2670 = vpop.f32.mrf.mxu0
        %2671 = vdwg.mxu0
        %2672 = vmatprep.subr.bf16.mxu0 0
        %2673 = vmatpush1.bf16.msra.mxu0 %v2321
        %2674 = vmatprep.subr.bf16.mxu0 0
        %2675 = vmatpush1.bf16.msra.mxu0 %v2320
        %2676 = vmatprep.subr.bf16.mxu0 0
        %2677 = vmatpush1.bf16.msra.mxu0 %v2319
        %2678 = vmatprep.subr.bf16.mxu0 0
        %2679 = vmatpush1.bf16.msra.mxu0 %v2318
        %2680 = vmatprep.subr.bf16.mxu0 0
        %2681 = vmatpush1.bf16.msra.mxu0 %v2317
        %2682 = vmatprep.subr.bf16.mxu0 0
        %2683 = vmatpush1.bf16.msra.mxu0 %v2316
        %2684 = vmatprep.subr.bf16.mxu0 0
        %2685 = vmatpush1.bf16.msra.mxu0 %v2315
        %2686 = vmatprep.subr.bf16.mxu0 0
        %2687 = vmatpush1.bf16.msra.mxu0 %v2314
        %2688 = vmatprep.subr.bf16.mxu0 0
        %2689 = vmatpush2.bf16.msra.mxu0 0
        %2690 = vmatprep.subr.bf16.mxu0 0
        %2691 = vmatpush2.bf16.msra.mxu0 0
        %2692 = vmatprep.subr.bf16.mxu0 0
        %2693 = vmatpush2.bf16.msra.mxu0 0
        %2694 = vmatprep.subr.bf16.mxu0 0
        %2695 = vmatpush2.bf16.msra.mxu0 0
        %2696 = vmatprep.subr.bf16.mxu0 0
        %2697 = vmatpush2.bf16.msra.mxu0 0
        %2698 = vmatprep.subr.bf16.mxu0 0
        %2699 = vmatpush2.bf16.msra.mxu0 %v2324
        %2700 = vmatprep.subr.bf16.mxu0 0
        %2701 = vmatpush2.bf16.msra.mxu0 %v2323
        %2702 = vmatprep.subr.bf16.mxu0 0
        %2703 = vmatpush2.bf16.msra.mxu0 %v2322
        %2704 = vmatprep.mubr.bf16.mxu0 %v2401
        %2705 = vmatmul.mubr.bf16.gmra.mxu0 %v1782
        %v2706 = vpop.f32.mrf.mxu0
        %v2707 = vadd.f32 %v2642, %v2706
        %v2708 = vpop.f32.mrf.mxu0
        %v2709 = vpop.f32.mrf.mxu0
        %v2710 = vadd.f32 %v2645, %v2709
        %v2711 = vpop.f32.mrf.mxu0
        %2712 = vmatprep.mubr.bf16.mxu0 %v2404
        %2713 = vmatmul.mubr.bf16.gmra.mxu0 %v1785
        %v2714 = vpop.f32.mrf.mxu0
        %v2715 = vadd.f32 %v2650, %v2714
        %v2716 = vpop.f32.mrf.mxu0
        %v2717 = vpop.f32.mrf.mxu0
        %v2718 = vadd.f32 %v2653, %v2717
        %v2719 = vpop.f32.mrf.mxu0
        %2720 = vmatprep.mubr.bf16.mxu0 %v2407
        %2721 = vmatmul.mubr.bf16.gmra.mxu0 %v1788
        %v2722 = vpop.f32.mrf.mxu0
        %v2723 = vadd.f32 %v2658, %v2722
        %v2724 = vpop.f32.mrf.mxu0
        %v2725 = vpop.f32.mrf.mxu0
        %v2726 = vadd.f32 %v2661, %v2725
        %v2727 = vpop.f32.mrf.mxu0
        %2728 = vmatprep.mubr.bf16.mxu0 %v2410
        %2729 = vmatmul.mubr.bf16.gmra.mxu0 %v1791
        %v2730 = vpop.f32.mrf.mxu0
        %v2731 = vadd.f32 %v2666, %v2730
        %v2732 = vpop.f32.mrf.mxu0
        %v2733 = vpop.f32.mrf.mxu0
        %v2734 = vadd.f32 %v2669, %v2733
        %v2735 = vpop.f32.mrf.mxu0
        %2736 = vdwg.mxu0
        %v2737 = vmax.f32 %v2707, 0.0
        %v2738 = vmax.f32 %v2710, 0.0
        %v2739 = vmax.f32 %v2715, 0.0
        %v2740 = vmax.f32 %v2718, 0.0
        %v2741 = vmax.f32 %v2723, 0.0
        %v2742 = vmax.f32 %v2726, 0.0
        %v2743 = vmax.f32 %v2731, 0.0
        %v2744 = vmax.f32 %v2734, 0.0
        %2745 = vrot.lane.b32.xlu0 %v878, 112
        %v2746 = vpop.permute.xlu0 %2745
        %2747 = vrot.lane.b32.xlu0 %v880, 112
        %v2748 = vpop.permute.xlu0 %2747
        %2749 = vrot.lane.b32.xlu0 %v882, 112
        %v2750 = vpop.permute.xlu0 %2749
        %2751 = vrot.lane.b32.xlu0 %v884, 112
        %v2752 = vpop.permute.xlu0 %2751
        %2753 = vrot.lane.b32.xlu0 %v886, 112
        %v2754 = vpop.permute.xlu0 %2753
        %2755 = vrot.lane.b32.xlu0 %v888, 112
        %v2756 = vpop.permute.xlu0 %2755
        %2757 = vrot.lane.b32.xlu0 %v890, 112
        %v2758 = vpop.permute.xlu0 %2757
        %2759 = vrot.lane.b32.xlu0 %v892, 112
        %v2760 = vpop.permute.xlu0 %2759
        %v2761 = vshrl.u32 0, 16
        %v2763 = vrot.slane %v2761, 7
        %v2764 = vshll.u32 0, 16
        %v2766 = vor.u32 %v2763, %v2764
        %v2768 = vshrl.u32 %v2746, 16
        %v2770 = vrot.slane %v2768, 7
        %v2771 = vshll.u32 %v2746, 16
        %v2773 = vor.u32 %v2770, %v2771
        %v2775 = vshrl.u32 %v2748, 16
        %v2777 = vrot.slane %v2775, 7
        %v2778 = vshll.u32 %v2748, 16
        %v2780 = vor.u32 %v2777, %v2778
        %v2782 = vshrl.u32 %v2750, 16
        %v2784 = vrot.slane %v2782, 7
        %v2785 = vshll.u32 %v2750, 16
        %v2787 = vor.u32 %v2784, %v2785
        %v2789 = vshrl.u32 %v2752, 16
        %v2791 = vrot.slane %v2789, 7
        %v2792 = vshll.u32 %v2752, 16
        %v2794 = vor.u32 %v2791, %v2792
        %v2796 = vshrl.u32 %v2754, 16
        %v2798 = vrot.slane %v2796, 7
        %v2799 = vshll.u32 %v2754, 16
        %v2801 = vor.u32 %v2798, %v2799
        %v2803 = vshrl.u32 %v2756, 16
        %v2805 = vrot.slane %v2803, 7
        %v2806 = vshll.u32 %v2756, 16
        %v2808 = vor.u32 %v2805, %v2806
        %v2810 = vshrl.u32 %v2758, 16
        %v2812 = vrot.slane %v2810, 7
        %v2813 = vshll.u32 %v2758, 16
        %v2815 = vor.u32 %v2812, %v2813
        %v2817 = vshrl.u32 %v2760, 16
        %v2819 = vrot.slane %v2817, 7
        %v2820 = vshll.u32 %v2760, 16
        %v2822 = vor.u32 %v2819, %v2820
        %vm2832 = vcmask 1040384
        %vm2833 = vsmask.f32 256
        %vm2834 = vmand %vm2832, %vm2833
        %v2835 = vsel %vm2834, 0, %v2766
        %v2836 = vsel %vm2834, 0, %v2773
        %v2837 = vsel %vm2834, 0, %v2780
        %v2838 = vsel %vm2834, 0, %v2787
        %v2839 = vsel %vm2834, 0, %v2794
        %v2840 = vsel %vm2834, 0, %v2801
        %v2841 = vsel %vm2834, 0, %v2808
        %v2842 = vsel %vm2834, 0, %v2815
        %v2843 = vsel %vm2834, 0, %v2822
        %vm2844 = vcmask 1044480
        %vm2845 = vsmask.f32 4352
        %vm2846 = vmand %vm2844, %vm2845
        %v2847 = vsel %vm2846, %v2835, 0
        %v2848 = vsel %vm2846, %v2836, 0
        %v2849 = vsel %vm2846, %v2837, 0
        %v2850 = vsel %vm2846, %v2838, 0
        %v2851 = vsel %vm2846, %v2839, 0
        %v2852 = vsel %vm2846, %v2840, 0
        %v2853 = vsel %vm2846, %v2841, 0
        %v2854 = vsel %vm2846, %v2842, 0
        %v2855 = vsel %vm2846, %v2843, 0
        %v2864 = vunpack.c.l.b16 %v2847
        %v2865 = vunpack.c.h.b16 %v2847
        %v2866 = vunpack.c.l.b16 %v2848
        %v2867 = vunpack.c.h.b16 %v2848
        %v2868 = vunpack.c.l.b16 %v2849
        %v2869 = vunpack.c.h.b16 %v2849
        %v2870 = vunpack.c.l.b16 %v2850
        %v2871 = vunpack.c.h.b16 %v2850
        %v2872 = vunpack.c.l.b16 %v2851
        %v2873 = vunpack.c.h.b16 %v2851
        %v2874 = vunpack.c.l.b16 %v2852
        %v2875 = vunpack.c.h.b16 %v2852
        %v2876 = vunpack.c.l.b16 %v2853
        %v2877 = vunpack.c.h.b16 %v2853
        %v2878 = vunpack.c.l.b16 %v2854
        %v2879 = vunpack.c.h.b16 %v2854
        %v2880 = vpack.c.b16 %v2864, %v2864
        %v2881 = vpack.c.b16 %v2865, %v2865
        %v2882 = vpack.c.b16 %v2866, %v2866
        %v2883 = vpack.c.b16 %v2867, %v2867
        %v2884 = vpack.c.b16 %v2868, %v2868
        %v2885 = vpack.c.b16 %v2869, %v2869
        %v2886 = vpack.c.b16 %v2870, %v2870
        %v2887 = vpack.c.b16 %v2871, %v2871
        %v2888 = vpack.c.b16 %v2872, %v2872
        %v2889 = vpack.c.b16 %v2873, %v2873
        %v2890 = vpack.c.b16 %v2874, %v2874
        %v2891 = vpack.c.b16 %v2875, %v2875
        %v2892 = vpack.c.b16 %v2876, %v2876
        %v2893 = vpack.c.b16 %v2877, %v2877
        %v2894 = vpack.c.b16 %v2878, %v2878
        %v2895 = vpack.c.b16 %v2879, %v2879
        %v2897 = vshrl.u32 %v2880, 16
        %v2899 = vrot.slane %v2897, 4
        %v2900 = vshll.u32 %v2880, 16
        %v2902 = vrot.slane %v2900, 5
        %v2903 = vor.u32 %v2899, %v2902
        %v2904 = vrot.slane %v2903, 4
        %v2906 = vshll.u32 %v2881, 16
        %v2908 = vrot.slane %v2906, 5
        %v2909 = vsel %vm1011, %v2904, %v2908
        %v2911 = vshrl.u32 %v2882, 16
        %v2913 = vrot.slane %v2911, 4
        %v2914 = vshll.u32 %v2882, 16
        %v2916 = vrot.slane %v2914, 5
        %v2917 = vor.u32 %v2913, %v2916
        %v2918 = vrot.slane %v2917, 4
        %v2920 = vshll.u32 %v2883, 16
        %v2922 = vrot.slane %v2920, 5
        %v2923 = vsel %vm1011, %v2918, %v2922
        %v2925 = vshrl.u32 %v2884, 16
        %v2927 = vrot.slane %v2925, 4
        %v2928 = vshll.u32 %v2884, 16
        %v2930 = vrot.slane %v2928, 5
        %v2931 = vor.u32 %v2927, %v2930
        %v2932 = vrot.slane %v2931, 4
        %v2934 = vshll.u32 %v2885, 16
        %v2936 = vrot.slane %v2934, 5
        %v2937 = vsel %vm1011, %v2932, %v2936
        %v2939 = vshrl.u32 %v2886, 16
        %v2941 = vrot.slane %v2939, 4
        %v2942 = vshll.u32 %v2886, 16
        %v2944 = vrot.slane %v2942, 5
        %v2945 = vor.u32 %v2941, %v2944
        %v2946 = vrot.slane %v2945, 4
        %v2948 = vshll.u32 %v2887, 16
        %v2950 = vrot.slane %v2948, 5
        %v2951 = vsel %vm1011, %v2946, %v2950
        %v2953 = vshrl.u32 %v2888, 16
        %v2955 = vrot.slane %v2953, 4
        %v2956 = vshll.u32 %v2888, 16
        %v2958 = vrot.slane %v2956, 5
        %v2959 = vor.u32 %v2955, %v2958
        %v2960 = vrot.slane %v2959, 4
        %v2962 = vshll.u32 %v2889, 16
        %v2964 = vrot.slane %v2962, 5
        %v2965 = vsel %vm1011, %v2960, %v2964
        %v2967 = vshrl.u32 %v2890, 16
        %v2969 = vrot.slane %v2967, 4
        %v2970 = vshll.u32 %v2890, 16
        %v2972 = vrot.slane %v2970, 5
        %v2973 = vor.u32 %v2969, %v2972
        %v2974 = vrot.slane %v2973, 4
        %v2976 = vshll.u32 %v2891, 16
        %v2978 = vrot.slane %v2976, 5
        %v2979 = vsel %vm1011, %v2974, %v2978
        %v2981 = vshrl.u32 %v2892, 16
        %v2983 = vrot.slane %v2981, 4
        %v2984 = vshll.u32 %v2892, 16
        %v2986 = vrot.slane %v2984, 5
        %v2987 = vor.u32 %v2983, %v2986
        %v2988 = vrot.slane %v2987, 4
        %v2990 = vshll.u32 %v2893, 16
        %v2992 = vrot.slane %v2990, 5
        %v2993 = vsel %vm1011, %v2988, %v2992
        %v2995 = vshrl.u32 %v2894, 16
        %v2997 = vrot.slane %v2995, 4
        %v2998 = vshll.u32 %v2894, 16
        %v3000 = vrot.slane %v2998, 5
        %v3001 = vor.u32 %v2997, %v3000
        %v3002 = vrot.slane %v3001, 4
        %v3004 = vshll.u32 %v2895, 16
        %v3006 = vrot.slane %v3004, 5
        %v3007 = vsel %vm1011, %v3002, %v3006
        %v3008 = vrot.slane %v2880, 5
        %v3009 = vrot.slane %v3008, 4
        %v3010 = vrot.slane %v2881, 5
        %v3011 = vsel %vm1112, %v3009, %v3010
        %v3012 = vrot.slane %v2882, 5
        %v3013 = vrot.slane %v3012, 4
        %v3014 = vrot.slane %v2883, 5
        %v3015 = vsel %vm1112, %v3013, %v3014
        %v3016 = vrot.slane %v2884, 5
        %v3017 = vrot.slane %v3016, 4
        %v3018 = vrot.slane %v2885, 5
        %v3019 = vsel %vm1112, %v3017, %v3018
        %v3020 = vrot.slane %v2886, 5
        %v3021 = vrot.slane %v3020, 4
        %v3022 = vrot.slane %v2887, 5
        %v3023 = vsel %vm1112, %v3021, %v3022
        %v3024 = vrot.slane %v2888, 5
        %v3025 = vrot.slane %v3024, 4
        %v3026 = vrot.slane %v2889, 5
        %v3027 = vsel %vm1112, %v3025, %v3026
        %v3028 = vrot.slane %v2890, 5
        %v3029 = vrot.slane %v3028, 4
        %v3030 = vrot.slane %v2891, 5
        %v3031 = vsel %vm1112, %v3029, %v3030
        %v3032 = vrot.slane %v2892, 5
        %v3033 = vrot.slane %v3032, 4
        %v3034 = vrot.slane %v2893, 5
        %v3035 = vsel %vm1112, %v3033, %v3034
        %v3036 = vrot.slane %v2894, 5
        %v3037 = vrot.slane %v3036, 4
        %v3038 = vrot.slane %v2895, 5
        %v3039 = vsel %vm1112, %v3037, %v3038
        %v3041 = vunpack.c.l.b16 %v2855
        %v3042 = vunpack.c.h.b16 %v2855
        %v3043 = vpack.c.b16 %v3041, %v3041
        %v3044 = vpack.c.b16 %v3042, %v3042
        %v3046 = vshrl.u32 %v3043, 16
        %v3048 = vrot.slane %v3046, 4
        %v3049 = vshll.u32 %v3043, 16
        %v3051 = vrot.slane %v3049, 5
        %v3052 = vor.u32 %v3048, %v3051
        %v3053 = vrot.slane %v3052, 4
        %v3055 = vshll.u32 %v3044, 16
        %v3057 = vrot.slane %v3055, 5
        %v3058 = vsel %vm1011, %v3053, %v3057
        %v3059 = vrot.slane %v3043, 5
        %v3060 = vrot.slane %v3059, 4
        %v3061 = vrot.slane %v3044, 5
        %v3062 = vsel %vm1112, %v3060, %v3061
        %v3063 = vpack.c.b16 %v2866, %v2864
        %v3064 = vpack.c.b16 %v2870, %v2868
        %v3065 = vpack.c.b16 %v2874, %v2872
        %v3066 = vpack.c.b16 %v2878, %v2876
        %v3067 = vunpack.c.l.b16 %v2909
        %v3068 = vunpack.c.l.b16 %v2923
        %v3069 = vunpack.c.l.b16 %v2937
        %v3070 = vunpack.c.l.b16 %v2951
        %v3071 = vunpack.c.l.b16 %v2965
        %v3072 = vunpack.c.l.b16 %v2979
        %v3073 = vunpack.c.l.b16 %v2993
        %v3074 = vunpack.c.l.b16 %v3007
        %v3075 = vpack.c.b16 %v3068, %v3067
        %v3076 = vpack.c.b16 %v3070, %v3069
        %v3077 = vpack.c.b16 %v3072, %v3071
        %v3078 = vpack.c.b16 %v3074, %v3073
        %3079 = vrot.lane.b32.xlu0 %v3075, 64
        %v3080 = vpop.permute.xlu0 %3079
        %3081 = vrot.lane.b32.xlu0 %v3076, 64
        %v3082 = vpop.permute.xlu0 %3081
        %3083 = vrot.lane.b32.xlu0 %v3077, 64
        %v3084 = vpop.permute.xlu0 %3083
        %3085 = vrot.lane.b32.xlu0 %v3078, 64
        %v3086 = vpop.permute.xlu0 %3085
        %v3087 = vunpack.c.l.b16 %v3011
        %v3088 = vunpack.c.l.b16 %v3015
        %v3089 = vunpack.c.l.b16 %v3019
        %v3090 = vunpack.c.l.b16 %v3023
        %v3091 = vunpack.c.l.b16 %v3027
        %v3092 = vunpack.c.l.b16 %v3031
        %v3093 = vunpack.c.l.b16 %v3035
        %v3094 = vunpack.c.l.b16 %v3039
        %v3095 = vpack.c.b16 %v3088, %v3087
        %v3096 = vpack.c.b16 %v3090, %v3089
        %v3097 = vpack.c.b16 %v3092, %v3091
        %v3098 = vpack.c.b16 %v3094, %v3093
        %v3099 = vpack.c.b16 %v2868, %v2866
        %v3100 = vpack.c.b16 %v2872, %v2870
        %v3101 = vpack.c.b16 %v2876, %v2874
        %v3102 = vpack.c.b16 %v3041, %v2878
        %3103 = vrot.lane.b32.xlu0 %v3099, 64
        %v3104 = vpop.permute.xlu0 %3103
        %3105 = vrot.lane.b32.xlu0 %v3100, 64
        %v3106 = vpop.permute.xlu0 %3105
        %3107 = vrot.lane.b32.xlu0 %v3101, 64
        %v3108 = vpop.permute.xlu0 %3107
        %3109 = vrot.lane.b32.xlu0 %v3102, 64
        %v3110 = vpop.permute.xlu0 %3109
        %v3111 = vunpack.c.l.b16 %v3058
        %v3112 = vpack.c.b16 %v3069, %v3068
        %v3113 = vpack.c.b16 %v3071, %v3070
        %v3114 = vpack.c.b16 %v3073, %v3072
        %v3115 = vpack.c.b16 %v3111, %v3074
        %v3116 = vunpack.c.l.b16 %v3062
        %v3117 = vpack.c.b16 %v3089, %v3088
        %v3118 = vpack.c.b16 %v3091, %v3090
        %v3119 = vpack.c.b16 %v3093, %v3092
        %v3120 = vpack.c.b16 %v3116, %v3094
        %3121 = vrot.lane.b32.xlu0 %v3117, 64
        %v3122 = vpop.permute.xlu0 %3121
        %3123 = vrot.lane.b32.xlu0 %v3118, 64
        %v3124 = vpop.permute.xlu0 %3123
        %3125 = vrot.lane.b32.xlu0 %v3119, 64
        %v3126 = vpop.permute.xlu0 %3125
        %3127 = vrot.lane.b32.xlu0 %v3120, 64
        %v3128 = vpop.permute.xlu0 %3127
        %v3129 = vpack.c.b16 %v2864, %v3041
        %v3130 = vpack.c.b16 %v3067, %v3111
        %3131 = vrot.lane.b32.xlu0 %v3130, 64
        %v3132 = vpop.permute.xlu0 %3131
        %v3133 = vpack.c.b16 %v3087, %v3116
        %v3136 = vsel %vm650, %v3063, %v3080
        %v3140 = vsel %vm650, %v3064, %v3082
        %v3144 = vsel %vm650, %v3065, %v3084
        %v3148 = vsel %vm650, %v3066, %v3086
        %v3152 = vsel %vm650, %v3095, %v3104
        %v3156 = vsel %vm650, %v3096, %v3106
        %v3160 = vsel %vm650, %v3097, %v3108
        %v3164 = vsel %vm650, %v3098, %v3110
        %v3168 = vsel %vm650, %v3112, %v3122
        %v3172 = vsel %vm650, %v3113, %v3124
        %v3176 = vsel %vm650, %v3114, %v3126
        %v3180 = vsel %vm650, %v3115, %v3128
        %v3184 = vsel %vm650, %v3129, %v3132
        %v3186 = vld [vmem:[%s6] sm:$0xf]
        %v3187 = vld [vmem:[%s6 + $0x4] sm:$0xf]
        %v3188 = vld [vmem:[%s6 + $0x8] sm:$0xf]
        %v3189 = vld [vmem:[%s6 + $0xc] sm:$0xf]
        %v3190 = vld [vmem:[%s6 + $0x10] sm:$0xf]
        %v3191 = vld [vmem:[%s6 + $0x14] sm:$0xf]
        %v3192 = vld [vmem:[%s6 + $0x18] sm:$0xf]
        %v3193 = vld [vmem:[%s6 + $0x1c] sm:$0xf]
        %v3194 = vld [vmem:[%s6 + $0x20] sm:$0xf]
        %v3195 = vld [vmem:[%s6 + $0x24] sm:$0xf]
        %v3196 = vld [vmem:[%s6 + $0x28] sm:$0xf]
        %v3197 = vld [vmem:[%s6 + $0x2c] sm:$0xf]
        %v3198 = vld [vmem:[%s6 + $0x30] sm:$0xf]
        %v3199 = vld [vmem:[%s6 + $0x34] sm:$0xf]
        %v3200 = vld [vmem:[%s6 + $0x38] sm:$0xf]
        %v3201 = vld [vmem:[%s6 + $0x3c] sm:$0xf]
        %v3202 = vld [vmem:[%s6 + $0x40] sm:$0xf]
        %v3203 = vld [vmem:[%s6 + $0x44] sm:$0xf]
        %v3204 = vld [vmem:[%s6 + $0x48] sm:$0xf]
        %v3205 = vld [vmem:[%s6 + $0x4c] sm:$0xf]
        %v3206 = vld [vmem:[%s6 + $0x50] sm:$0xf]
        %v3207 = vld [vmem:[%s6 + $0x54] sm:$0xf]
        %v3208 = vld [vmem:[%s6 + $0x58] sm:$0xf]
        %v3209 = vld [vmem:[%s6 + $0x5c] sm:$0xf]
        %v3210 = vld [vmem:[%s6 + $0x60] sm:$0xf]
        %v3211 = vld [vmem:[%s6 + $0x64] sm:$0xf]
        %v3212 = vld [vmem:[%s6 + $0x68] sm:$0xf]
        %v3213 = vld [vmem:[%s6 + $0x6c] sm:$0xf]
        %v3214 = vld [vmem:[%s6 + $0x70] sm:$0xf]
        %v3215 = vld [vmem:[%s6 + $0x74] sm:$0xf]
        %v3216 = vld [vmem:[%s6 + $0x78] sm:$0xf]
        %v3217 = vld [vmem:[%s6 + $0x7c] sm:$0xf]
        %v3218 = vld [vmem:[%s6 + $0x80] sm:$0xf]
        %v3219 = vld [vmem:[%s6 + $0x84] sm:$0xf]
        %v3220 = vld [vmem:[%s6 + $0x88] sm:$0xf]
        %v3221 = vld [vmem:[%s6 + $0x8c] sm:$0xf]
        %v3222 = vld [vmem:[%s6 + $0x90] sm:$0xf]
        %v3223 = vld [vmem:[%s6 + $0x94] sm:$0xf]
        %v3224 = vld [vmem:[%s6 + $0x98] sm:$0xf]
        %v3225 = vld [vmem:[%s6 + $0x9c] sm:$0xf]
        %v3226 = vld [vmem:[%s6 + $0xa0] sm:$0xf]
        %v3227 = vld [vmem:[%s6 + $0xa4] sm:$0xf]
        %v3228 = vld [vmem:[%s6 + $0xa8] sm:$0xf]
        %v3229 = vld [vmem:[%s6 + $0xac] sm:$0xf]
        %v3230 = vld [vmem:[%s6 + $0xb0] sm:$0xf]
        %v3231 = vld [vmem:[%s6 + $0xb4] sm:$0xf]
        %v3232 = vld [vmem:[%s6 + $0xb8] sm:$0xf]
        %v3233 = vld [vmem:[%s6 + $0xbc] sm:$0xf]
        %v3234 = vld [vmem:[%s6 + $0xc0] sm:$0xf]
        %v3235 = vld [vmem:[%s6 + $0xc4] sm:$0xf]
        %v3236 = vld [vmem:[%s6 + $0xc8] sm:$0xf]
        %v3237 = vld [vmem:[%s6 + $0xcc] sm:$0xf]
        %v3238 = vld [vmem:[%s6 + $0xd0] sm:$0xf]
        %v3239 = vld [vmem:[%s6 + $0xd4] sm:$0xf]
        %v3240 = vld [vmem:[%s6 + $0xd8] sm:$0xf]
        %v3241 = vld [vmem:[%s6 + $0xdc] sm:$0xf]
        %v3242 = vld [vmem:[%s6 + $0xe0] sm:$0xf]
        %v3243 = vld [vmem:[%s6 + $0xe4] sm:$0xf]
        %v3244 = vld [vmem:[%s6 + $0xe8] sm:$0xf]
        %v3245 = vld [vmem:[%s6 + $0xec] sm:$0xf]
        %v3246 = vld [vmem:[%s6 + $0xf0] sm:$0xf]
        %v3247 = vld [vmem:[%s6 + $0xf4] sm:$0xf]
        %v3248 = vld [vmem:[%s6 + $0xf8] sm:$0xf]
        %v3249 = vld [vmem:[%s6 + $0xfc] sm:$0xf]
        %v3250 = vld [vmem:[%s6 + $0x100] sm:$0xf]
        %v3251 = vld [vmem:[%s6 + $0x104] sm:$0xf]
        %v3252 = vld [vmem:[%s6 + $0x108] sm:$0xf]
        %v3253 = vld [vmem:[%s6 + $0x10c] sm:$0xf]
        %v3254 = vld [vmem:[%s6 + $0x110] sm:$0xf]
        %v3255 = vld [vmem:[%s6 + $0x114] sm:$0xf]
        %v3256 = vld [vmem:[%s6 + $0x118] sm:$0xf]
        %v3257 = vld [vmem:[%s6 + $0x11c] sm:$0xf]
        %v3258 = vld [vmem:[%s7] sm:$0x1]
        %v3260 = vlaneseq
        %v3261 = vshrl.u32 %v3260, 7
        %v3262 = vsub.s32 0, %v3261
        %v3263 = vrot.slane %v3258, %v3262
        %v3337 = vunpack.c.l.b16 %v3186
        %v3338 = vunpack.c.l.b16 %v3187
        %v3339 = vunpack.c.l.b16 %v3188
        %v3340 = vunpack.c.l.b16 %v3189
        %v3341 = vunpack.c.l.b16 %v3190
        %v3342 = vunpack.c.l.b16 %v3191
        %v3343 = vunpack.c.l.b16 %v3192
        %v3344 = vunpack.c.l.b16 %v3193
        %v3345 = vunpack.c.l.b16 %v3194
        %v3346 = vunpack.c.l.b16 %v3195
        %v3347 = vunpack.c.l.b16 %v3196
        %v3348 = vunpack.c.l.b16 %v3197
        %v3349 = vunpack.c.l.b16 %v3198
        %v3350 = vunpack.c.l.b16 %v3199
        %v3351 = vunpack.c.l.b16 %v3200
        %v3352 = vunpack.c.l.b16 %v3201
        %v3353 = vunpack.c.l.b16 %v3202
        %v3354 = vunpack.c.l.b16 %v3203
        %v3355 = vunpack.c.l.b16 %v3204
        %v3356 = vunpack.c.l.b16 %v3205
        %v3357 = vunpack.c.l.b16 %v3206
        %v3358 = vunpack.c.l.b16 %v3207
        %v3359 = vunpack.c.l.b16 %v3208
        %v3360 = vunpack.c.l.b16 %v3209
        %v3361 = vunpack.c.l.b16 %v3210
        %v3362 = vunpack.c.l.b16 %v3211
        %v3363 = vunpack.c.l.b16 %v3212
        %v3364 = vunpack.c.l.b16 %v3213
        %v3365 = vunpack.c.l.b16 %v3214
        %v3366 = vunpack.c.l.b16 %v3215
        %v3367 = vunpack.c.l.b16 %v3216
        %v3368 = vunpack.c.l.b16 %v3217
        %v3369 = vunpack.c.l.b16 %v3218
        %v3370 = vunpack.c.l.b16 %v3219
        %v3371 = vunpack.c.l.b16 %v3220
        %v3372 = vunpack.c.l.b16 %v3221
        %v3373 = vunpack.c.l.b16 %v3222
        %v3374 = vunpack.c.l.b16 %v3223
        %v3375 = vunpack.c.l.b16 %v3224
        %v3376 = vunpack.c.l.b16 %v3225
        %v3377 = vunpack.c.l.b16 %v3226
        %v3378 = vunpack.c.l.b16 %v3227
        %v3379 = vunpack.c.l.b16 %v3228
        %v3380 = vunpack.c.l.b16 %v3229
        %v3381 = vunpack.c.l.b16 %v3230
        %v3382 = vunpack.c.l.b16 %v3231
        %v3383 = vunpack.c.l.b16 %v3232
        %v3384 = vunpack.c.l.b16 %v3233
        %v3385 = vunpack.c.l.b16 %v3234
        %v3386 = vunpack.c.l.b16 %v3235
        %v3387 = vunpack.c.l.b16 %v3236
        %v3388 = vunpack.c.l.b16 %v3237
        %v3389 = vunpack.c.l.b16 %v3238
        %v3390 = vunpack.c.l.b16 %v3239
        %v3391 = vunpack.c.l.b16 %v3240
        %v3392 = vunpack.c.l.b16 %v3241
        %v3393 = vunpack.c.l.b16 %v3242
        %v3394 = vunpack.c.l.b16 %v3243
        %v3395 = vunpack.c.l.b16 %v3244
        %v3396 = vunpack.c.l.b16 %v3245
        %v3397 = vunpack.c.l.b16 %v3246
        %v3398 = vunpack.c.l.b16 %v3247
        %v3399 = vunpack.c.l.b16 %v3248
        %v3400 = vunpack.c.l.b16 %v3249
        %v3401 = vunpack.c.l.b16 %v3250
        %v3402 = vunpack.c.l.b16 %v3251
        %v3403 = vunpack.c.l.b16 %v3252
        %v3404 = vunpack.c.l.b16 %v3253
        %v3405 = vunpack.c.l.b16 %v3254
        %v3406 = vunpack.c.l.b16 %v3255
        %v3407 = vunpack.c.l.b16 %v3256
        %v3408 = vunpack.c.l.b16 %v3257
        %v3409 = vpack.c.b16 %v3338, %v3337
        %v3410 = vpack.c.b16 %v3340, %v3339
        %v3411 = vpack.c.b16 %v3342, %v3341
        %v3412 = vpack.c.b16 %v3344, %v3343
        %v3413 = vpack.c.b16 %v3346, %v3345
        %v3414 = vpack.c.b16 %v3348, %v3347
        %v3415 = vpack.c.b16 %v3350, %v3349
        %v3416 = vpack.c.b16 %v3352, %v3351
        %v3417 = vpack.c.b16 %v3354, %v3353
        %v3418 = vpack.c.b16 %v3356, %v3355
        %v3419 = vpack.c.b16 %v3358, %v3357
        %v3420 = vpack.c.b16 %v3360, %v3359
        %v3421 = vpack.c.b16 %v3362, %v3361
        %v3422 = vpack.c.b16 %v3364, %v3363
        %v3423 = vpack.c.b16 %v3366, %v3365
        %v3424 = vpack.c.b16 %v3368, %v3367
        %v3425 = vpack.c.b16 %v3370, %v3369
        %v3426 = vpack.c.b16 %v3372, %v3371
        %v3427 = vpack.c.b16 %v3374, %v3373
        %v3428 = vpack.c.b16 %v3376, %v3375
        %v3429 = vpack.c.b16 %v3378, %v3377
        %v3430 = vpack.c.b16 %v3380, %v3379
        %v3431 = vpack.c.b16 %v3382, %v3381
        %v3432 = vpack.c.b16 %v3384, %v3383
        %v3433 = vpack.c.b16 %v3386, %v3385
        %v3434 = vpack.c.b16 %v3388, %v3387
        %v3435 = vpack.c.b16 %v3390, %v3389
        %v3436 = vpack.c.b16 %v3392, %v3391
        %v3437 = vpack.c.b16 %v3394, %v3393
        %v3438 = vpack.c.b16 %v3396, %v3395
        %v3439 = vpack.c.b16 %v3398, %v3397
        %v3440 = vpack.c.b16 %v3400, %v3399
        %v3441 = vpack.c.b16 %v3402, %v3401
        %v3442 = vpack.c.b16 %v3404, %v3403
        %v3443 = vpack.c.b16 %v3406, %v3405
        %v3444 = vpack.c.b16 %v3408, %v3407
        %v3481 = vsel %vm650, %v3096, 0
        %v3483 = vsel %vm650, %v3097, 0
        %v3485 = vsel %vm650, %v3098, 0
        %v3488 = vsel %vm650, %v3133, 0
        %3490 = vmatprep.subr.bf16.mxu0 0
        %3491 = vmatpush1.bf16.msra.mxu0 %v3416
        %3492 = vmatprep.subr.bf16.mxu0 0
        %3493 = vmatpush1.bf16.msra.mxu0 %v3415
        %3494 = vmatprep.subr.bf16.mxu0 0
        %3495 = vmatpush1.bf16.msra.mxu0 %v3414
        %3496 = vmatprep.subr.bf16.mxu0 0
        %3497 = vmatpush1.bf16.msra.mxu0 %v3413
        %3498 = vmatprep.subr.bf16.mxu0 0
        %3499 = vmatpush1.bf16.msra.mxu0 %v3412
        %3500 = vmatprep.subr.bf16.mxu0 0
        %3501 = vmatpush1.bf16.msra.mxu0 %v3411
        %3502 = vmatprep.subr.bf16.mxu0 0
        %3503 = vmatpush1.bf16.msra.mxu0 %v3410
        %3504 = vmatprep.subr.bf16.mxu0 0
        %3505 = vmatpush1.bf16.msra.mxu0 %v3409
        %3506 = vmatprep.subr.bf16.mxu0 0
        %3507 = vmatpush2.bf16.msra.mxu0 %v3424
        %3508 = vmatprep.subr.bf16.mxu0 0
        %3509 = vmatpush2.bf16.msra.mxu0 %v3423
        %3510 = vmatprep.subr.bf16.mxu0 0
        %3511 = vmatpush2.bf16.msra.mxu0 %v3422
        %3512 = vmatprep.subr.bf16.mxu0 0
        %3513 = vmatpush2.bf16.msra.mxu0 %v3421
        %3514 = vmatprep.subr.bf16.mxu0 0
        %3515 = vmatpush2.bf16.msra.mxu0 %v3420
        %3516 = vmatprep.subr.bf16.mxu0 0
        %3517 = vmatpush2.bf16.msra.mxu0 %v3419
        %3518 = vmatprep.subr.bf16.mxu0 0
        %3519 = vmatpush2.bf16.msra.mxu0 %v3418
        %3520 = vmatprep.subr.bf16.mxu0 0
        %3521 = vmatpush2.bf16.msra.mxu0 %v3417
        %3522 = vmatprep.mubr.bf16.mxu0 %v3152
        %3523 = vmatmul.mubr.bf16.gmra.mxu0 %v3136
        %v3524 = vpop.f32.mrf.mxu0
        %v3525 = vadd.f32 %v3263, %v3524
        %v3526 = vpop.f32.mrf.mxu0
        %v3527 = vpop.f32.mrf.mxu0
        %v3528 = vadd.f32 %v3263, %v3527
        %v3529 = vpop.f32.mrf.mxu0
        %3530 = vmatprep.mubr.bf16.mxu0 %v3156
        %3531 = vmatmul.mubr.bf16.gmra.mxu0 %v3140
        %v3532 = vpop.f32.mrf.mxu0
        %v3533 = vadd.f32 %v3263, %v3532
        %v3534 = vpop.f32.mrf.mxu0
        %v3535 = vpop.f32.mrf.mxu0
        %v3536 = vadd.f32 %v3263, %v3535
        %v3537 = vpop.f32.mrf.mxu0
        %3538 = vmatprep.mubr.bf16.mxu0 %v3160
        %3539 = vmatmul.mubr.bf16.gmra.mxu0 %v3144
        %v3540 = vpop.f32.mrf.mxu0
        %v3541 = vadd.f32 %v3263, %v3540
        %v3542 = vpop.f32.mrf.mxu0
        %v3543 = vpop.f32.mrf.mxu0
        %v3544 = vadd.f32 %v3263, %v3543
        %v3545 = vpop.f32.mrf.mxu0
        %3546 = vmatprep.mubr.bf16.mxu0 %v3164
        %3547 = vmatmul.mubr.bf16.gmra.mxu0 %v3148
        %v3548 = vpop.f32.mrf.mxu0
        %v3549 = vadd.f32 %v3263, %v3548
        %v3550 = vpop.f32.mrf.mxu0
        %v3551 = vpop.f32.mrf.mxu0
        %v3552 = vadd.f32 %v3263, %v3551
        %v3553 = vpop.f32.mrf.mxu0
        %3554 = vdwg.mxu0
        %3555 = vmatprep.subr.bf16.mxu0 0
        %3556 = vmatpush1.bf16.msra.mxu0 %v3432
        %3557 = vmatprep.subr.bf16.mxu0 0
        %3558 = vmatpush1.bf16.msra.mxu0 %v3431
        %3559 = vmatprep.subr.bf16.mxu0 0
        %3560 = vmatpush1.bf16.msra.mxu0 %v3430
        %3561 = vmatprep.subr.bf16.mxu0 0
        %3562 = vmatpush1.bf16.msra.mxu0 %v3429
        %3563 = vmatprep.subr.bf16.mxu0 0
        %3564 = vmatpush1.bf16.msra.mxu0 %v3428
        %3565 = vmatprep.subr.bf16.mxu0 0
        %3566 = vmatpush1.bf16.msra.mxu0 %v3427
        %3567 = vmatprep.subr.bf16.mxu0 0
        %3568 = vmatpush1.bf16.msra.mxu0 %v3426
        %3569 = vmatprep.subr.bf16.mxu0 0
        %3570 = vmatpush1.bf16.msra.mxu0 %v3425
        %3571 = vmatprep.subr.bf16.mxu0 0
        %3572 = vmatpush2.bf16.msra.mxu0 %v3440
        %3573 = vmatprep.subr.bf16.mxu0 0
        %3574 = vmatpush2.bf16.msra.mxu0 %v3439
        %3575 = vmatprep.subr.bf16.mxu0 0
        %3576 = vmatpush2.bf16.msra.mxu0 %v3438
        %3577 = vmatprep.subr.bf16.mxu0 0
        %3578 = vmatpush2.bf16.msra.mxu0 %v3437
        %3579 = vmatprep.subr.bf16.mxu0 0
        %3580 = vmatpush2.bf16.msra.mxu0 %v3436
        %3581 = vmatprep.subr.bf16.mxu0 0
        %3582 = vmatpush2.bf16.msra.mxu0 %v3435
        %3583 = vmatprep.subr.bf16.mxu0 0
        %3584 = vmatpush2.bf16.msra.mxu0 %v3434
        %3585 = vmatprep.subr.bf16.mxu0 0
        %3586 = vmatpush2.bf16.msra.mxu0 %v3433
        %3587 = vmatprep.mubr.bf16.mxu0 %v3140
        %3588 = vmatmul.mubr.bf16.gmra.mxu0 %v3168
        %v3589 = vpop.f32.mrf.mxu0
        %v3590 = vadd.f32 %v3525, %v3589
        %v3591 = vpop.f32.mrf.mxu0
        %v3592 = vpop.f32.mrf.mxu0
        %v3593 = vadd.f32 %v3528, %v3592
        %v3594 = vpop.f32.mrf.mxu0
        %3595 = vmatprep.mubr.bf16.mxu0 %v3144
        %3596 = vmatmul.mubr.bf16.gmra.mxu0 %v3172
        %v3597 = vpop.f32.mrf.mxu0
        %v3598 = vadd.f32 %v3533, %v3597
        %v3599 = vpop.f32.mrf.mxu0
        %v3600 = vpop.f32.mrf.mxu0
        %v3601 = vadd.f32 %v3536, %v3600
        %v3602 = vpop.f32.mrf.mxu0
        %3603 = vmatprep.mubr.bf16.mxu0 %v3148
        %3604 = vmatmul.mubr.bf16.gmra.mxu0 %v3176
        %v3605 = vpop.f32.mrf.mxu0
        %v3606 = vadd.f32 %v3541, %v3605
        %v3607 = vpop.f32.mrf.mxu0
        %v3608 = vpop.f32.mrf.mxu0
        %v3609 = vadd.f32 %v3544, %v3608
        %v3610 = vpop.f32.mrf.mxu0
        %3611 = vmatprep.mubr.bf16.mxu0 %v3184
        %3612 = vmatmul.mubr.bf16.gmra.mxu0 %v3180
        %v3613 = vpop.f32.mrf.mxu0
        %v3614 = vadd.f32 %v3549, %v3613
        %v3615 = vpop.f32.mrf.mxu0
        %v3616 = vpop.f32.mrf.mxu0
        %v3617 = vadd.f32 %v3552, %v3616
        %v3618 = vpop.f32.mrf.mxu0
        %3619 = vdwg.mxu0
        %3620 = vmatprep.subr.bf16.mxu0 0
        %3621 = vmatpush1.bf16.msra.mxu0 0
        %3622 = vmatprep.subr.bf16.mxu0 0
        %3623 = vmatpush1.bf16.msra.mxu0 0
        %3624 = vmatprep.subr.bf16.mxu0 0
        %3625 = vmatpush1.bf16.msra.mxu0 0
        %3626 = vmatprep.subr.bf16.mxu0 0
        %3627 = vmatpush1.bf16.msra.mxu0 0
        %3628 = vmatprep.subr.bf16.mxu0 0
        %3629 = vmatpush1.bf16.msra.mxu0 %v3444
        %3630 = vmatprep.subr.bf16.mxu0 0
        %3631 = vmatpush1.bf16.msra.mxu0 %v3443
        %3632 = vmatprep.subr.bf16.mxu0 0
        %3633 = vmatpush1.bf16.msra.mxu0 %v3442
        %3634 = vmatprep.subr.bf16.mxu0 0
        %3635 = vmatpush1.bf16.msra.mxu0 %v3441
        %3636 = vmatprep.subr.bf16.mxu0 0
        %3637 = vmatpush2.bf16.msra.mxu0 0
        %3638 = vmatprep.subr.bf16.mxu0 0
        %3639 = vmatpush2.bf16.msra.mxu0 0
        %3640 = vmatprep.subr.bf16.mxu0 0
        %3641 = vmatpush2.bf16.msra.mxu0 0
        %3642 = vmatprep.subr.bf16.mxu0 0
        %3643 = vmatpush2.bf16.msra.mxu0 0
        %3644 = vmatprep.subr.bf16.mxu0 0
        %3645 = vmatpush2.bf16.msra.mxu0 0
        %3646 = vmatprep.subr.bf16.mxu0 0
        %3647 = vmatpush2.bf16.msra.mxu0 0
        %3648 = vmatprep.subr.bf16.mxu0 0
        %3649 = vmatpush2.bf16.msra.mxu0 0
        %3650 = vmatprep.subr.bf16.mxu0 0
        %3651 = vmatpush2.bf16.msra.mxu0 0
        %3652 = vmatprep.mubr.bf16.mxu0 0
        %3653 = vmatmul.mubr.bf16.gmra.mxu0 %v3481
        %v3654 = vpop.f32.mrf.mxu0
        %v3655 = vadd.f32 %v3590, %v3654
        %v3656 = vpop.f32.mrf.mxu0
        %v3657 = vpop.f32.mrf.mxu0
        %v3658 = vadd.f32 %v3593, %v3657
        %v3659 = vpop.f32.mrf.mxu0
        %3660 = vmatprep.mubr.bf16.mxu0 0
        %3661 = vmatmul.mubr.bf16.gmra.mxu0 %v3483
        %v3662 = vpop.f32.mrf.mxu0
        %v3663 = vadd.f32 %v3598, %v3662
        %v3664 = vpop.f32.mrf.mxu0
        %v3665 = vpop.f32.mrf.mxu0
        %v3666 = vadd.f32 %v3601, %v3665
        %v3667 = vpop.f32.mrf.mxu0
        %3668 = vmatprep.mubr.bf16.mxu0 0
        %3669 = vmatmul.mubr.bf16.gmra.mxu0 %v3485
        %v3670 = vpop.f32.mrf.mxu0
        %v3671 = vadd.f32 %v3606, %v3670
        %v3672 = vpop.f32.mrf.mxu0
        %v3673 = vpop.f32.mrf.mxu0
        %v3674 = vadd.f32 %v3609, %v3673
        %v3675 = vpop.f32.mrf.mxu0
        %3676 = vmatprep.mubr.bf16.mxu0 0
        %3677 = vmatmul.mubr.bf16.gmra.mxu0 %v3488
        %v3678 = vpop.f32.mrf.mxu0
        %v3679 = vadd.f32 %v3614, %v3678
        %v3680 = vpop.f32.mrf.mxu0
        %v3681 = vpop.f32.mrf.mxu0
        %v3682 = vadd.f32 %v3617, %v3681
        %v3683 = vpop.f32.mrf.mxu0
        %3684 = vdwg.mxu0
        %v3685 = vmax.f32 %v3655, 0.0
        %v3686 = vmax.f32 %v3658, 0.0
        %v3687 = vmax.f32 %v3663, 0.0
        %v3688 = vmax.f32 %v3666, 0.0
        %v3689 = vmax.f32 %v3671, 0.0
        %v3690 = vmax.f32 %v3674, 0.0
        %v3691 = vmax.f32 %v3679, 0.0
        %v3692 = vmax.f32 %v3682, 0.0
        %v3693 = vpack.c.bf16 %v3686, %v3685
        %v3694 = vpack.c.bf16 %v3688, %v3687
        %v3695 = vpack.c.bf16 %v3690, %v3689
        %v3696 = vpack.c.bf16 %v3692, %v3691
        %v3701 = vunpack.c.l.b16 %v3693
        %v3702 = vunpack.c.h.b16 %v3693
        %v3703 = vunpack.c.l.b16 %v3694
        %v3704 = vunpack.c.h.b16 %v3694
        %v3705 = vunpack.c.l.b16 %v3695
        %v3706 = vunpack.c.h.b16 %v3695
        %v3707 = vunpack.c.l.b16 %v3696
        %v3708 = vunpack.c.h.b16 %v3696
        %v3709 = vpack.c.b16 %v3701, %v3701
        %v3710 = vpack.c.b16 %v3702, %v3702
        %v3711 = vpack.c.b16 %v3703, %v3703
        %v3712 = vpack.c.b16 %v3704, %v3704
        %v3713 = vpack.c.b16 %v3705, %v3705
        %v3714 = vpack.c.b16 %v3706, %v3706
        %v3715 = vpack.c.b16 %v3707, %v3707
        %v3716 = vpack.c.b16 %v3708, %v3708
        %v3718 = vshrl.u32 %v3709, 16
        %v3720 = vrot.slane %v3718, 7
        %v3721 = vshll.u32 %v3709, 16
        %v3723 = vor.u32 %v3720, %v3721
        %v3725 = vshrl.u32 %v3710, 16
        %v3727 = vrot.slane %v3725, 7
        %v3728 = vshll.u32 %v3710, 16
        %v3730 = vor.u32 %v3727, %v3728
        %v3732 = vshrl.u32 %v3711, 16
        %v3734 = vrot.slane %v3732, 7
        %v3735 = vshll.u32 %v3711, 16
        %v3737 = vor.u32 %v3734, %v3735
        %v3739 = vshrl.u32 %v3712, 16
        %v3741 = vrot.slane %v3739, 7
        %v3742 = vshll.u32 %v3712, 16
        %v3744 = vor.u32 %v3741, %v3742
        %v3746 = vshrl.u32 %v3713, 16
        %v3748 = vrot.slane %v3746, 7
        %v3749 = vshll.u32 %v3713, 16
        %v3751 = vor.u32 %v3748, %v3749
        %v3753 = vshrl.u32 %v3714, 16
        %v3755 = vrot.slane %v3753, 7
        %v3756 = vshll.u32 %v3714, 16
        %v3758 = vor.u32 %v3755, %v3756
        %v3760 = vshrl.u32 %v3715, 16
        %v3762 = vrot.slane %v3760, 7
        %v3763 = vshll.u32 %v3715, 16
        %v3765 = vor.u32 %v3762, %v3763
        %v3767 = vshrl.u32 %v3716, 16
        %v3769 = vrot.slane %v3767, 7
        %v3770 = vshll.u32 %v3716, 16
        %v3772 = vor.u32 %v3769, %v3770
        %v3781 = vsel %vm2834, 0, %v3723
        %v3782 = vsel %vm2834, 0, %v3730
        %v3783 = vsel %vm2834, 0, %v3737
        %v3784 = vsel %vm2834, 0, %v3744
        %v3785 = vsel %vm2834, 0, %v3751
        %v3786 = vsel %vm2834, 0, %v3758
        %v3787 = vsel %vm2834, 0, %v3765
        %v3788 = vsel %vm2834, 0, %v3772
        %v3789 = vsel %vm2846, %v3781, 0
        %v3790 = vsel %vm2846, %v3782, 0
        %v3791 = vsel %vm2846, %v3783, 0
        %v3792 = vsel %vm2846, %v3784, 0
        %v3793 = vsel %vm2846, %v3785, 0
        %v3794 = vsel %vm2846, %v3786, 0
        %v3795 = vsel %vm2846, %v3787, 0
        %v3796 = vsel %vm2846, %v3788, 0
        %v3804 = vunpack.c.l.b16 %v3789
        %v3805 = vunpack.c.h.b16 %v3789
        %v3806 = vunpack.c.l.b16 %v3790
        %v3807 = vunpack.c.h.b16 %v3790
        %v3808 = vunpack.c.l.b16 %v3791
        %v3809 = vunpack.c.h.b16 %v3791
        %v3810 = vunpack.c.l.b16 %v3792
        %v3811 = vunpack.c.h.b16 %v3792
        %v3812 = vunpack.c.l.b16 %v3793
        %v3813 = vunpack.c.h.b16 %v3793
        %v3814 = vunpack.c.l.b16 %v3794
        %v3815 = vunpack.c.h.b16 %v3794
        %v3816 = vunpack.c.l.b16 %v3795
        %v3817 = vunpack.c.h.b16 %v3795
        %v3818 = vpack.c.b16 %v3804, %v3804
        %v3819 = vpack.c.b16 %v3805, %v3805
        %v3820 = vpack.c.b16 %v3806, %v3806
        %v3821 = vpack.c.b16 %v3807, %v3807
        %v3822 = vpack.c.b16 %v3808, %v3808
        %v3823 = vpack.c.b16 %v3809, %v3809
        %v3824 = vpack.c.b16 %v3810, %v3810
        %v3825 = vpack.c.b16 %v3811, %v3811
        %v3826 = vpack.c.b16 %v3812, %v3812
        %v3827 = vpack.c.b16 %v3813, %v3813
        %v3828 = vpack.c.b16 %v3814, %v3814
        %v3829 = vpack.c.b16 %v3815, %v3815
        %v3830 = vpack.c.b16 %v3816, %v3816
        %v3831 = vpack.c.b16 %v3817, %v3817
        %v3833 = vshrl.u32 %v3818, 16
        %v3835 = vrot.slane %v3833, 4
        %v3836 = vshll.u32 %v3818, 16
        %v3838 = vrot.slane %v3836, 5
        %v3839 = vor.u32 %v3835, %v3838
        %v3840 = vrot.slane %v3839, 4
        %v3842 = vshll.u32 %v3819, 16
        %v3844 = vrot.slane %v3842, 5
        %v3845 = vsel %vm1011, %v3840, %v3844
        %v3847 = vshrl.u32 %v3820, 16
        %v3849 = vrot.slane %v3847, 4
        %v3850 = vshll.u32 %v3820, 16
        %v3852 = vrot.slane %v3850, 5
        %v3853 = vor.u32 %v3849, %v3852
        %v3854 = vrot.slane %v3853, 4
        %v3856 = vshll.u32 %v3821, 16
        %v3858 = vrot.slane %v3856, 5
        %v3859 = vsel %vm1011, %v3854, %v3858
        %v3861 = vshrl.u32 %v3822, 16
        %v3863 = vrot.slane %v3861, 4
        %v3864 = vshll.u32 %v3822, 16
        %v3866 = vrot.slane %v3864, 5
        %v3867 = vor.u32 %v3863, %v3866
        %v3868 = vrot.slane %v3867, 4
        %v3870 = vshll.u32 %v3823, 16
        %v3872 = vrot.slane %v3870, 5
        %v3873 = vsel %vm1011, %v3868, %v3872
        %v3875 = vshrl.u32 %v3824, 16
        %v3877 = vrot.slane %v3875, 4
        %v3878 = vshll.u32 %v3824, 16
        %v3880 = vrot.slane %v3878, 5
        %v3881 = vor.u32 %v3877, %v3880
        %v3882 = vrot.slane %v3881, 4
        %v3884 = vshll.u32 %v3825, 16
        %v3886 = vrot.slane %v3884, 5
        %v3887 = vsel %vm1011, %v3882, %v3886
        %v3889 = vshrl.u32 %v3826, 16
        %v3891 = vrot.slane %v3889, 4
        %v3892 = vshll.u32 %v3826, 16
        %v3894 = vrot.slane %v3892, 5
        %v3895 = vor.u32 %v3891, %v3894
        %v3896 = vrot.slane %v3895, 4
        %v3898 = vshll.u32 %v3827, 16
        %v3900 = vrot.slane %v3898, 5
        %v3901 = vsel %vm1011, %v3896, %v3900
        %v3903 = vshrl.u32 %v3828, 16
        %v3905 = vrot.slane %v3903, 4
        %v3906 = vshll.u32 %v3828, 16
        %v3908 = vrot.slane %v3906, 5
        %v3909 = vor.u32 %v3905, %v3908
        %v3910 = vrot.slane %v3909, 4
        %v3912 = vshll.u32 %v3829, 16
        %v3914 = vrot.slane %v3912, 5
        %v3915 = vsel %vm1011, %v3910, %v3914
        %v3917 = vshrl.u32 %v3830, 16
        %v3919 = vrot.slane %v3917, 4
        %v3920 = vshll.u32 %v3830, 16
        %v3922 = vrot.slane %v3920, 5
        %v3923 = vor.u32 %v3919, %v3922
        %v3924 = vrot.slane %v3923, 4
        %v3926 = vshll.u32 %v3831, 16
        %v3928 = vrot.slane %v3926, 5
        %v3929 = vsel %vm1011, %v3924, %v3928
        %v3930 = vrot.slane %v3818, 5
        %v3931 = vrot.slane %v3930, 4
        %v3932 = vrot.slane %v3819, 5
        %v3933 = vsel %vm1112, %v3931, %v3932
        %v3934 = vrot.slane %v3820, 5
        %v3935 = vrot.slane %v3934, 4
        %v3936 = vrot.slane %v3821, 5
        %v3937 = vsel %vm1112, %v3935, %v3936
        %v3938 = vrot.slane %v3822, 5
        %v3939 = vrot.slane %v3938, 4
        %v3940 = vrot.slane %v3823, 5
        %v3941 = vsel %vm1112, %v3939, %v3940
        %v3942 = vrot.slane %v3824, 5
        %v3943 = vrot.slane %v3942, 4
        %v3944 = vrot.slane %v3825, 5
        %v3945 = vsel %vm1112, %v3943, %v3944
        %v3946 = vrot.slane %v3826, 5
        %v3947 = vrot.slane %v3946, 4
        %v3948 = vrot.slane %v3827, 5
        %v3949 = vsel %vm1112, %v3947, %v3948
        %v3950 = vrot.slane %v3828, 5
        %v3951 = vrot.slane %v3950, 4
        %v3952 = vrot.slane %v3829, 5
        %v3953 = vsel %vm1112, %v3951, %v3952
        %v3954 = vrot.slane %v3830, 5
        %v3955 = vrot.slane %v3954, 4
        %v3956 = vrot.slane %v3831, 5
        %v3957 = vsel %vm1112, %v3955, %v3956
        %v3959 = vunpack.c.l.b16 %v3796
        %v3960 = vunpack.c.h.b16 %v3796
        %v3961 = vpack.c.b16 %v3959, %v3959
        %v3962 = vpack.c.b16 %v3960, %v3960
        %v3964 = vshrl.u32 %v3961, 16
        %v3966 = vrot.slane %v3964, 4
        %v3967 = vshll.u32 %v3961, 16
        %v3969 = vrot.slane %v3967, 5
        %v3970 = vor.u32 %v3966, %v3969
        %v3971 = vrot.slane %v3970, 4
        %v3973 = vshll.u32 %v3962, 16
        %v3975 = vrot.slane %v3973, 5
        %v3976 = vsel %vm1011, %v3971, %v3975
        %v3977 = vrot.slane %v3961, 5
        %v3978 = vrot.slane %v3977, 4
        %v3979 = vrot.slane %v3962, 5
        %v3980 = vsel %vm1112, %v3978, %v3979
        %v3981 = vpack.c.b16 %v3804, %v2864
        %v3982 = vpack.c.b16 %v3808, %v3806
        %v3983 = vpack.c.b16 %v3812, %v3810
        %v3984 = vpack.c.b16 %v3816, %v3814
        %v3985 = vunpack.c.l.b16 %v3845
        %v3986 = vunpack.c.l.b16 %v3859
        %v3987 = vunpack.c.l.b16 %v3873
        %v3988 = vunpack.c.l.b16 %v3887
        %v3989 = vunpack.c.l.b16 %v3901
        %v3990 = vunpack.c.l.b16 %v3915
        %v3991 = vunpack.c.l.b16 %v3929
        %v3992 = vpack.c.b16 %v3985, %v3067
        %v3993 = vpack.c.b16 %v3987, %v3986
        %v3994 = vpack.c.b16 %v3989, %v3988
        %v3995 = vpack.c.b16 %v3991, %v3990
        %3996 = vrot.lane.b32.xlu0 %v3992, 96
        %v3997 = vpop.permute.xlu0 %3996
        %3998 = vrot.lane.b32.xlu0 %v3993, 96
        %v3999 = vpop.permute.xlu0 %3998
        %4000 = vrot.lane.b32.xlu0 %v3994, 96
        %v4001 = vpop.permute.xlu0 %4000
        %4002 = vrot.lane.b32.xlu0 %v3995, 96
        %v4003 = vpop.permute.xlu0 %4002
        %v4004 = vunpack.c.l.b16 %v3933
        %v4005 = vunpack.c.l.b16 %v3937
        %v4006 = vunpack.c.l.b16 %v3941
        %v4007 = vunpack.c.l.b16 %v3945
        %v4008 = vunpack.c.l.b16 %v3949
        %v4009 = vunpack.c.l.b16 %v3953
        %v4010 = vunpack.c.l.b16 %v3957
        %v4011 = vpack.c.b16 %v4004, %v3087
        %v4012 = vpack.c.b16 %v4006, %v4005
        %v4013 = vpack.c.b16 %v4008, %v4007
        %v4014 = vpack.c.b16 %v4010, %v4009
        %4015 = vrot.lane.b32.xlu0 %v4011, 64
        %v4016 = vpop.permute.xlu0 %4015
        %4017 = vrot.lane.b32.xlu0 %v4012, 64
        %v4018 = vpop.permute.xlu0 %4017
        %4019 = vrot.lane.b32.xlu0 %v4013, 64
        %v4020 = vpop.permute.xlu0 %4019
        %4021 = vrot.lane.b32.xlu0 %v4014, 64
        %v4022 = vpop.permute.xlu0 %4021
        %v4023 = vpack.c.b16 %v3806, %v3804
        %v4024 = vpack.c.b16 %v3810, %v3808
        %v4025 = vpack.c.b16 %v3814, %v3812
        %v4026 = vpack.c.b16 %v3959, %v3816
        %4027 = vrot.lane.b32.xlu0 %v4023, 32
        %v4028 = vpop.permute.xlu0 %4027
        %4029 = vrot.lane.b32.xlu0 %v4024, 32
        %v4030 = vpop.permute.xlu0 %4029
        %4031 = vrot.lane.b32.xlu0 %v4025, 32
        %v4032 = vpop.permute.xlu0 %4031
        %4033 = vrot.lane.b32.xlu0 %v4026, 32
        %v4034 = vpop.permute.xlu0 %4033
        %v4035 = vunpack.c.l.b16 %v3976
        %v4036 = vpack.c.b16 %v3986, %v3985
        %v4037 = vpack.c.b16 %v3988, %v3987
        %v4038 = vpack.c.b16 %v3990, %v3989
        %v4039 = vpack.c.b16 %v4035, %v3991
        %v4040 = vunpack.c.l.b16 %v3980
        %v4041 = vpack.c.b16 %v4005, %v4004
        %v4042 = vpack.c.b16 %v4007, %v4006
        %v4043 = vpack.c.b16 %v4009, %v4008
        %v4044 = vpack.c.b16 %v4040, %v4010
        %4045 = vrot.lane.b32.xlu0 %v4041, 96
        %v4046 = vpop.permute.xlu0 %4045
        %4047 = vrot.lane.b32.xlu0 %v4042, 96
        %v4048 = vpop.permute.xlu0 %4047
        %4049 = vrot.lane.b32.xlu0 %v4043, 96
        %v4050 = vpop.permute.xlu0 %4049
        %4051 = vrot.lane.b32.xlu0 %v4044, 96
        %v4052 = vpop.permute.xlu0 %4051
        %v4053 = vpack.c.b16 %v2864, %v3959
        %4054 = vrot.lane.b32.xlu0 %v3982, 64
        %v4055 = vpop.permute.xlu0 %4054
        %4056 = vrot.lane.b32.xlu0 %v3983, 64
        %v4057 = vpop.permute.xlu0 %4056
        %4058 = vrot.lane.b32.xlu0 %v3984, 64
        %v4059 = vpop.permute.xlu0 %4058
        %4060 = vrot.lane.b32.xlu0 %v4053, 64
        %v4061 = vpop.permute.xlu0 %4060
        %v4062 = vpack.c.b16 %v3067, %v4035
        %4063 = vrot.lane.b32.xlu0 %v3993, 32
        %v4064 = vpop.permute.xlu0 %4063
        %4065 = vrot.lane.b32.xlu0 %v3994, 32
        %v4066 = vpop.permute.xlu0 %4065
        %4067 = vrot.lane.b32.xlu0 %v3995, 32
        %v4068 = vpop.permute.xlu0 %4067
        %4069 = vrot.lane.b32.xlu0 %v4062, 32
        %v4070 = vpop.permute.xlu0 %4069
        %v4071 = vpack.c.b16 %v3087, %v4040
        %v4074 = vsel %vm1524, %v3981, %v3997
        %v4078 = vsel %vm1524, %v3982, %v3999
        %v4082 = vsel %vm1524, %v3983, %v4001
        %v4086 = vsel %vm1524, %v3984, %v4003
        %v4089 = vsel %vm650, %v3997, %v4016
        %v4092 = vsel %vm650, %v3999, %v4018
        %v4095 = vsel %vm650, %v4001, %v4020
        %v4098 = vsel %vm650, %v4003, %v4022
        %v4101 = vsel %vm1567, %v4016, %v4028
        %v4104 = vsel %vm1567, %v4018, %v4030
        %v4107 = vsel %vm1567, %v4020, %v4032
        %v4110 = vsel %vm1567, %v4022, %v4034
        %v4114 = vsel %vm1524, %v4036, %v4046
        %v4118 = vsel %vm1524, %v4037, %v4048
        %v4122 = vsel %vm1524, %v4038, %v4050
        %v4126 = vsel %vm1524, %v4039, %v4052
        %v4129 = vsel %vm650, %v4046, %v4055
        %v4132 = vsel %vm650, %v4048, %v4057
        %v4135 = vsel %vm650, %v4050, %v4059
        %v4138 = vsel %vm650, %v4052, %v4061
        %v4141 = vsel %vm1567, %v4055, %v4064
        %v4144 = vsel %vm1567, %v4057, %v4066
        %v4147 = vsel %vm1567, %v4059, %v4068
        %v4150 = vsel %vm1567, %v4061, %v4070
        %v4152 = vld [vmem:[%s8] sm:$0xf]
        %v4153 = vld [vmem:[%s8 + $0x4] sm:$0xf]
        %v4154 = vld [vmem:[%s8 + $0x8] sm:$0xf]
        %v4155 = vld [vmem:[%s8 + $0xc] sm:$0xf]
        %v4156 = vld [vmem:[%s8 + $0x10] sm:$0xf]
        %v4157 = vld [vmem:[%s8 + $0x14] sm:$0xf]
        %v4158 = vld [vmem:[%s8 + $0x18] sm:$0xf]
        %v4159 = vld [vmem:[%s8 + $0x1c] sm:$0xf]
        %v4160 = vld [vmem:[%s8 + $0x20] sm:$0xf]
        %v4161 = vld [vmem:[%s8 + $0x24] sm:$0xf]
        %v4162 = vld [vmem:[%s8 + $0x28] sm:$0xf]
        %v4163 = vld [vmem:[%s8 + $0x2c] sm:$0xf]
        %v4164 = vld [vmem:[%s8 + $0x30] sm:$0xf]
        %v4165 = vld [vmem:[%s8 + $0x34] sm:$0xf]
        %v4166 = vld [vmem:[%s8 + $0x38] sm:$0xf]
        %v4167 = vld [vmem:[%s8 + $0x3c] sm:$0xf]
        %v4168 = vld [vmem:[%s8 + $0x40] sm:$0xf]
        %v4169 = vld [vmem:[%s8 + $0x44] sm:$0xf]
        %v4170 = vld [vmem:[%s8 + $0x48] sm:$0xf]
        %v4171 = vld [vmem:[%s8 + $0x4c] sm:$0xf]
        %v4172 = vld [vmem:[%s8 + $0x50] sm:$0xf]
        %v4173 = vld [vmem:[%s8 + $0x54] sm:$0xf]
        %v4174 = vld [vmem:[%s8 + $0x58] sm:$0xf]
        %v4175 = vld [vmem:[%s8 + $0x5c] sm:$0xf]
        %v4176 = vld [vmem:[%s8 + $0x60] sm:$0xf]
        %v4177 = vld [vmem:[%s8 + $0x64] sm:$0xf]
        %v4178 = vld [vmem:[%s8 + $0x68] sm:$0xf]
        %v4179 = vld [vmem:[%s8 + $0x6c] sm:$0xf]
        %v4180 = vld [vmem:[%s8 + $0x70] sm:$0xf]
        %v4181 = vld [vmem:[%s8 + $0x74] sm:$0xf]
        %v4182 = vld [vmem:[%s8 + $0x78] sm:$0xf]
        %v4183 = vld [vmem:[%s8 + $0x7c] sm:$0xf]
        %v4184 = vld [vmem:[%s8 + $0x80] sm:$0xf]
        %v4185 = vld [vmem:[%s8 + $0x84] sm:$0xf]
        %v4186 = vld [vmem:[%s8 + $0x88] sm:$0xf]
        %v4187 = vld [vmem:[%s8 + $0x8c] sm:$0xf]
        %v4188 = vld [vmem:[%s8 + $0x90] sm:$0xf]
        %v4189 = vld [vmem:[%s8 + $0x94] sm:$0xf]
        %v4190 = vld [vmem:[%s8 + $0x98] sm:$0xf]
        %v4191 = vld [vmem:[%s8 + $0x9c] sm:$0xf]
        %v4192 = vld [vmem:[%s8 + $0xa0] sm:$0xf]
        %v4193 = vld [vmem:[%s8 + $0xa4] sm:$0xf]
        %v4194 = vld [vmem:[%s8 + $0xa8] sm:$0xf]
        %v4195 = vld [vmem:[%s8 + $0xac] sm:$0xf]
        %v4196 = vld [vmem:[%s8 + $0xb0] sm:$0xf]
        %v4197 = vld [vmem:[%s8 + $0xb4] sm:$0xf]
        %v4198 = vld [vmem:[%s8 + $0xb8] sm:$0xf]
        %v4199 = vld [vmem:[%s8 + $0xbc] sm:$0xf]
        %v4200 = vld [vmem:[%s8 + $0xc0] sm:$0xf]
        %v4201 = vld [vmem:[%s8 + $0xc4] sm:$0xf]
        %v4202 = vld [vmem:[%s8 + $0xc8] sm:$0xf]
        %v4203 = vld [vmem:[%s8 + $0xcc] sm:$0xf]
        %v4204 = vld [vmem:[%s8 + $0xd0] sm:$0xf]
        %v4205 = vld [vmem:[%s8 + $0xd4] sm:$0xf]
        %v4206 = vld [vmem:[%s8 + $0xd8] sm:$0xf]
        %v4207 = vld [vmem:[%s8 + $0xdc] sm:$0xf]
        %v4208 = vld [vmem:[%s8 + $0xe0] sm:$0xf]
        %v4209 = vld [vmem:[%s8 + $0xe4] sm:$0xf]
        %v4210 = vld [vmem:[%s8 + $0xe8] sm:$0xf]
        %v4211 = vld [vmem:[%s8 + $0xec] sm:$0xf]
        %v4212 = vld [vmem:[%s8 + $0xf0] sm:$0xf]
        %v4213 = vld [vmem:[%s8 + $0xf4] sm:$0xf]
        %v4214 = vld [vmem:[%s8 + $0xf8] sm:$0xf]
        %v4215 = vld [vmem:[%s8 + $0xfc] sm:$0xf]
        %v4216 = vld [vmem:[%s8 + $0x100] sm:$0xf]
        %v4217 = vld [vmem:[%s8 + $0x104] sm:$0xf]
        %v4218 = vld [vmem:[%s8 + $0x108] sm:$0xf]
        %v4219 = vld [vmem:[%s8 + $0x10c] sm:$0xf]
        %v4220 = vld [vmem:[%s8 + $0x110] sm:$0xf]
        %v4221 = vld [vmem:[%s8 + $0x114] sm:$0xf]
        %v4222 = vld [vmem:[%s8 + $0x118] sm:$0xf]
        %v4223 = vld [vmem:[%s8 + $0x11c] sm:$0xf]
        %v4224 = vld [vmem:[%s8 + $0x120] sm:$0xf]
        %v4225 = vld [vmem:[%s8 + $0x124] sm:$0xf]
        %v4226 = vld [vmem:[%s8 + $0x128] sm:$0xf]
        %v4227 = vld [vmem:[%s8 + $0x12c] sm:$0xf]
        %v4228 = vld [vmem:[%s8 + $0x130] sm:$0xf]
        %v4229 = vld [vmem:[%s8 + $0x134] sm:$0xf]
        %v4230 = vld [vmem:[%s8 + $0x138] sm:$0xf]
        %v4231 = vld [vmem:[%s8 + $0x13c] sm:$0xf]
        %v4232 = vld [vmem:[%s8 + $0x140] sm:$0xf]
        %v4233 = vld [vmem:[%s8 + $0x144] sm:$0xf]
        %v4234 = vld [vmem:[%s8 + $0x148] sm:$0xf]
        %v4235 = vld [vmem:[%s8 + $0x14c] sm:$0xf]
        %v4236 = vld [vmem:[%s8 + $0x150] sm:$0xf]
        %v4237 = vld [vmem:[%s8 + $0x154] sm:$0xf]
        %v4238 = vld [vmem:[%s8 + $0x158] sm:$0xf]
        %v4239 = vld [vmem:[%s8 + $0x15c] sm:$0xf]
        %v4240 = vld [vmem:[%s8 + $0x160] sm:$0xf]
        %v4241 = vld [vmem:[%s8 + $0x164] sm:$0xf]
        %v4242 = vld [vmem:[%s8 + $0x168] sm:$0xf]
        %v4243 = vld [vmem:[%s8 + $0x16c] sm:$0xf]
        %v4244 = vld [vmem:[%s8 + $0x170] sm:$0xf]
        %v4245 = vld [vmem:[%s8 + $0x174] sm:$0xf]
        %v4246 = vld [vmem:[%s8 + $0x178] sm:$0xf]
        %v4247 = vld [vmem:[%s8 + $0x17c] sm:$0xf]
        %v4248 = vld [vmem:[%s8 + $0x180] sm:$0xf]
        %v4249 = vld [vmem:[%s8 + $0x184] sm:$0xf]
        %v4250 = vld [vmem:[%s8 + $0x188] sm:$0xf]
        %v4251 = vld [vmem:[%s8 + $0x18c] sm:$0xf]
        %v4252 = vld [vmem:[%s8 + $0x190] sm:$0xf]
        %v4253 = vld [vmem:[%s8 + $0x194] sm:$0xf]
        %v4254 = vld [vmem:[%s8 + $0x198] sm:$0xf]
        %v4255 = vld [vmem:[%s8 + $0x19c] sm:$0xf]
        %v4256 = vld [vmem:[%s8 + $0x1a0] sm:$0xf]
        %v4257 = vld [vmem:[%s8 + $0x1a4] sm:$0xf]
        %v4258 = vld [vmem:[%s8 + $0x1a8] sm:$0xf]
        %v4259 = vld [vmem:[%s8 + $0x1ac] sm:$0xf]
        %v4260 = vld [vmem:[%s9] sm:$0x1]
        %v4262 = vlaneseq
        %v4263 = vshrl.u32 %v4262, 7
        %v4264 = vsub.s32 0, %v4263
        %v4265 = vrot.slane %v4260, %v4264
        %v4375 = vunpack.c.l.b16 %v4152
        %v4376 = vunpack.c.l.b16 %v4153
        %v4377 = vunpack.c.l.b16 %v4154
        %v4378 = vunpack.c.l.b16 %v4155
        %v4379 = vunpack.c.l.b16 %v4156
        %v4380 = vunpack.c.l.b16 %v4157
        %v4381 = vunpack.c.l.b16 %v4158
        %v4382 = vunpack.c.l.b16 %v4159
        %v4383 = vunpack.c.l.b16 %v4160
        %v4384 = vunpack.c.l.b16 %v4161
        %v4385 = vunpack.c.l.b16 %v4162
        %v4386 = vunpack.c.l.b16 %v4163
        %v4387 = vunpack.c.l.b16 %v4164
        %v4388 = vunpack.c.l.b16 %v4165
        %v4389 = vunpack.c.l.b16 %v4166
        %v4390 = vunpack.c.l.b16 %v4167
        %v4391 = vunpack.c.l.b16 %v4168
        %v4392 = vunpack.c.l.b16 %v4169
        %v4393 = vunpack.c.l.b16 %v4170
        %v4394 = vunpack.c.l.b16 %v4171
        %v4395 = vunpack.c.l.b16 %v4172
        %v4396 = vunpack.c.l.b16 %v4173
        %v4397 = vunpack.c.l.b16 %v4174
        %v4398 = vunpack.c.l.b16 %v4175
        %v4399 = vunpack.c.l.b16 %v4176
        %v4400 = vunpack.c.l.b16 %v4177
        %v4401 = vunpack.c.l.b16 %v4178
        %v4402 = vunpack.c.l.b16 %v4179
        %v4403 = vunpack.c.l.b16 %v4180
        %v4404 = vunpack.c.l.b16 %v4181
        %v4405 = vunpack.c.l.b16 %v4182
        %v4406 = vunpack.c.l.b16 %v4183
        %v4407 = vunpack.c.l.b16 %v4184
        %v4408 = vunpack.c.l.b16 %v4185
        %v4409 = vunpack.c.l.b16 %v4186
        %v4410 = vunpack.c.l.b16 %v4187
        %v4411 = vunpack.c.l.b16 %v4188
        %v4412 = vunpack.c.l.b16 %v4189
        %v4413 = vunpack.c.l.b16 %v4190
        %v4414 = vunpack.c.l.b16 %v4191
        %v4415 = vunpack.c.l.b16 %v4192
        %v4416 = vunpack.c.l.b16 %v4193
        %v4417 = vunpack.c.l.b16 %v4194
        %v4418 = vunpack.c.l.b16 %v4195
        %v4419 = vunpack.c.l.b16 %v4196
        %v4420 = vunpack.c.l.b16 %v4197
        %v4421 = vunpack.c.l.b16 %v4198
        %v4422 = vunpack.c.l.b16 %v4199
        %v4423 = vunpack.c.l.b16 %v4200
        %v4424 = vunpack.c.l.b16 %v4201
        %v4425 = vunpack.c.l.b16 %v4202
        %v4426 = vunpack.c.l.b16 %v4203
        %v4427 = vunpack.c.l.b16 %v4204
        %v4428 = vunpack.c.l.b16 %v4205
        %v4429 = vunpack.c.l.b16 %v4206
        %v4430 = vunpack.c.l.b16 %v4207
        %v4431 = vunpack.c.l.b16 %v4208
        %v4432 = vunpack.c.l.b16 %v4209
        %v4433 = vunpack.c.l.b16 %v4210
        %v4434 = vunpack.c.l.b16 %v4211
        %v4435 = vunpack.c.l.b16 %v4212
        %v4436 = vunpack.c.l.b16 %v4213
        %v4437 = vunpack.c.l.b16 %v4214
        %v4438 = vunpack.c.l.b16 %v4215
        %v4439 = vunpack.c.l.b16 %v4216
        %v4440 = vunpack.c.l.b16 %v4217
        %v4441 = vunpack.c.l.b16 %v4218
        %v4442 = vunpack.c.l.b16 %v4219
        %v4443 = vunpack.c.l.b16 %v4220
        %v4444 = vunpack.c.l.b16 %v4221
        %v4445 = vunpack.c.l.b16 %v4222
        %v4446 = vunpack.c.l.b16 %v4223
        %v4447 = vunpack.c.l.b16 %v4224
        %v4448 = vunpack.c.l.b16 %v4225
        %v4449 = vunpack.c.l.b16 %v4226
        %v4450 = vunpack.c.l.b16 %v4227
        %v4451 = vunpack.c.l.b16 %v4228
        %v4452 = vunpack.c.l.b16 %v4229
        %v4453 = vunpack.c.l.b16 %v4230
        %v4454 = vunpack.c.l.b16 %v4231
        %v4455 = vunpack.c.l.b16 %v4232
        %v4456 = vunpack.c.l.b16 %v4233
        %v4457 = vunpack.c.l.b16 %v4234
        %v4458 = vunpack.c.l.b16 %v4235
        %v4459 = vunpack.c.l.b16 %v4236
        %v4460 = vunpack.c.l.b16 %v4237
        %v4461 = vunpack.c.l.b16 %v4238
        %v4462 = vunpack.c.l.b16 %v4239
        %v4463 = vunpack.c.l.b16 %v4240
        %v4464 = vunpack.c.l.b16 %v4241
        %v4465 = vunpack.c.l.b16 %v4242
        %v4466 = vunpack.c.l.b16 %v4243
        %v4467 = vunpack.c.l.b16 %v4244
        %v4468 = vunpack.c.l.b16 %v4245
        %v4469 = vunpack.c.l.b16 %v4246
        %v4470 = vunpack.c.l.b16 %v4247
        %v4471 = vunpack.c.l.b16 %v4248
        %v4472 = vunpack.c.l.b16 %v4249
        %v4473 = vunpack.c.l.b16 %v4250
        %v4474 = vunpack.c.l.b16 %v4251
        %v4475 = vunpack.c.l.b16 %v4252
        %v4476 = vunpack.c.l.b16 %v4253
        %v4477 = vunpack.c.l.b16 %v4254
        %v4478 = vunpack.c.l.b16 %v4255
        %v4479 = vunpack.c.l.b16 %v4256
        %v4480 = vunpack.c.l.b16 %v4257
        %v4481 = vunpack.c.l.b16 %v4258
        %v4482 = vunpack.c.l.b16 %v4259
        %v4483 = vpack.c.b16 %v4376, %v4375
        %v4484 = vpack.c.b16 %v4378, %v4377
        %v4485 = vpack.c.b16 %v4380, %v4379
        %v4486 = vpack.c.b16 %v4382, %v4381
        %v4487 = vpack.c.b16 %v4384, %v4383
        %v4488 = vpack.c.b16 %v4386, %v4385
        %v4489 = vpack.c.b16 %v4388, %v4387
        %v4490 = vpack.c.b16 %v4390, %v4389
        %v4491 = vpack.c.b16 %v4392, %v4391
        %v4492 = vpack.c.b16 %v4394, %v4393
        %v4493 = vpack.c.b16 %v4396, %v4395
        %v4494 = vpack.c.b16 %v4398, %v4397
        %v4495 = vpack.c.b16 %v4400, %v4399
        %v4496 = vpack.c.b16 %v4402, %v4401
        %v4497 = vpack.c.b16 %v4404, %v4403
        %v4498 = vpack.c.b16 %v4406, %v4405
        %v4499 = vpack.c.b16 %v4408, %v4407
        %v4500 = vpack.c.b16 %v4410, %v4409
        %v4501 = vpack.c.b16 %v4412, %v4411
        %v4502 = vpack.c.b16 %v4414, %v4413
        %v4503 = vpack.c.b16 %v4416, %v4415
        %v4504 = vpack.c.b16 %v4418, %v4417
        %v4505 = vpack.c.b16 %v4420, %v4419
        %v4506 = vpack.c.b16 %v4422, %v4421
        %v4507 = vpack.c.b16 %v4424, %v4423
        %v4508 = vpack.c.b16 %v4426, %v4425
        %v4509 = vpack.c.b16 %v4428, %v4427
        %v4510 = vpack.c.b16 %v4430, %v4429
        %v4511 = vpack.c.b16 %v4432, %v4431
        %v4512 = vpack.c.b16 %v4434, %v4433
        %v4513 = vpack.c.b16 %v4436, %v4435
        %v4514 = vpack.c.b16 %v4438, %v4437
        %v4515 = vpack.c.b16 %v4440, %v4439
        %v4516 = vpack.c.b16 %v4442, %v4441
        %v4517 = vpack.c.b16 %v4444, %v4443
        %v4518 = vpack.c.b16 %v4446, %v4445
        %v4519 = vpack.c.b16 %v4448, %v4447
        %v4520 = vpack.c.b16 %v4450, %v4449
        %v4521 = vpack.c.b16 %v4452, %v4451
        %v4522 = vpack.c.b16 %v4454, %v4453
        %v4523 = vpack.c.b16 %v4456, %v4455
        %v4524 = vpack.c.b16 %v4458, %v4457
        %v4525 = vpack.c.b16 %v4460, %v4459
        %v4526 = vpack.c.b16 %v4462, %v4461
        %v4527 = vpack.c.b16 %v4464, %v4463
        %v4528 = vpack.c.b16 %v4466, %v4465
        %v4529 = vpack.c.b16 %v4468, %v4467
        %v4530 = vpack.c.b16 %v4470, %v4469
        %v4531 = vpack.c.b16 %v4472, %v4471
        %v4532 = vpack.c.b16 %v4474, %v4473
        %v4533 = vpack.c.b16 %v4476, %v4475
        %v4534 = vpack.c.b16 %v4478, %v4477
        %v4535 = vpack.c.b16 %v4480, %v4479
        %v4536 = vpack.c.b16 %v4482, %v4481
        %v4592 = vsel %vm1524, %v4012, 0
        %v4595 = vsel %vm1524, %v4013, 0
        %v4598 = vsel %vm1524, %v4014, 0
        %v4601 = vsel %vm1524, %v4071, 0
        %4603 = vmatprep.subr.bf16.mxu0 0
        %4604 = vmatpush1.bf16.msra.mxu0 %v4490
        %4605 = vmatprep.subr.bf16.mxu0 0
        %4606 = vmatpush1.bf16.msra.mxu0 %v4489
        %4607 = vmatprep.subr.bf16.mxu0 0
        %4608 = vmatpush1.bf16.msra.mxu0 %v4488
        %4609 = vmatprep.subr.bf16.mxu0 0
        %4610 = vmatpush1.bf16.msra.mxu0 %v4487
        %4611 = vmatprep.subr.bf16.mxu0 0
        %4612 = vmatpush1.bf16.msra.mxu0 %v4486
        %4613 = vmatprep.subr.bf16.mxu0 0
        %4614 = vmatpush1.bf16.msra.mxu0 %v4485
        %4615 = vmatprep.subr.bf16.mxu0 0
        %4616 = vmatpush1.bf16.msra.mxu0 %v4484
        %4617 = vmatprep.subr.bf16.mxu0 0
        %4618 = vmatpush1.bf16.msra.mxu0 %v4483
        %4619 = vmatprep.subr.bf16.mxu0 0
        %4620 = vmatpush2.bf16.msra.mxu0 %v4498
        %4621 = vmatprep.subr.bf16.mxu0 0
        %4622 = vmatpush2.bf16.msra.mxu0 %v4497
        %4623 = vmatprep.subr.bf16.mxu0 0
        %4624 = vmatpush2.bf16.msra.mxu0 %v4496
        %4625 = vmatprep.subr.bf16.mxu0 0
        %4626 = vmatpush2.bf16.msra.mxu0 %v4495
        %4627 = vmatprep.subr.bf16.mxu0 0
        %4628 = vmatpush2.bf16.msra.mxu0 %v4494
        %4629 = vmatprep.subr.bf16.mxu0 0
        %4630 = vmatpush2.bf16.msra.mxu0 %v4493
        %4631 = vmatprep.subr.bf16.mxu0 0
        %4632 = vmatpush2.bf16.msra.mxu0 %v4492
        %4633 = vmatprep.subr.bf16.mxu0 0
        %4634 = vmatpush2.bf16.msra.mxu0 %v4491
        %4635 = vmatprep.mubr.bf16.mxu0 %v4089
        %4636 = vmatmul.mubr.bf16.gmra.mxu0 %v4074
        %v4637 = vpop.f32.mrf.mxu0
        %v4638 = vadd.f32 %v4265, %v4637
        %v4639 = vpop.f32.mrf.mxu0
        %v4640 = vpop.f32.mrf.mxu0
        %v4641 = vadd.f32 %v4265, %v4640
        %v4642 = vpop.f32.mrf.mxu0
        %4643 = vmatprep.mubr.bf16.mxu0 %v4092
        %4644 = vmatmul.mubr.bf16.gmra.mxu0 %v4078
        %v4645 = vpop.f32.mrf.mxu0
        %v4646 = vadd.f32 %v4265, %v4645
        %v4647 = vpop.f32.mrf.mxu0
        %v4648 = vpop.f32.mrf.mxu0
        %v4649 = vadd.f32 %v4265, %v4648
        %v4650 = vpop.f32.mrf.mxu0
        %4651 = vmatprep.mubr.bf16.mxu0 %v4095
        %4652 = vmatmul.mubr.bf16.gmra.mxu0 %v4082
        %v4653 = vpop.f32.mrf.mxu0
        %v4654 = vadd.f32 %v4265, %v4653
        %v4655 = vpop.f32.mrf.mxu0
        %v4656 = vpop.f32.mrf.mxu0
        %v4657 = vadd.f32 %v4265, %v4656
        %v4658 = vpop.f32.mrf.mxu0
        %4659 = vmatprep.mubr.bf16.mxu0 %v4098
        %4660 = vmatmul.mubr.bf16.gmra.mxu0 %v4086
        %v4661 = vpop.f32.mrf.mxu0
        %v4662 = vadd.f32 %v4265, %v4661
        %v4663 = vpop.f32.mrf.mxu0
        %v4664 = vpop.f32.mrf.mxu0
        %v4665 = vadd.f32 %v4265, %v4664
        %v4666 = vpop.f32.mrf.mxu0
        %4667 = vdwg.mxu0
        %4668 = vmatprep.subr.bf16.mxu0 0
        %4669 = vmatpush1.bf16.msra.mxu0 %v4506
        %4670 = vmatprep.subr.bf16.mxu0 0
        %4671 = vmatpush1.bf16.msra.mxu0 %v4505
        %4672 = vmatprep.subr.bf16.mxu0 0
        %4673 = vmatpush1.bf16.msra.mxu0 %v4504
        %4674 = vmatprep.subr.bf16.mxu0 0
        %4675 = vmatpush1.bf16.msra.mxu0 %v4503
        %4676 = vmatprep.subr.bf16.mxu0 0
        %4677 = vmatpush1.bf16.msra.mxu0 %v4502
        %4678 = vmatprep.subr.bf16.mxu0 0
        %4679 = vmatpush1.bf16.msra.mxu0 %v4501
        %4680 = vmatprep.subr.bf16.mxu0 0
        %4681 = vmatpush1.bf16.msra.mxu0 %v4500
        %4682 = vmatprep.subr.bf16.mxu0 0
        %4683 = vmatpush1.bf16.msra.mxu0 %v4499
        %4684 = vmatprep.subr.bf16.mxu0 0
        %4685 = vmatpush2.bf16.msra.mxu0 %v4514
        %4686 = vmatprep.subr.bf16.mxu0 0
        %4687 = vmatpush2.bf16.msra.mxu0 %v4513
        %4688 = vmatprep.subr.bf16.mxu0 0
        %4689 = vmatpush2.bf16.msra.mxu0 %v4512
        %4690 = vmatprep.subr.bf16.mxu0 0
        %4691 = vmatpush2.bf16.msra.mxu0 %v4511
        %4692 = vmatprep.subr.bf16.mxu0 0
        %4693 = vmatpush2.bf16.msra.mxu0 %v4510
        %4694 = vmatprep.subr.bf16.mxu0 0
        %4695 = vmatpush2.bf16.msra.mxu0 %v4509
        %4696 = vmatprep.subr.bf16.mxu0 0
        %4697 = vmatpush2.bf16.msra.mxu0 %v4508
        %4698 = vmatprep.subr.bf16.mxu0 0
        %4699 = vmatpush2.bf16.msra.mxu0 %v4507
        %4700 = vmatprep.mubr.bf16.mxu0 %v4114
        %4701 = vmatmul.mubr.bf16.gmra.mxu0 %v4101
        %v4702 = vpop.f32.mrf.mxu0
        %v4703 = vadd.f32 %v4638, %v4702
        %v4704 = vpop.f32.mrf.mxu0
        %v4705 = vpop.f32.mrf.mxu0
        %v4706 = vadd.f32 %v4641, %v4705
        %v4707 = vpop.f32.mrf.mxu0
        %4708 = vmatprep.mubr.bf16.mxu0 %v4118
        %4709 = vmatmul.mubr.bf16.gmra.mxu0 %v4104
        %v4710 = vpop.f32.mrf.mxu0
        %v4711 = vadd.f32 %v4646, %v4710
        %v4712 = vpop.f32.mrf.mxu0
        %v4713 = vpop.f32.mrf.mxu0
        %v4714 = vadd.f32 %v4649, %v4713
        %v4715 = vpop.f32.mrf.mxu0
        %4716 = vmatprep.mubr.bf16.mxu0 %v4122
        %4717 = vmatmul.mubr.bf16.gmra.mxu0 %v4107
        %v4718 = vpop.f32.mrf.mxu0
        %v4719 = vadd.f32 %v4654, %v4718
        %v4720 = vpop.f32.mrf.mxu0
        %v4721 = vpop.f32.mrf.mxu0
        %v4722 = vadd.f32 %v4657, %v4721
        %v4723 = vpop.f32.mrf.mxu0
        %4724 = vmatprep.mubr.bf16.mxu0 %v4126
        %4725 = vmatmul.mubr.bf16.gmra.mxu0 %v4110
        %v4726 = vpop.f32.mrf.mxu0
        %v4727 = vadd.f32 %v4662, %v4726
        %v4728 = vpop.f32.mrf.mxu0
        %v4729 = vpop.f32.mrf.mxu0
        %v4730 = vadd.f32 %v4665, %v4729
        %v4731 = vpop.f32.mrf.mxu0
        %4732 = vdwg.mxu0
        %4733 = vmatprep.subr.bf16.mxu0 0
        %4734 = vmatpush1.bf16.msra.mxu0 %v4522
        %4735 = vmatprep.subr.bf16.mxu0 0
        %4736 = vmatpush1.bf16.msra.mxu0 %v4521
        %4737 = vmatprep.subr.bf16.mxu0 0
        %4738 = vmatpush1.bf16.msra.mxu0 %v4520
        %4739 = vmatprep.subr.bf16.mxu0 0
        %4740 = vmatpush1.bf16.msra.mxu0 %v4519
        %4741 = vmatprep.subr.bf16.mxu0 0
        %4742 = vmatpush1.bf16.msra.mxu0 %v4518
        %4743 = vmatprep.subr.bf16.mxu0 0
        %4744 = vmatpush1.bf16.msra.mxu0 %v4517
        %4745 = vmatprep.subr.bf16.mxu0 0
        %4746 = vmatpush1.bf16.msra.mxu0 %v4516
        %4747 = vmatprep.subr.bf16.mxu0 0
        %4748 = vmatpush1.bf16.msra.mxu0 %v4515
        %4749 = vmatprep.subr.bf16.mxu0 0
        %4750 = vmatpush2.bf16.msra.mxu0 %v4530
        %4751 = vmatprep.subr.bf16.mxu0 0
        %4752 = vmatpush2.bf16.msra.mxu0 %v4529
        %4753 = vmatprep.subr.bf16.mxu0 0
        %4754 = vmatpush2.bf16.msra.mxu0 %v4528
        %4755 = vmatprep.subr.bf16.mxu0 0
        %4756 = vmatpush2.bf16.msra.mxu0 %v4527
        %4757 = vmatprep.subr.bf16.mxu0 0
        %4758 = vmatpush2.bf16.msra.mxu0 %v4526
        %4759 = vmatprep.subr.bf16.mxu0 0
        %4760 = vmatpush2.bf16.msra.mxu0 %v4525
        %4761 = vmatprep.subr.bf16.mxu0 0
        %4762 = vmatpush2.bf16.msra.mxu0 %v4524
        %4763 = vmatprep.subr.bf16.mxu0 0
        %4764 = vmatpush2.bf16.msra.mxu0 %v4523
        %4765 = vmatprep.mubr.bf16.mxu0 %v4141
        %4766 = vmatmul.mubr.bf16.gmra.mxu0 %v4129
        %v4767 = vpop.f32.mrf.mxu0
        %v4768 = vadd.f32 %v4703, %v4767
        %v4769 = vpop.f32.mrf.mxu0
        %v4770 = vpop.f32.mrf.mxu0
        %v4771 = vadd.f32 %v4706, %v4770
        %v4772 = vpop.f32.mrf.mxu0
        %4773 = vmatprep.mubr.bf16.mxu0 %v4144
        %4774 = vmatmul.mubr.bf16.gmra.mxu0 %v4132
        %v4775 = vpop.f32.mrf.mxu0
        %v4776 = vadd.f32 %v4711, %v4775
        %v4777 = vpop.f32.mrf.mxu0
        %v4778 = vpop.f32.mrf.mxu0
        %v4779 = vadd.f32 %v4714, %v4778
        %v4780 = vpop.f32.mrf.mxu0
        %4781 = vmatprep.mubr.bf16.mxu0 %v4147
        %4782 = vmatmul.mubr.bf16.gmra.mxu0 %v4135
        %v4783 = vpop.f32.mrf.mxu0
        %v4784 = vadd.f32 %v4719, %v4783
        %v4785 = vpop.f32.mrf.mxu0
        %v4786 = vpop.f32.mrf.mxu0
        %v4787 = vadd.f32 %v4722, %v4786
        %v4788 = vpop.f32.mrf.mxu0
        %4789 = vmatprep.mubr.bf16.mxu0 %v4150
        %4790 = vmatmul.mubr.bf16.gmra.mxu0 %v4138
        %v4791 = vpop.f32.mrf.mxu0
        %v4792 = vadd.f32 %v4727, %v4791
        %v4793 = vpop.f32.mrf.mxu0
        %v4794 = vpop.f32.mrf.mxu0
        %v4795 = vadd.f32 %v4730, %v4794
        %v4796 = vpop.f32.mrf.mxu0
        %4797 = vdwg.mxu0
        %4798 = vmatprep.subr.bf16.mxu0 0
        %4799 = vmatpush1.bf16.msra.mxu0 0
        %4800 = vmatprep.subr.bf16.mxu0 0
        %4801 = vmatpush1.bf16.msra.mxu0 0
        %4802 = vmatprep.subr.bf16.mxu0 0
        %4803 = vmatpush1.bf16.msra.mxu0 %v4536
        %4804 = vmatprep.subr.bf16.mxu0 0
        %4805 = vmatpush1.bf16.msra.mxu0 %v4535
        %4806 = vmatprep.subr.bf16.mxu0 0
        %4807 = vmatpush1.bf16.msra.mxu0 %v4534
        %4808 = vmatprep.subr.bf16.mxu0 0
        %4809 = vmatpush1.bf16.msra.mxu0 %v4533
        %4810 = vmatprep.subr.bf16.mxu0 0
        %4811 = vmatpush1.bf16.msra.mxu0 %v4532
        %4812 = vmatprep.subr.bf16.mxu0 0
        %4813 = vmatpush1.bf16.msra.mxu0 %v4531
        %4814 = vmatprep.subr.bf16.mxu0 0
        %4815 = vmatpush2.bf16.msra.mxu0 0
        %4816 = vmatprep.subr.bf16.mxu0 0
        %4817 = vmatpush2.bf16.msra.mxu0 0
        %4818 = vmatprep.subr.bf16.mxu0 0
        %4819 = vmatpush2.bf16.msra.mxu0 0
        %4820 = vmatprep.subr.bf16.mxu0 0
        %4821 = vmatpush2.bf16.msra.mxu0 0
        %4822 = vmatprep.subr.bf16.mxu0 0
        %4823 = vmatpush2.bf16.msra.mxu0 0
        %4824 = vmatprep.subr.bf16.mxu0 0
        %4825 = vmatpush2.bf16.msra.mxu0 0
        %4826 = vmatprep.subr.bf16.mxu0 0
        %4827 = vmatpush2.bf16.msra.mxu0 0
        %4828 = vmatprep.subr.bf16.mxu0 0
        %4829 = vmatpush2.bf16.msra.mxu0 0
        %4830 = vmatprep.mubr.bf16.mxu0 0
        %4831 = vmatmul.mubr.bf16.gmra.mxu0 %v4592
        %v4832 = vpop.f32.mrf.mxu0
        %v4833 = vadd.f32 %v4768, %v4832
        %v4834 = vpop.f32.mrf.mxu0
        %v4835 = vpop.f32.mrf.mxu0
        %v4836 = vadd.f32 %v4771, %v4835
        %v4837 = vpop.f32.mrf.mxu0
        %4838 = vmatprep.mubr.bf16.mxu0 0
        %4839 = vmatmul.mubr.bf16.gmra.mxu0 %v4595
        %v4840 = vpop.f32.mrf.mxu0
        %v4841 = vadd.f32 %v4776, %v4840
        %v4842 = vpop.f32.mrf.mxu0
        %v4843 = vpop.f32.mrf.mxu0
        %v4844 = vadd.f32 %v4779, %v4843
        %v4845 = vpop.f32.mrf.mxu0
        %4846 = vmatprep.mubr.bf16.mxu0 0
        %4847 = vmatmul.mubr.bf16.gmra.mxu0 %v4598
        %v4848 = vpop.f32.mrf.mxu0
        %v4849 = vadd.f32 %v4784, %v4848
        %v4850 = vpop.f32.mrf.mxu0
        %v4851 = vpop.f32.mrf.mxu0
        %v4852 = vadd.f32 %v4787, %v4851
        %v4853 = vpop.f32.mrf.mxu0
        %4854 = vmatprep.mubr.bf16.mxu0 0
        %4855 = vmatmul.mubr.bf16.gmra.mxu0 %v4601
        %v4856 = vpop.f32.mrf.mxu0
        %v4857 = vadd.f32 %v4792, %v4856
        %v4858 = vpop.f32.mrf.mxu0
        %v4859 = vpop.f32.mrf.mxu0
        %v4860 = vadd.f32 %v4795, %v4859
        %v4861 = vpop.f32.mrf.mxu0
        %4862 = vdwg.mxu0
        %v4863 = vmax.f32 %v4833, 0.0
        %v4864 = vmax.f32 %v4836, 0.0
        %v4865 = vmax.f32 %v4841, 0.0
        %v4866 = vmax.f32 %v4844, 0.0
        %v4867 = vmax.f32 %v4849, 0.0
        %v4868 = vmax.f32 %v4852, 0.0
        %v4869 = vmax.f32 %v4857, 0.0
        %v4870 = vmax.f32 %v4860, 0.0
        %4887 = vrot.lane.b32.xlu0 %v700, 48
        %v4888 = vpop.permute.xlu0 %4887
        %4889 = vrot.lane.b32.xlu0 %v771, 48
        %v4890 = vpop.permute.xlu0 %4889
        %4891 = vrot.lane.b32.xlu0 %v704, 48
        %v4892 = vpop.permute.xlu0 %4891
        %4893 = vrot.lane.b32.xlu0 %v774, 48
        %v4894 = vpop.permute.xlu0 %4893
        %4895 = vrot.lane.b32.xlu0 %v710, 48
        %v4896 = vpop.permute.xlu0 %4895
        %4897 = vrot.lane.b32.xlu0 %v779, 48
        %v4898 = vpop.permute.xlu0 %4897
        %4899 = vrot.lane.b32.xlu0 %v714, 48
        %v4900 = vpop.permute.xlu0 %4899
        %4901 = vrot.lane.b32.xlu0 %v782, 48
        %v4902 = vpop.permute.xlu0 %4901
        %4903 = vrot.lane.b32.xlu0 %v720, 48
        %v4904 = vpop.permute.xlu0 %4903
        %4905 = vrot.lane.b32.xlu0 %v787, 48
        %v4906 = vpop.permute.xlu0 %4905
        %4907 = vrot.lane.b32.xlu0 %v724, 48
        %v4908 = vpop.permute.xlu0 %4907
        %4909 = vrot.lane.b32.xlu0 %v790, 48
        %v4910 = vpop.permute.xlu0 %4909
        %4911 = vrot.lane.b32.xlu0 %v730, 48
        %v4912 = vpop.permute.xlu0 %4911
        %4913 = vrot.lane.b32.xlu0 %v795, 48
        %v4914 = vpop.permute.xlu0 %4913
        %4915 = vrot.lane.b32.xlu0 %v734, 48
        %v4916 = vpop.permute.xlu0 %4915
        %4917 = vrot.lane.b32.xlu0 %v798, 48
        %v4918 = vpop.permute.xlu0 %4917
        %v4919 = vsel %vm1512, %v4888, %v4890
        %v4920 = vsel %vm1512, %v4892, %v4894
        %v4921 = vsel %vm1512, %v4896, %v4898
        %v4922 = vsel %vm1512, %v4900, %v4902
        %v4923 = vsel %vm1512, %v4904, %v4906
        %v4924 = vsel %vm1512, %v4908, %v4910
        %v4925 = vsel %vm1512, %v4912, %v4914
        %v4926 = vsel %vm1512, %v4916, %v4918
        %v4928 = vrot.slane 0.0, 7
        %v4929 = vrot.slane %v4919, 7
        %v4930 = vrot.slane %v4920, 7
        %v4931 = vrot.slane %v4921, 7
        %v4932 = vrot.slane %v4922, 7
        %v4933 = vrot.slane %v4923, 7
        %v4934 = vrot.slane %v4924, 7
        %v4935 = vrot.slane %v4925, 7
        %v4936 = vrot.slane %v4926, 7
        %v4946 = vsel %vm944, 0.0, %v4928
        %v4947 = vsel %vm944, 0.0, %v4929
        %v4948 = vsel %vm944, 0.0, %v4930
        %v4949 = vsel %vm944, 0.0, %v4931
        %v4950 = vsel %vm944, 0.0, %v4932
        %v4951 = vsel %vm944, 0.0, %v4933
        %v4952 = vsel %vm944, 0.0, %v4934
        %v4953 = vsel %vm944, 0.0, %v4935
        %v4954 = vsel %vm944, 0.0, %v4936
        %v4955 = vsel %vm944, %v4928, 0.0
        %v4956 = vsel %vm944, %v4929, 0.0
        %v4957 = vsel %vm944, %v4930, 0.0
        %v4958 = vsel %vm944, %v4931, 0.0
        %v4959 = vsel %vm944, %v4932, 0.0
        %v4960 = vsel %vm944, %v4933, 0.0
        %v4961 = vsel %vm944, %v4934, 0.0
        %v4962 = vsel %vm944, %v4935, 0.0
        %v4963 = vsel %vm944, %v4936, 0.0
        %vm4980 = vcmask 1046528
        %v4981 = vrot.slane %v4946, 1
        %v4982 = vrot.slane %v4955, 1
        %v4983 = vsel %vm4980, %v4981, %v4982
        %v4984 = vrot.slane %v4947, 1
        %v4985 = vrot.slane %v4956, 1
        %v4986 = vsel %vm4980, %v4984, %v4985
        %v4987 = vrot.slane %v4948, 1
        %v4988 = vrot.slane %v4957, 1
        %v4989 = vsel %vm4980, %v4987, %v4988
        %v4990 = vrot.slane %v4949, 1
        %v4991 = vrot.slane %v4958, 1
        %v4992 = vsel %vm4980, %v4990, %v4991
        %v4993 = vrot.slane %v4950, 1
        %v4994 = vrot.slane %v4959, 1
        %v4995 = vsel %vm4980, %v4993, %v4994
        %v4996 = vrot.slane %v4951, 1
        %v4997 = vrot.slane %v4960, 1
        %v4998 = vsel %vm4980, %v4996, %v4997
        %v4999 = vrot.slane %v4952, 1
        %v5000 = vrot.slane %v4961, 1
        %v5001 = vsel %vm4980, %v4999, %v5000
        %v5002 = vrot.slane %v4953, 1
        %v5003 = vrot.slane %v4962, 1
        %v5004 = vsel %vm4980, %v5002, %v5003
        %v5013 = vadd.f32 %v4946, %v4983
        %v5014 = vadd.f32 %v4947, %v4986
        %v5015 = vadd.f32 %v4948, %v4989
        %v5016 = vadd.f32 %v4949, %v4992
        %v5017 = vadd.f32 %v4950, %v4995
        %v5018 = vadd.f32 %v4951, %v4998
        %v5019 = vadd.f32 %v4952, %v5001
        %v5020 = vadd.f32 %v4953, %v5004
        %vm5021 = vcmask 1045504
        %v5022 = vrot.slane %v4946, 2
        %v5023 = vrot.slane %v4955, 2
        %v5024 = vsel %vm5021, %v5022, %v5023
        %v5025 = vrot.slane %v4947, 2
        %v5026 = vrot.slane %v4956, 2
        %v5027 = vsel %vm5021, %v5025, %v5026
        %v5028 = vrot.slane %v4948, 2
        %v5029 = vrot.slane %v4957, 2
        %v5030 = vsel %vm5021, %v5028, %v5029
        %v5031 = vrot.slane %v4949, 2
        %v5032 = vrot.slane %v4958, 2
        %v5033 = vsel %vm5021, %v5031, %v5032
        %v5034 = vrot.slane %v4950, 2
        %v5035 = vrot.slane %v4959, 2
        %v5036 = vsel %vm5021, %v5034, %v5035
        %v5037 = vrot.slane %v4951, 2
        %v5038 = vrot.slane %v4960, 2
        %v5039 = vsel %vm5021, %v5037, %v5038
        %v5040 = vrot.slane %v4952, 2
        %v5041 = vrot.slane %v4961, 2
        %v5042 = vsel %vm5021, %v5040, %v5041
        %v5043 = vrot.slane %v4953, 2
        %v5044 = vrot.slane %v4962, 2
        %v5045 = vsel %vm5021, %v5043, %v5044
        %v5054 = vadd.f32 %v5013, %v5024
        %v5055 = vadd.f32 %v5014, %v5027
        %v5056 = vadd.f32 %v5015, %v5030
        %v5057 = vadd.f32 %v5016, %v5033
        %v5058 = vadd.f32 %v5017, %v5036
        %v5059 = vadd.f32 %v5018, %v5039
        %v5060 = vadd.f32 %v5019, %v5042
        %v5061 = vadd.f32 %v5020, %v5045
        %v5062 = vadd.f32 %v5054, %v4947
        %v5063 = vadd.f32 %v5055, %v4948
        %v5064 = vadd.f32 %v5056, %v4949
        %v5065 = vadd.f32 %v5057, %v4950
        %v5066 = vadd.f32 %v5058, %v4951
        %v5067 = vadd.f32 %v5059, %v4952
        %v5068 = vadd.f32 %v5060, %v4953
        %v5069 = vadd.f32 %v5061, %v4954
        %v5072 = vrot.slane %v4954, 1
        %v5073 = vrot.slane %v4963, 1
        %v5074 = vsel %vm4980, %v5072, %v5073
        %v5076 = vadd.f32 %v5062, %v4986
        %v5077 = vadd.f32 %v5063, %v4989
        %v5078 = vadd.f32 %v5064, %v4992
        %v5079 = vadd.f32 %v5065, %v4995
        %v5080 = vadd.f32 %v5066, %v4998
        %v5081 = vadd.f32 %v5067, %v5001
        %v5082 = vadd.f32 %v5068, %v5004
        %v5083 = vadd.f32 %v5069, %v5074
        %v5084 = vrot.slane %v4954, 2
        %v5085 = vrot.slane %v4963, 2
        %v5086 = vsel %vm5021, %v5084, %v5085
        %v5088 = vadd.f32 %v5076, %v5027
        %v5089 = vadd.f32 %v5077, %v5030
        %v5090 = vadd.f32 %v5078, %v5033
        %v5091 = vadd.f32 %v5079, %v5036
        %v5092 = vadd.f32 %v5080, %v5039
        %v5093 = vadd.f32 %v5081, %v5042
        %v5094 = vadd.f32 %v5082, %v5045
        %v5095 = vadd.f32 %v5083, %v5086
        %v5096 = vadd.f32 %v5088, %v4948
        %v5097 = vadd.f32 %v5089, %v4949
        %v5098 = vadd.f32 %v5090, %v4950
        %v5099 = vadd.f32 %v5091, %v4951
        %v5100 = vadd.f32 %v5092, %v4952
        %v5101 = vadd.f32 %v5093, %v4953
        %v5102 = vadd.f32 %v5094, %v4954
        %v5103 = vadd.f32 %v5095, %v4946
        %v5104 = vadd.f32 %v5096, %v4989
        %v5105 = vadd.f32 %v5097, %v4992
        %v5106 = vadd.f32 %v5098, %v4995
        %v5107 = vadd.f32 %v5099, %v4998
        %v5108 = vadd.f32 %v5100, %v5001
        %v5109 = vadd.f32 %v5101, %v5004
        %v5110 = vadd.f32 %v5102, %v5074
        %v5111 = vadd.f32 %v5103, %v4983
        %v5112 = vadd.f32 %v5104, %v5030
        %v5113 = vadd.f32 %v5105, %v5033
        %v5114 = vadd.f32 %v5106, %v5036
        %v5115 = vadd.f32 %v5107, %v5039
        %v5116 = vadd.f32 %v5108, %v5042
        %v5117 = vadd.f32 %v5109, %v5045
        %v5118 = vadd.f32 %v5110, %v5086
        %v5119 = vadd.f32 %v5111, %v5024
        %v5120 = vld [vmem:[%s10] sm:$0xff]
        %v5121 = vld [vmem:[%s10 + $0x8] sm:$0xff]
        %v5122 = vld [vmem:[%s10 + $0x10] sm:$0xff]
        %v5123 = vld [vmem:[%s10 + $0x18] sm:$0xff]
        %v5124 = vld [vmem:[%s10 + $0x20] sm:$0xff]
        %v5125 = vld [vmem:[%s10 + $0x28] sm:$0xff]
        %v5126 = vld [vmem:[%s10 + $0x30] sm:$0xff]
        %v5127 = vld [vmem:[%s10 + $0x38] sm:$0xff]
        %5129 = vset.pattern.permute.xlu0 0
        %5130 = vperm.xlu0 %5129, %v5120
        %v5131 = vpop.permute.xlu0 %5130
        %5134 = vset.pattern.permute.xlu0 0
        %5135 = vperm.xlu0 %5134, %v5121
        %v5136 = vpop.permute.xlu0 %5135
        %5139 = vset.pattern.permute.xlu0 0
        %5140 = vperm.xlu0 %5139, %v5122
        %v5141 = vpop.permute.xlu0 %5140
        %5144 = vset.pattern.permute.xlu0 0
        %5145 = vperm.xlu0 %5144, %v5123
        %v5146 = vpop.permute.xlu0 %5145
        %5149 = vset.pattern.permute.xlu0 0
        %5150 = vperm.xlu0 %5149, %v5124
        %v5151 = vpop.permute.xlu0 %5150
        %5154 = vset.pattern.permute.xlu0 0
        %5155 = vperm.xlu0 %5154, %v5125
        %v5156 = vpop.permute.xlu0 %5155
        %5159 = vset.pattern.permute.xlu0 0
        %5160 = vperm.xlu0 %5159, %v5126
        %v5161 = vpop.permute.xlu0 %5160
        %5164 = vset.pattern.permute.xlu0 0
        %5165 = vperm.xlu0 %5164, %v5127
        %v5166 = vpop.permute.xlu0 %5165
        %v5168 = vmul.f32 %v5112, %v5131
        %v5169 = vmul.f32 %v5113, %v5136
        %v5170 = vmul.f32 %v5114, %v5141
        %v5171 = vmul.f32 %v5115, %v5146
        %v5172 = vmul.f32 %v5116, %v5151
        %v5173 = vmul.f32 %v5117, %v5156
        %v5174 = vmul.f32 %v5118, %v5161
        %v5175 = vmul.f32 %v5119, %v5166
        %v5176 = vld [vmem:[%s3] sm:$0x1]
        %v5178 = vlaneseq
        %v5179 = vshrl.u32 %v5178, 7
        %v5180 = vsub.s32 0, %v5179
        %v5181 = vrot.slane %v5176, %v5180
        %v5183 = vadd.f32 %v5168, %v5181
        %v5184 = vadd.f32 %v5169, %v5181
        %v5185 = vadd.f32 %v5170, %v5181
        %v5186 = vadd.f32 %v5171, %v5181
        %v5187 = vadd.f32 %v5172, %v5181
        %v5188 = vadd.f32 %v5173, %v5181
        %v5189 = vadd.f32 %v5174, %v5181
        %v5190 = vadd.f32 %v5175, %v5181
        %v5191 = vmax.f32 %v5183, 0.0
        %v5192 = vmax.f32 %v5184, 0.0
        %v5193 = vmax.f32 %v5185, 0.0
        %v5194 = vmax.f32 %v5186, 0.0
        %v5195 = vmax.f32 %v5187, 0.0
        %v5196 = vmax.f32 %v5188, 0.0
        %v5197 = vmax.f32 %v5189, 0.0
        %v5198 = vmax.f32 %v5190, 0.0
        %5207 = vrot.lane.b32.xlu0 %v2737, 96
        %v5208 = vpop.permute.xlu0 %5207
        %5209 = vrot.lane.b32.xlu0 %v2738, 96
        %v5210 = vpop.permute.xlu0 %5209
        %5211 = vrot.lane.b32.xlu0 %v2739, 96
        %v5212 = vpop.permute.xlu0 %5211
        %5213 = vrot.lane.b32.xlu0 %v2740, 96
        %v5214 = vpop.permute.xlu0 %5213
        %5215 = vrot.lane.b32.xlu0 %v2741, 96
        %v5216 = vpop.permute.xlu0 %5215
        %5217 = vrot.lane.b32.xlu0 %v2742, 96
        %v5218 = vpop.permute.xlu0 %5217
        %5219 = vrot.lane.b32.xlu0 %v2743, 96
        %v5220 = vpop.permute.xlu0 %5219
        %5221 = vrot.lane.b32.xlu0 %v2744, 96
        %v5222 = vpop.permute.xlu0 %5221
        %5239 = vrot.lane.b32.xlu0 %v4863, 32
        %v5240 = vpop.permute.xlu0 %5239
        %5241 = vrot.lane.b32.xlu0 %v4864, 32
        %v5242 = vpop.permute.xlu0 %5241
        %5243 = vrot.lane.b32.xlu0 %v4865, 32
        %v5244 = vpop.permute.xlu0 %5243
        %5245 = vrot.lane.b32.xlu0 %v4866, 32
        %v5246 = vpop.permute.xlu0 %5245
        %5247 = vrot.lane.b32.xlu0 %v4867, 32
        %v5248 = vpop.permute.xlu0 %5247
        %5249 = vrot.lane.b32.xlu0 %v4868, 32
        %v5250 = vpop.permute.xlu0 %5249
        %5251 = vrot.lane.b32.xlu0 %v4869, 32
        %v5252 = vpop.permute.xlu0 %5251
        %5253 = vrot.lane.b32.xlu0 %v4870, 32
        %v5254 = vpop.permute.xlu0 %5253
        %v5263 = vsel %vm1524, %v829, %v5208
        %v5264 = vsel %vm1524, %v831, %v5210
        %v5265 = vsel %vm1524, %v833, %v5212
        %v5266 = vsel %vm1524, %v835, %v5214
        %v5267 = vsel %vm1524, %v837, %v5216
        %v5268 = vsel %vm1524, %v839, %v5218
        %v5269 = vsel %vm1524, %v841, %v5220
        %v5270 = vsel %vm1524, %v843, %v5222
        %v5271 = vsel %vm1567, %v5208, %v5240
        %v5272 = vsel %vm1567, %v5210, %v5242
        %v5273 = vsel %vm1567, %v5212, %v5244
        %v5274 = vsel %vm1567, %v5214, %v5246
        %v5275 = vsel %vm1567, %v5216, %v5248
        %v5276 = vsel %vm1567, %v5218, %v5250
        %v5277 = vsel %vm1567, %v5220, %v5252
        %v5278 = vsel %vm1567, %v5222, %v5254
        %5279 = vst [vmem:[%s379] sm:$0xff] %v5263
        %5280 = vst [vmem:[%s379 + $0x8] sm:$0xff] %v5271
        %5281 = vst.msk [vmem:[%s379 + $0x10] sm:$0xff] %vm650, %v5191
        %5282 = vst [vmem:[%s379 + $0x18] sm:$0xff] %v5264
        %5283 = vst [vmem:[%s379 + $0x20] sm:$0xff] %v5272
        %5284 = vst.msk [vmem:[%s379 + $0x28] sm:$0xff] %vm650, %v5192
        %5285 = vst [vmem:[%s379 + $0x30] sm:$0xff] %v5265
        %5286 = vst [vmem:[%s379 + $0x38] sm:$0xff] %v5273
        %5287 = vst.msk [vmem:[%s379 + $0x40] sm:$0xff] %vm650, %v5193
        %5288 = vst [vmem:[%s379 + $0x48] sm:$0xff] %v5266
        %5289 = vst [vmem:[%s379 + $0x50] sm:$0xff] %v5274
        %5290 = vst.msk [vmem:[%s379 + $0x58] sm:$0xff] %vm650, %v5194
        %5291 = vst [vmem:[%s379 + $0x60] sm:$0xff] %v5267
        %5292 = vst [vmem:[%s379 + $0x68] sm:$0xff] %v5275
        %5293 = vst.msk [vmem:[%s379 + $0x70] sm:$0xff] %vm650, %v5195
        %5294 = vst [vmem:[%s379 + $0x78] sm:$0xff] %v5268
        %5295 = vst [vmem:[%s379 + $0x80] sm:$0xff] %v5276
        %5296 = vst.msk [vmem:[%s379 + $0x88] sm:$0xff] %vm650, %v5196
        %5297 = vst [vmem:[%s379 + $0x90] sm:$0xff] %v5269
        %5298 = vst [vmem:[%s379 + $0x98] sm:$0xff] %v5277
        %5299 = vst.msk [vmem:[%s379 + $0xa0] sm:$0xff] %vm650, %v5197
        %5300 = vst [vmem:[%s379 + $0xa8] sm:$0xff] %v5270
        %5301 = vst [vmem:[%s379 + $0xb0] sm:$0xff] %v5278
        %5302 = vst.msk [vmem:[%s379 + $0xb8] sm:$0xff] %vm650, %v5198
        %s5303 = sand.u32 %s269, 1
        %s5304 = scalar_lea.sflag [#allocation3], %s5303
        %s5305 = sand.u32 %s269, 1
        %s5306 = smul.addr %s5305, 192
        %s5307 = scalar_lea.vmem [#allocation2], %s5306
        // Predicated region
        $region65: #{mixed_5b_forward.1} parent=63 // pred_check
          %p5308 = pneg %p279
        $region66: #{mixed_5b_forward.1} parent=63 // pred_check_branch
          %5310 = sbr.rel (%p5308) target = $region68
        $region67: #{mixed_5b_forward.1} parent=63 // pred_region
          %s5312 = ssub.s32 3072, 3072
          %5313 = vsyncadd %s5304, %s5312
          %s5314 = smul.addr %s25, 24
          %s5315 = smul.addr %s5314, 128
          %s5316 = scalar_lea.hbm %s11, %s5315
          %s5317 = sshll.u32 %s5307, 4
          %s5318 = int_to_ptr.vmem [resolvable:$true] %s5317
          %5323 = dma.vmem_to_hbm [thread:$0]  %s5318, 3072, %s5316, %s5304, 384, 384, 24
        $region68: #{mixed_5b_forward.1} parent=63 // pred_fallthru
          _
      $region64: #{mixed_5b_forward.1} parent=5 // pred_fallthru
        _
      %p5324 = scmp.le.s32.totalorder 2, %s20
      // Predicated region
      $region69: #{mixed_5b_forward.1} parent=5 // pred_check
        %p5325 = pneg %p5324
      $region70: #{mixed_5b_forward.1} parent=5 // pred_check_branch
        %5327 = sbr.rel (%p5325) target = $region72
      $region71: #{mixed_5b_forward.1} parent=5 // pred_region
        %s5328 = ssub.s32 %s20, 2
        // Predicated region
        $region73: #{mixed_5b_forward.1} parent=71 // pred_check
          %p5329 = pneg %p285
        $region74: #{mixed_5b_forward.1} parent=71 // pred_check_branch
          %5331 = sbr.rel (%p5329) target = $region76
        $region75: #{mixed_5b_forward.1} parent=71 // pred_region
          %s5332 = sand.u32 %s270, 1
          %s5333 = scalar_lea.sflag [#allocation3], %s5332
          %s5334 = sand.u32 %s270, 1
          %s5335 = smul.addr %s5334, 192
          %s5336 = scalar_lea.vmem [#allocation2], %s5335
          %5337 = dma.done %s5333, 3072
        $region76: #{mixed_5b_forward.1} parent=71 // pred_fallthru
          _
      $region72: #{mixed_5b_forward.1} parent=5 // pred_fallthru
        _
    $region6: #{mixed_5b_forward.1} parent=1 // loop_footer
      %s24 = sadd.s32 1, %s20
    $region7: #{mixed_5b_forward.1} parent=1 // loop_footer_branch
      %19 = sbr.rel target = $region3
    $region8: #{mixed_5b_forward.1} parent=1 // loop_exit
      _
    %5338 = vsyncpa [#allocation3], 1
    %s5339 = scalar_lea.sflag [#allocation3], 1
    %5340 = vsyncpa %s5339, 1

</llo_original>
